<compile_context>
chip_gen: v6e
topology: v6e:2x2x1
jax: 0.10.0
libtpu: 0.0.40
codegen_flags: <defaults>
</compile_context>

<pallas_src>
import functools

import jax
import jax.numpy as jnp
import numpy as np
from jax.experimental import pallas as pl
from jax.experimental.pallas import tpu as pltpu

LEAKY_SLOPE = 0.2
BN_EPS = 1e-5
K_SIZE = 4   # conv kernel size
PAD = 1      # conv padding

TM_MAX = 512                        # M-tile (rows of im2col matrix)
MATMUL_DTYPE = jnp.bfloat16         # MXU operand / intermediate dtype (f32 accum)
VMEM_LIMIT_BYTES = 48 * 1024 * 1024 # scoped-VMEM budget (<= v7x 64 MiB physical)


def _round_up(x, m):
    return (x + m - 1) // m * m


def _compiler_params():
    return pltpu.CompilerParams(
        dimension_semantics=("parallel",),
        vmem_limit_bytes=VMEM_LIMIT_BYTES,
    )


# --------------------------------------------------------------------------
# Single conv kernel used by every layer:
#   [optional fold of previous layer's BN+LeakyReLU onto the patch tile]
#   matmul + bias  [+ LeakyReLU]  [+ per-tile BN sum / sum-of-squares]
# --------------------------------------------------------------------------
def _conv_kernel(*refs, fold_in, emit_stats, act):
    i = 0
    sc_ref = None
    if fold_in:
        sc_ref = refs[i]; i += 1
    p_ref, w_ref, b_ref = refs[i], refs[i + 1], refs[i + 2]; i += 3
    o_ref = refs[i]; i += 1
    st_ref = refs[i] if emit_stats else None

    x = p_ref[...]                                       # (TM, K) bf16 patches
    if fold_in:
        # Previous layer's BatchNorm + LeakyReLU, folded onto the patch tile.
        # Patches were built from (y_prev + shift/scale), zero-padded, so
        # leaky(x * scale) == leaky(y_prev*scale + shift) on real pixels and
        # exactly 0 on conv-padding pixels.
        xf = x.astype(jnp.float32) * sc_ref[...]         # (1, K) broadcast
        xf = jnp.where(xf > 0, xf, LEAKY_SLOPE * xf)
        x = xf.astype(MATMUL_DTYPE)

    y = jnp.dot(x, w_ref[...], preferred_element_type=jnp.float32)
    y = y + b_ref[...]
    if act:
        y = jnp.where(y > 0, y, LEAKY_SLOPE * y)
    o_ref[...] = y.astype(o_ref.dtype)

    if emit_stats:
        # Padded patch rows are all-zero and norm layers have no bias, so they
        # contribute exactly 0 to both sums -> no row masking needed.
        s1 = jnp.sum(y, axis=0, keepdims=True)           # (1, C)
        s2 = jnp.sum(y * y, axis=0, keepdims=True)       # (1, C)
        st_ref[:, 0:1, :] = s1[None]
        st_ref[:, 1:2, :] = s2[None]


# --------------------------------------------------------------------------
# Glue: im2col patch extraction (pure reshapes / slices / pads)
# --------------------------------------------------------------------------
def extract_patches(x, k, s, p):
    # x: (N, H, W, C)  ->  (N*Ho*Wo, k*k*C), plus output spatial dims
    N, H, W, C = x.shape
    xp = jnp.pad(x, ((0, 0), (p, p), (p, p), (0, 0)))
    Ho = (H + 2 * p - k) // s + 1
    Wo = (W + 2 * p - k) // s + 1
    cols = []
    for kh in range(k):
        for kw in range(k):
            cols.append(xp[:, kh:kh + s * (Ho - 1) + 1:s,
                            kw:kw + s * (Wo - 1) + 1:s, :])
    pat = jnp.stack(cols, axis=3)               # (N, Ho, Wo, k*k, C)
    return pat.reshape(N * Ho * Wo, k * k * C), (N, Ho, Wo)


def _build_w_mat(w, c_out_pad):
    # (Cout, Cin, KH, KW) -> (KH*KW*Cin, Cout_pad), matching patch ordering
    cout, cin, kh, kw = w.shape
    w_mat = jnp.transpose(w, (2, 3, 1, 0)).reshape(kh * kw * cin, cout)
    if c_out_pad != cout:
        w_mat = jnp.pad(w_mat, ((0, 0), (0, c_out_pad - cout)))
    return w_mat.astype(MATMUL_DTYPE)


# --------------------------------------------------------------------------
# One layer: Conv2d(k=4,p=1) [+ BatchNorm2d batch stats] [+ LeakyReLU(0.2)]
# Returns (x_next, next_in_scale):
#   * non-norm layer: x_next is the finished activation, next_in_scale=None
#   * norm layer:     x_next is raw conv output + shift/scale (per channel),
#                     next_in_scale is the BN scale to fold into the consumer
# --------------------------------------------------------------------------
def conv_bn_act_layer(x, in_scale, lp, *, is_last):
    s, C, norm, act = lp["s"], lp["nf"], lp["norm"], lp["act"]

    patches, (N, Ho, Wo) = extract_patches(x.astype(MATMUL_DTYPE), K_SIZE, s, PAD)
    M, K = patches.shape
    tm = _round_up(pl.cdiv(M, pl.cdiv(M, TM_MAX)), 16)   # balanced, bf16-friendly
    M_pad = _round_up(M, tm)
    if M_pad != M:
        patches = jnp.pad(patches, ((0, M_pad - M), (0, 0)))
    G = M_pad // tm

    C_pad = _round_up(max(C, 128), 128)                  # lane-dense output stores
    w_mat = _build_w_mat(lp["w"], C_pad)
    if norm:
        # Conv2d(bias=not norm): no bias term for BN layers (also keeps padded
        # patch rows at exactly 0 for the in-kernel statistics).
        bias = jnp.zeros((1, C_pad), jnp.float32)
    else:
        bias = jnp.pad(lp["b"].astype(jnp.float32), (0, C_pad - C))[None, :]

    fold_in = in_scale is not None
    emit_stats = norm
    act_in_kernel = act and not norm        # BN layers: act folded into next layer
    out_dtype = jnp.float32 if is_last else MATMUL_DTYPE

    kernel = functools.partial(_conv_kernel, fold_in=fold_in,
                               emit_stats=emit_stats, act=act_in_kernel)

    in_specs, operands = [], []
    if fold_in:
        sc_tiled = jnp.tile(in_scale.astype(jnp.float32), K_SIZE * K_SIZE)[None, :]
        in_specs.append(pl.BlockSpec((1, K), lambda i: (0, 0)))
        operands.append(sc_tiled)
    in_specs += [
        pl.BlockSpec((tm, K), lambda i: (i, 0)),
        pl.BlockSpec((K, C_pad), lambda i: (0, 0)),
        pl.BlockSpec((1, C_pad), lambda i: (0, 0)),
    ]
    operands += [patches, w_mat, bias]

    if emit_stats:
        out_shape = (jax.ShapeDtypeStruct((M_pad, C_pad), out_dtype),
                     jax.ShapeDtypeStruct((G, 2, C_pad), jnp.float32))
        out_specs = (pl.BlockSpec((tm, C_pad), lambda i: (i, 0)),
                     pl.BlockSpec((1, 2, C_pad), lambda i: (i, 0, 0)))
    else:
        out_shape = jax.ShapeDtypeStruct((M_pad, C_pad), out_dtype)
        out_specs = pl.BlockSpec((tm, C_pad), lambda i: (i, 0))

    res = pl.pallas_call(
        kernel,
        out_shape=out_shape,
        grid=(G,),
        in_specs=in_specs,
        out_specs=out_specs,
        compiler_params=_compiler_params(),
    )(*operands)

    if emit_stats:
        y, part = res
    else:
        y = res

    y = y[:M, :C].reshape(N, Ho, Wo, C)

    if not norm:
        return y, None

    # BN batch statistics from per-tile partial sums (f32 accumulation).
    # NOTE: E[x^2]-mean^2 in f32; acceptable while |mean| is not >> std.
    sums = jnp.sum(part, axis=0)[:, :C]                  # (2, C), tiny
    mean = sums[0] / M
    var = jnp.maximum(sums[1] / M - mean * mean, 0.0)
    scale = lp["gamma"] * jax.lax.rsqrt(var + BN_EPS)
    shift = lp["beta"] - mean * scale
    # Next layer computes leaky((y + shift/scale) * scale) == leaky(y*scale+shift)
    # on its patch tiles; the per-channel add fuses into XLA's im2col slices.
    x_next = y.astype(jnp.float32) + (shift / scale)[None, None, None, :]
    return x_next, scale


# --------------------------------------------------------------------------
# Parameter construction mirroring PatchDiscriminator.__init__
# --------------------------------------------------------------------------
def init_params(key, input_c, num_filters=64, n_down=3):
    cfgs = [dict(ni=input_c, nf=num_filters, s=2, norm=False, act=True)]
    for i in range(n_down):
        cfgs.append(dict(ni=num_filters * 2 ** i, nf=num_filters * 2 ** (i + 1),
                         s=1 if i == n_down - 1 else 2, norm=True, act=True))
    cfgs.append(dict(ni=num_filters * 2 ** n_down, nf=1, s=1, norm=False, act=False))

    params = []
    for cfg in cfgs:
        key, kw_, kb_, kg_, kbt_ = jax.random.split(key, 5)
        w = 0.05 * jax.random.normal(kw_, (cfg["nf"], cfg["ni"], K_SIZE, K_SIZE),
                                     jnp.float32)
        if cfg["norm"]:                      # Conv2d(bias = not norm)
            b = jnp.zeros((cfg["nf"],), jnp.float32)
        else:
            b = 0.05 * jax.random.normal(kb_, (cfg["nf"],), jnp.float32)
        gamma = 1.0 + 0.05 * jax.random.normal(kg_, (cfg["nf"],), jnp.float32)
        beta = 0.05 * jax.random.normal(kbt_, (cfg["nf"],), jnp.float32)
        params.append(dict(w=w, b=b, gamma=gamma, beta=beta, **cfg))
    return params


# --------------------------------------------------------------------------
# Forward pass (Pallas) and a plain-JAX reference for sanity checking
# --------------------------------------------------------------------------
def patch_discriminator_forward(x_nchw, params):
    x = jnp.transpose(x_nchw, (0, 2, 3, 1))   # NCHW -> NHWC
    in_scale = None
    for idx, lp in enumerate(params):
        x, in_scale = conv_bn_act_layer(x, in_scale, lp,
                                        is_last=(idx == len(params) - 1))
    return jnp.transpose(x, (0, 3, 1, 2))     # NHWC -> NCHW


def reference_forward(x_nchw, params):
    x = jnp.transpose(x_nchw, (0, 2, 3, 1))
    for lp in params:
        w = jnp.transpose(lp["w"], (2, 3, 1, 0))  # HWIO
        y = jax.lax.conv_general_dilated(
            x, w, (lp["s"], lp["s"]), [(PAD, PAD), (PAD, PAD)],
            dimension_numbers=("NHWC", "HWIO", "NHWC"))
        y = y + lp["b"]
        if lp["norm"]:
            mean = jnp.mean(y, axis=(0, 1, 2), keepdims=True)
            var = jnp.mean(jnp.square(y - mean), axis=(0, 1, 2), keepdims=True)
            y = (y - mean) * jax.lax.rsqrt(var + BN_EPS) * lp["gamma"] + lp["beta"]
        if lp["act"]:
            y = jnp.where(y > 0, y, LEAKY_SLOPE * y)
        x = y
    return jnp.transpose(x, (0, 3, 1, 2))


if __name__ == "__main__":
    key = jax.random.PRNGKey(0)
    kx, kp = jax.random.split(key)

    # Small but consistent shapes: 32x32 input so every conv layer has a
    # non-empty output (16 -> 8 -> 4 -> 3 -> 2 spatial).
    input_c, num_filters, n_down = 3, 16, 3
    x = jax.random.normal(kx, (2, input_c, 32, 32), jnp.float32)
    params = init_params(kp, input_c, num_filters, n_down)

    out = jax.jit(lambda xx: patch_discriminator_forward(xx, params))(x)
    out = jax.block_until_ready(out)

    ref = reference_forward(x, params)
    # bf16 MXU operands AND bf16 intermediate activations (f32 accumulation /
    # f32 BN statistics) -> compare at a slightly looser bf16-level tolerance.
    np.testing.assert_allclose(np.asarray(out), np.asarray(ref),
                               rtol=3e-2, atol=3e-2)
    assert out.shape == (2, 1, 2, 2)
    print("KERNEL_OK")
</pallas_src>

<mosaic_0001>
module attributes {stable_mosaic.version = 11 : i64} {
  func.func @_conv_kernel(%arg0: i32, %arg1: memref<512x48xbf16, #tpu.memory_space<vmem>>, %arg2: memref<48x128xbf16, #tpu.memory_space<vmem>>, %arg3: memref<1x128xf32, #tpu.memory_space<vmem>>, %arg4: memref<512x128xbf16, #tpu.memory_space<vmem>>) attributes {dimension_semantics = [#tpu.dimension_semantics<parallel>], iteration_bounds = array<i64: 1>, scalar_prefetch = 0 : i64, scratch_operands = 0 : i64, tpu.core_type = #tpu.core_type<tc>, window_params = [{transform_indices = @transform_0, window_bounds = array<i64: 512, 48>}, {pipeline_mode = #tpu.pipeline_mode<synchronous>, transform_indices = @transform_1, window_bounds = array<i64: 48, 128>}, {pipeline_mode = #tpu.pipeline_mode<synchronous>, transform_indices = @transform_2, window_bounds = array<i64: 1, 128>}, {transform_indices = @transform_3, window_bounds = array<i64: 512, 128>}]} {
    %c0 = arith.constant 0 : index
    %c0_0 = arith.constant 0 : index
    %0 = vector.load %arg1[%c0, %c0_0] : memref<512x48xbf16, #tpu.memory_space<vmem>>, vector<512x48xbf16>
    %c0_1 = arith.constant 0 : index
    %c0_2 = arith.constant 0 : index
    %1 = vector.load %arg2[%c0_1, %c0_2] : memref<48x128xbf16, #tpu.memory_space<vmem>>, vector<48x128xbf16>
    %cst = arith.constant dense<0.000000e+00> : vector<512x128xf32>
    %2 = tpu.matmul %0, %1, %cst {dimension_numbers = #tpu.dot_dimension_numbers<[1], [0], [0], [1], [0, 0, 1, 1], [], []>} : vector<512x48xbf16>, vector<48x128xbf16>, vector<512x128xf32> -> vector<512x128xf32>
    %c0_3 = arith.constant 0 : index
    %c0_4 = arith.constant 0 : index
    %3 = vector.load %arg3[%c0_3, %c0_4] : memref<1x128xf32, #tpu.memory_space<vmem>>, vector<1x128xf32>
    %4 = vector.broadcast %3 : vector<1x128xf32> to vector<512x128xf32>
    %5 = arith.addf %2, %4 : vector<512x128xf32>
    %cst_5 = arith.constant 0.000000e+00 : f32
    %6 = vector.broadcast %cst_5 : f32 to vector<512x128xf32>
    %7 = arith.cmpf ogt, %5, %6 : vector<512x128xf32>
    %cst_6 = arith.constant 2.000000e-01 : f32
    %8 = vector.broadcast %cst_6 : f32 to vector<512x128xf32>
    %9 = arith.mulf %8, %5 : vector<512x128xf32>
    %10 = arith.select %7, %5, %9 : vector<512x128xi1>, vector<512x128xf32>
    %11 = arith.truncf %10 : vector<512x128xf32> to vector<512x128xbf16>
    %c0_7 = arith.constant 0 : index
    %c0_8 = arith.constant 0 : index
    %12 = vector.load %arg4[%c0_7, %c0_8] : memref<512x128xbf16, #tpu.memory_space<vmem>>, vector<512x128xbf16>
    tpu.vector_store %arg4[%c0_7, %c0_8], %11 {strides = array<i32>} : memref<512x128xbf16, #tpu.memory_space<vmem>>, vector<512x128xbf16>,
    return
  }
  func.func @transform_0(%arg0: i32) -> (i32, i32) {
    %c0_i32 = arith.constant 0 : i32
    %c0_i32_0 = arith.constant 0 : i32
    return %arg0, %c0_i32 : i32, i32
  }
  func.func @transform_1(%arg0: i32) -> (i32, i32) {
    %c0_i32 = arith.constant 0 : i32
    %c0_i32_0 = arith.constant 0 : i32
    %c0_i32_1 = arith.constant 0 : i32
    return %c0_i32, %c0_i32_0 : i32, i32
  }
  func.func @transform_2(%arg0: i32) -> (i32, i32) {
    %c0_i32 = arith.constant 0 : i32
    %c0_i32_0 = arith.constant 0 : i32
    %c0_i32_1 = arith.constant 0 : i32
    return %c0_i32, %c0_i32_0 : i32, i32
  }
  func.func @transform_3(%arg0: i32) -> (i32, i32) {
    %c0_i32 = arith.constant 0 : i32
    %c0_i32_0 = arith.constant 0 : i32
    return %arg0, %c0_i32 : i32, i32
  }
}

module attributes {stable_mosaic.version = 11 : i64} {
  func.func @_conv_kernel(%arg0: i32, %arg1: memref<128x256xbf16, #tpu.memory_space<vmem>>, %arg2: memref<256x128xbf16, #tpu.memory_space<vmem>>, %arg3: memref<1x128xf32, #tpu.memory_space<vmem>>, %arg4: memref<128x128xbf16, #tpu.memory_space<vmem>>, %arg5: memref<1x2x128xf32, #tpu.memory_space<vmem>>) attributes {dimension_semantics = [#tpu.dimension_semantics<parallel>], iteration_bounds = array<i64: 1>, scalar_prefetch = 0 : i64, scratch_operands = 0 : i64, tpu.core_type = #tpu.core_type<tc>, window_params = [{transform_indices = @transform_0, window_bounds = array<i64: 128, 256>}, {pipeline_mode = #tpu.pipeline_mode<synchronous>, transform_indices = @transform_1, window_bounds = array<i64: 256, 128>}, {pipeline_mode = #tpu.pipeline_mode<synchronous>, transform_indices = @transform_2, window_bounds = array<i64: 1, 128>}, {transform_indices = @transform_3, window_bounds = array<i64: 128, 128>}, {transform_indices = @transform_4, window_bounds = array<i64: 1, 2, 128>}]} {
    %c0 = arith.constant 0 : index
    %c0_0 = arith.constant 0 : index
    %0 = vector.load %arg1[%c0, %c0_0] : memref<128x256xbf16, #tpu.memory_space<vmem>>, vector<128x256xbf16>
    %c0_1 = arith.constant 0 : index
    %c0_2 = arith.constant 0 : index
    %1 = vector.load %arg2[%c0_1, %c0_2] : memref<256x128xbf16, #tpu.memory_space<vmem>>, vector<256x128xbf16>
    %cst = arith.constant dense<0.000000e+00> : vector<128x128xf32>
    %2 = tpu.matmul %0, %1, %cst {dimension_numbers = #tpu.dot_dimension_numbers<[1], [0], [0], [1], [0, 0, 1, 1], [], []>} : vector<128x256xbf16>, vector<256x128xbf16>, vector<128x128xf32> -> vector<128x128xf32>
    %c0_3 = arith.constant 0 : index
    %c0_4 = arith.constant 0 : index
    %3 = vector.load %arg3[%c0_3, %c0_4] : memref<1x128xf32, #tpu.memory_space<vmem>>, vector<1x128xf32>
    %4 = vector.broadcast %3 : vector<1x128xf32> to vector<128x128xf32>
    %5 = arith.addf %2, %4 : vector<128x128xf32>
    %6 = arith.truncf %5 : vector<128x128xf32> to vector<128x128xbf16>
    %c0_5 = arith.constant 0 : index
    %c0_6 = arith.constant 0 : index
    %7 = vector.load %arg4[%c0_5, %c0_6] : memref<128x128xbf16, #tpu.memory_space<vmem>>, vector<128x128xbf16>
    tpu.vector_store %arg4[%c0_5, %c0_6], %6 {strides = array<i32>} : memref<128x128xbf16, #tpu.memory_space<vmem>>, vector<128x128xbf16>,
    %cst_7 = arith.constant dense<0.000000e+00> : vector<128xf32>
    %8 = vector.multi_reduction <add>, %5, %cst_7 [0] : vector<128x128xf32> to vector<128xf32>
    %9 = vector.shape_cast %8 : vector<128xf32> to vector<1x128xf32>
    %10 = arith.mulf %5, %5 : vector<128x128xf32>
    %cst_8 = arith.constant dense<0.000000e+00> : vector<128xf32>
    %11 = vector.multi_reduction <add>, %10, %cst_8 [0] : vector<128x128xf32> to vector<128xf32>
    %12 = vector.shape_cast %11 : vector<128xf32> to vector<1x128xf32>
    %13 = vector.shape_cast %9 : vector<1x128xf32> to vector<1x1x128xf32>
    %c0_9 = arith.constant 0 : index
    %c0_10 = arith.constant 0 : index
    %c0_11 = arith.constant 0 : index
    %14 = vector.load %arg5[%c0_9, %c0_10, %c0_11] : memref<1x2x128xf32, #tpu.memory_space<vmem>>, vector<1x1x128xf32>
    tpu.vector_store %arg5[%c0_9, %c0_10, %c0_11], %13 {strides = array<i32>} : memref<1x2x128xf32, #tpu.memory_space<vmem>>, vector<1x1x128xf32>,
    %15 = vector.shape_cast %12 : vector<1x128xf32> to vector<1x1x128xf32>
    %c0_12 = arith.constant 0 : index
    %c1 = arith.constant 1 : index
    %c0_13 = arith.constant 0 : index
    %16 = vector.load %arg5[%c0_12, %c1, %c0_13] : memref<1x2x128xf32, #tpu.memory_space<vmem>>, vector<1x1x128xf32>
    tpu.vector_store %arg5[%c0_12, %c1, %c0_13], %15 {strides = array<i32>} : memref<1x2x128xf32, #tpu.memory_space<vmem>>, vector<1x1x128xf32>,
    return
  }
  func.func @transform_0(%arg0: i32) -> (i32, i32) {
    %c0_i32 = arith.constant 0 : i32
    %c0_i32_0 = arith.constant 0 : i32
    return %arg0, %c0_i32 : i32, i32
  }
  func.func @transform_1(%arg0: i32) -> (i32, i32) {
    %c0_i32 = arith.constant 0 : i32
    %c0_i32_0 = arith.constant 0 : i32
    %c0_i32_1 = arith.constant 0 : i32
    return %c0_i32, %c0_i32_0 : i32, i32
  }
  func.func @transform_2(%arg0: i32) -> (i32, i32) {
    %c0_i32 = arith.constant 0 : i32
    %c0_i32_0 = arith.constant 0 : i32
    %c0_i32_1 = arith.constant 0 : i32
    return %c0_i32, %c0_i32_0 : i32, i32
  }
  func.func @transform_3(%arg0: i32) -> (i32, i32) {
    %c0_i32 = arith.constant 0 : i32
    %c0_i32_0 = arith.constant 0 : i32
    return %arg0, %c0_i32 : i32, i32
  }
  func.func @transform_4(%arg0: i32) -> (i32, i32, i32) {
    %c0_i32 = arith.constant 0 : i32
    %c0_i32_0 = arith.constant 0 : i32
    %c0_i32_1 = arith.constant 0 : i32
    return %arg0, %c0_i32, %c0_i32_0 : i32, i32, i32
  }
}

module attributes {stable_mosaic.version = 11 : i64} {
  func.func @_conv_kernel(%arg0: i32, %arg1: memref<1x512xf32, #tpu.memory_space<vmem>>, %arg2: memref<32x512xbf16, #tpu.memory_space<vmem>>, %arg3: memref<512x128xbf16, #tpu.memory_space<vmem>>, %arg4: memref<1x128xf32, #tpu.memory_space<vmem>>, %arg5: memref<32x128xbf16, #tpu.memory_space<vmem>>, %arg6: memref<1x2x128xf32, #tpu.memory_space<vmem>>) attributes {dimension_semantics = [#tpu.dimension_semantics<parallel>], iteration_bounds = array<i64: 1>, scalar_prefetch = 0 : i64, scratch_operands = 0 : i64, tpu.core_type = #tpu.core_type<tc>, window_params = [{pipeline_mode = #tpu.pipeline_mode<synchronous>, transform_indices = @transform_0, window_bounds = array<i64: 1, 512>}, {transform_indices = @transform_1, window_bounds = array<i64: 32, 512>}, {pipeline_mode = #tpu.pipeline_mode<synchronous>, transform_indices = @transform_2, window_bounds = array<i64: 512, 128>}, {pipeline_mode = #tpu.pipeline_mode<synchronous>, transform_indices = @transform_3, window_bounds = array<i64: 1, 128>}, {transform_indices = @transform_4, window_bounds = array<i64: 32, 128>}, {transform_indices = @transform_5, window_bounds = array<i64: 1, 2, 128>}]} {
    %c0 = arith.constant 0 : index
    %c0_0 = arith.constant 0 : index
    %0 = vector.load %arg2[%c0, %c0_0] : memref<32x512xbf16, #tpu.memory_space<vmem>>, vector<32x512xbf16>
    %1 = arith.extf %0 : vector<32x512xbf16> to vector<32x512xf32>
    %c0_1 = arith.constant 0 : index
    %c0_2 = arith.constant 0 : index
    %2 = vector.load %arg1[%c0_1, %c0_2] : memref<1x512xf32, #tpu.memory_space<vmem>>, vector<1x512xf32>
    %3 = vector.broadcast %2 : vector<1x512xf32> to vector<32x512xf32>
    %4 = arith.mulf %1, %3 : vector<32x512xf32>
    %cst = arith.constant 0.000000e+00 : f32
    %5 = vector.broadcast %cst : f32 to vector<32x512xf32>
    %6 = arith.cmpf ogt, %4, %5 : vector<32x512xf32>
    %cst_3 = arith.constant 2.000000e-01 : f32
    %7 = vector.broadcast %cst_3 : f32 to vector<32x512xf32>
    %8 = arith.mulf %7, %4 : vector<32x512xf32>
    %9 = arith.select %6, %4, %8 : vector<32x512xi1>, vector<32x512xf32>
    %10 = arith.truncf %9 : vector<32x512xf32> to vector<32x512xbf16>
    %c0_4 = arith.constant 0 : index
    %c0_5 = arith.constant 0 : index
    %11 = vector.load %arg3[%c0_4, %c0_5] : memref<512x128xbf16, #tpu.memory_space<vmem>>, vector<512x128xbf16>
    %cst_6 = arith.constant dense<0.000000e+00> : vector<32x128xf32>
    %12 = tpu.matmul %10, %11, %cst_6 {dimension_numbers = #tpu.dot_dimension_numbers<[1], [0], [0], [1], [0, 0, 1, 1], [], []>} : vector<32x512xbf16>, vector<512x128xbf16>, vector<32x128xf32> -> vector<32x128xf32>
    %c0_7 = arith.constant 0 : index
    %c0_8 = arith.constant 0 : index
    %13 = vector.load %arg4[%c0_7, %c0_8] : memref<1x128xf32, #tpu.memory_space<vmem>>, vector<1x128xf32>
    %14 = vector.broadcast %13 : vector<1x128xf32> to vector<32x128xf32>
    %15 = arith.addf %12, %14 : vector<32x128xf32>
    %16 = arith.truncf %15 : vector<32x128xf32> to vector<32x128xbf16>
    %c0_9 = arith.constant 0 : index
    %c0_10 = arith.constant 0 : index
    %17 = vector.load %arg5[%c0_9, %c0_10] : memref<32x128xbf16, #tpu.memory_space<vmem>>, vector<32x128xbf16>
    tpu.vector_store %arg5[%c0_9, %c0_10], %16 {strides = array<i32>} : memref<32x128xbf16, #tpu.memory_space<vmem>>, vector<32x128xbf16>,
    %cst_11 = arith.constant dense<0.000000e+00> : vector<128xf32>
    %18 = vector.multi_reduction <add>, %15, %cst_11 [0] : vector<32x128xf32> to vector<128xf32>
    %19 = vector.shape_cast %18 : vector<128xf32> to vector<1x128xf32>
    %20 = arith.mulf %15, %15 : vector<32x128xf32>
    %cst_12 = arith.constant dense<0.000000e+00> : vector<128xf32>
    %21 = vector.multi_reduction <add>, %20, %cst_12 [0] : vector<32x128xf32> to vector<128xf32>
    %22 = vector.shape_cast %21 : vector<128xf32> to vector<1x128xf32>
    %23 = vector.shape_cast %19 : vector<1x128xf32> to vector<1x1x128xf32>
    %c0_13 = arith.constant 0 : index
    %c0_14 = arith.constant 0 : index
    %c0_15 = arith.constant 0 : index
    %24 = vector.load %arg6[%c0_13, %c0_14, %c0_15] : memref<1x2x128xf32, #tpu.memory_space<vmem>>, vector<1x1x128xf32>
    tpu.vector_store %arg6[%c0_13, %c0_14, %c0_15], %23 {strides = array<i32>} : memref<1x2x128xf32, #tpu.memory_space<vmem>>, vector<1x1x128xf32>,
    %25 = vector.shape_cast %22 : vector<1x128xf32> to vector<1x1x128xf32>
    %c0_16 = arith.constant 0 : index
    %c1 = arith.constant 1 : index
    %c0_17 = arith.constant 0 : index
    %26 = vector.load %arg6[%c0_16, %c1, %c0_17] : memref<1x2x128xf32, #tpu.memory_space<vmem>>, vector<1x1x128xf32>
    tpu.vector_store %arg6[%c0_16, %c1, %c0_17], %25 {strides = array<i32>} : memref<1x2x128xf32, #tpu.memory_space<vmem>>, vector<1x1x128xf32>,
    return
  }
  func.func @transform_0(%arg0: i32) -> (i32, i32) {
    %c0_i32 = arith.constant 0 : i32
    %c0_i32_0 = arith.constant 0 : i32
    %c0_i32_1 = arith.constant 0 : i32
    return %c0_i32, %c0_i32_0 : i32, i32
  }
  func.func @transform_1(%arg0: i32) -> (i32, i32) {
    %c0_i32 = arith.constant 0 : i32
    %c0_i32_0 = arith.constant 0 : i32
    return %arg0, %c0_i32 : i32, i32
  }
  func.func @transform_2(%arg0: i32) -> (i32, i32) {
    %c0_i32 = arith.constant 0 : i32
    %c0_i32_0 = arith.constant 0 : i32
    %c0_i32_1 = arith.constant 0 : i32
    return %c0_i32, %c0_i32_0 : i32, i32
  }
  func.func @transform_3(%arg0: i32) -> (i32, i32) {
    %c0_i32 = arith.constant 0 : i32
    %c0_i32_0 = arith.constant 0 : i32
    %c0_i32_1 = arith.constant 0 : i32
    return %c0_i32, %c0_i32_0 : i32, i32
  }
  func.func @transform_4(%arg0: i32) -> (i32, i32) {
    %c0_i32 = arith.constant 0 : i32
    %c0_i32_0 = arith.constant 0 : i32
    return %arg0, %c0_i32 : i32, i32
  }
  func.func @transform_5(%arg0: i32) -> (i32, i32, i32) {
    %c0_i32 = arith.constant 0 : i32
    %c0_i32_0 = arith.constant 0 : i32
    %c0_i32_1 = arith.constant 0 : i32
    return %arg0, %c0_i32, %c0_i32_0 : i32, i32, i32
  }
}

module attributes {stable_mosaic.version = 11 : i64} {
  func.func @_conv_kernel(%arg0: i32, %arg1: memref<1x1024xf32, #tpu.memory_space<vmem>>, %arg2: memref<32x1024xbf16, #tpu.memory_space<vmem>>, %arg3: memref<1024x128xbf16, #tpu.memory_space<vmem>>, %arg4: memref<1x128xf32, #tpu.memory_space<vmem>>, %arg5: memref<32x128xbf16, #tpu.memory_space<vmem>>, %arg6: memref<1x2x128xf32, #tpu.memory_space<vmem>>) attributes {dimension_semantics = [#tpu.dimension_semantics<parallel>], iteration_bounds = array<i64: 1>, scalar_prefetch = 0 : i64, scratch_operands = 0 : i64, tpu.core_type = #tpu.core_type<tc>, window_params = [{pipeline_mode = #tpu.pipeline_mode<synchronous>, transform_indices = @transform_0, window_bounds = array<i64: 1, 1024>}, {transform_indices = @transform_1, window_bounds = array<i64: 32, 1024>}, {pipeline_mode = #tpu.pipeline_mode<synchronous>, transform_indices = @transform_2, window_bounds = array<i64: 1024, 128>}, {pipeline_mode = #tpu.pipeline_mode<synchronous>, transform_indices = @transform_3, window_bounds = array<i64: 1, 128>}, {transform_indices = @transform_4, window_bounds = array<i64: 32, 128>}, {transform_indices = @transform_5, window_bounds = array<i64: 1, 2, 128>}]} {
    %c0 = arith.constant 0 : index
    %c0_0 = arith.constant 0 : index
    %0 = vector.load %arg2[%c0, %c0_0] : memref<32x1024xbf16, #tpu.memory_space<vmem>>, vector<32x1024xbf16>
    %1 = arith.extf %0 : vector<32x1024xbf16> to vector<32x1024xf32>
    %c0_1 = arith.constant 0 : index
    %c0_2 = arith.constant 0 : index
    %2 = vector.load %arg1[%c0_1, %c0_2] : memref<1x1024xf32, #tpu.memory_space<vmem>>, vector<1x1024xf32>
    %3 = vector.broadcast %2 : vector<1x1024xf32> to vector<32x1024xf32>
    %4 = arith.mulf %1, %3 : vector<32x1024xf32>
    %cst = arith.constant 0.000000e+00 : f32
    %5 = vector.broadcast %cst : f32 to vector<32x1024xf32>
    %6 = arith.cmpf ogt, %4, %5 : vector<32x1024xf32>
    %cst_3 = arith.constant 2.000000e-01 : f32
    %7 = vector.broadcast %cst_3 : f32 to vector<32x1024xf32>
    %8 = arith.mulf %7, %4 : vector<32x1024xf32>
    %9 = arith.select %6, %4, %8 : vector<32x1024xi1>, vector<32x1024xf32>
    %10 = arith.truncf %9 : vector<32x1024xf32> to vector<32x1024xbf16>
    %c0_4 = arith.constant 0 : index
    %c0_5 = arith.constant 0 : index
    %11 = vector.load %arg3[%c0_4, %c0_5] : memref<1024x128xbf16, #tpu.memory_space<vmem>>, vector<1024x128xbf16>
    %cst_6 = arith.constant dense<0.000000e+00> : vector<32x128xf32>
    %12 = tpu.matmul %10, %11, %cst_6 {dimension_numbers = #tpu.dot_dimension_numbers<[1], [0], [0], [1], [0, 0, 1, 1], [], []>} : vector<32x1024xbf16>, vector<1024x128xbf16>, vector<32x128xf32> -> vector<32x128xf32>
    %c0_7 = arith.constant 0 : index
    %c0_8 = arith.constant 0 : index
    %13 = vector.load %arg4[%c0_7, %c0_8] : memref<1x128xf32, #tpu.memory_space<vmem>>, vector<1x128xf32>
    %14 = vector.broadcast %13 : vector<1x128xf32> to vector<32x128xf32>
    %15 = arith.addf %12, %14 : vector<32x128xf32>
    %16 = arith.truncf %15 : vector<32x128xf32> to vector<32x128xbf16>
    %c0_9 = arith.constant 0 : index
    %c0_10 = arith.constant 0 : index
    %17 = vector.load %arg5[%c0_9, %c0_10] : memref<32x128xbf16, #tpu.memory_space<vmem>>, vector<32x128xbf16>
    tpu.vector_store %arg5[%c0_9, %c0_10], %16 {strides = array<i32>} : memref<32x128xbf16, #tpu.memory_space<vmem>>, vector<32x128xbf16>,
    %cst_11 = arith.constant dense<0.000000e+00> : vector<128xf32>
    %18 = vector.multi_reduction <add>, %15, %cst_11 [0] : vector<32x128xf32> to vector<128xf32>
    %19 = vector.shape_cast %18 : vector<128xf32> to vector<1x128xf32>
    %20 = arith.mulf %15, %15 : vector<32x128xf32>
    %cst_12 = arith.constant dense<0.000000e+00> : vector<128xf32>
    %21 = vector.multi_reduction <add>, %20, %cst_12 [0] : vector<32x128xf32> to vector<128xf32>
    %22 = vector.shape_cast %21 : vector<128xf32> to vector<1x128xf32>
    %23 = vector.shape_cast %19 : vector<1x128xf32> to vector<1x1x128xf32>
    %c0_13 = arith.constant 0 : index
    %c0_14 = arith.constant 0 : index
    %c0_15 = arith.constant 0 : index
    %24 = vector.load %arg6[%c0_13, %c0_14, %c0_15] : memref<1x2x128xf32, #tpu.memory_space<vmem>>, vector<1x1x128xf32>
    tpu.vector_store %arg6[%c0_13, %c0_14, %c0_15], %23 {strides = array<i32>} : memref<1x2x128xf32, #tpu.memory_space<vmem>>, vector<1x1x128xf32>,
    %25 = vector.shape_cast %22 : vector<1x128xf32> to vector<1x1x128xf32>
    %c0_16 = arith.constant 0 : index
    %c1 = arith.constant 1 : index
    %c0_17 = arith.constant 0 : index
    %26 = vector.load %arg6[%c0_16, %c1, %c0_17] : memref<1x2x128xf32, #tpu.memory_space<vmem>>, vector<1x1x128xf32>
    tpu.vector_store %arg6[%c0_16, %c1, %c0_17], %25 {strides = array<i32>} : memref<1x2x128xf32, #tpu.memory_space<vmem>>, vector<1x1x128xf32>,
    return
  }
  func.func @transform_0(%arg0: i32) -> (i32, i32) {
    %c0_i32 = arith.constant 0 : i32
    %c0_i32_0 = arith.constant 0 : i32
    %c0_i32_1 = arith.constant 0 : i32
    return %c0_i32, %c0_i32_0 : i32, i32
  }
  func.func @transform_1(%arg0: i32) -> (i32, i32) {
    %c0_i32 = arith.constant 0 : i32
    %c0_i32_0 = arith.constant 0 : i32
    return %arg0, %c0_i32 : i32, i32
  }
  func.func @transform_2(%arg0: i32) -> (i32, i32) {
    %c0_i32 = arith.constant 0 : i32
    %c0_i32_0 = arith.constant 0 : i32
    %c0_i32_1 = arith.constant 0 : i32
    return %c0_i32, %c0_i32_0 : i32, i32
  }
  func.func @transform_3(%arg0: i32) -> (i32, i32) {
    %c0_i32 = arith.constant 0 : i32
    %c0_i32_0 = arith.constant 0 : i32
    %c0_i32_1 = arith.constant 0 : i32
    return %c0_i32, %c0_i32_0 : i32, i32
  }
  func.func @transform_4(%arg0: i32) -> (i32, i32) {
    %c0_i32 = arith.constant 0 : i32
    %c0_i32_0 = arith.constant 0 : i32
    return %arg0, %c0_i32 : i32, i32
  }
  func.func @transform_5(%arg0: i32) -> (i32, i32, i32) {
    %c0_i32 = arith.constant 0 : i32
    %c0_i32_0 = arith.constant 0 : i32
    %c0_i32_1 = arith.constant 0 : i32
    return %arg0, %c0_i32, %c0_i32_0 : i32, i32, i32
  }
}

module attributes {stable_mosaic.version = 11 : i64} {
  func.func @_conv_kernel(%arg0: i32, %arg1: memref<1x2048xf32, #tpu.memory_space<vmem>>, %arg2: memref<16x2048xbf16, #tpu.memory_space<vmem>>, %arg3: memref<2048x128xbf16, #tpu.memory_space<vmem>>, %arg4: memref<1x128xf32, #tpu.memory_space<vmem>>, %arg5: memref<16x128xf32, #tpu.memory_space<vmem>>) attributes {dimension_semantics = [#tpu.dimension_semantics<parallel>], iteration_bounds = array<i64: 1>, scalar_prefetch = 0 : i64, scratch_operands = 0 : i64, tpu.core_type = #tpu.core_type<tc>, window_params = [{pipeline_mode = #tpu.pipeline_mode<synchronous>, transform_indices = @transform_0, window_bounds = array<i64: 1, 2048>}, {transform_indices = @transform_1, window_bounds = array<i64: 16, 2048>}, {pipeline_mode = #tpu.pipeline_mode<synchronous>, transform_indices = @transform_2, window_bounds = array<i64: 2048, 128>}, {pipeline_mode = #tpu.pipeline_mode<synchronous>, transform_indices = @transform_3, window_bounds = array<i64: 1, 128>}, {transform_indices = @transform_4, window_bounds = array<i64: 16, 128>}]} {
    %c0 = arith.constant 0 : index
    %c0_0 = arith.constant 0 : index
    %0 = vector.load %arg2[%c0, %c0_0] : memref<16x2048xbf16, #tpu.memory_space<vmem>>, vector<16x2048xbf16>
    %1 = arith.extf %0 : vector<16x2048xbf16> to vector<16x2048xf32>
    %c0_1 = arith.constant 0 : index
    %c0_2 = arith.constant 0 : index
    %2 = vector.load %arg1[%c0_1, %c0_2] : memref<1x2048xf32, #tpu.memory_space<vmem>>, vector<1x2048xf32>
    %3 = vector.broadcast %2 : vector<1x2048xf32> to vector<16x2048xf32>
    %4 = arith.mulf %1, %3 : vector<16x2048xf32>
    %cst = arith.constant 0.000000e+00 : f32
    %5 = vector.broadcast %cst : f32 to vector<16x2048xf32>
    %6 = arith.cmpf ogt, %4, %5 : vector<16x2048xf32>
    %cst_3 = arith.constant 2.000000e-01 : f32
    %7 = vector.broadcast %cst_3 : f32 to vector<16x2048xf32>
    %8 = arith.mulf %7, %4 : vector<16x2048xf32>
    %9 = arith.select %6, %4, %8 : vector<16x2048xi1>, vector<16x2048xf32>
    %10 = arith.truncf %9 : vector<16x2048xf32> to vector<16x2048xbf16>
    %c0_4 = arith.constant 0 : index
    %c0_5 = arith.constant 0 : index
    %11 = vector.load %arg3[%c0_4, %c0_5] : memref<2048x128xbf16, #tpu.memory_space<vmem>>, vector<2048x128xbf16>
    %cst_6 = arith.constant dense<0.000000e+00> : vector<16x128xf32>
    %12 = tpu.matmul %10, %11, %cst_6 {dimension_numbers = #tpu.dot_dimension_numbers<[1], [0], [0], [1], [0, 0, 1, 1], [], []>} : vector<16x2048xbf16>, vector<2048x128xbf16>, vector<16x128xf32> -> vector<16x128xf32>
    %c0_7 = arith.constant 0 : index
    %c0_8 = arith.constant 0 : index
    %13 = vector.load %arg4[%c0_7, %c0_8] : memref<1x128xf32, #tpu.memory_space<vmem>>, vector<1x128xf32>
    %14 = vector.broadcast %13 : vector<1x128xf32> to vector<16x128xf32>
    %15 = arith.addf %12, %14 : vector<16x128xf32>
    %c0_9 = arith.constant 0 : index
    %c0_10 = arith.constant 0 : index
    %16 = vector.load %arg5[%c0_9, %c0_10] : memref<16x128xf32, #tpu.memory_space<vmem>>, vector<16x128xf32>
    tpu.vector_store %arg5[%c0_9, %c0_10], %15 {strides = array<i32>} : memref<16x128xf32, #tpu.memory_space<vmem>>, vector<16x128xf32>,
    return
  }
  func.func @transform_0(%arg0: i32) -> (i32, i32) {
    %c0_i32 = arith.constant 0 : i32
    %c0_i32_0 = arith.constant 0 : i32
    %c0_i32_1 = arith.constant 0 : i32
    return %c0_i32, %c0_i32_0 : i32, i32
  }
  func.func @transform_1(%arg0: i32) -> (i32, i32) {
    %c0_i32 = arith.constant 0 : i32
    %c0_i32_0 = arith.constant 0 : i32
    return %arg0, %c0_i32 : i32, i32
  }
  func.func @transform_2(%arg0: i32) -> (i32, i32) {
    %c0_i32 = arith.constant 0 : i32
    %c0_i32_0 = arith.constant 0 : i32
    %c0_i32_1 = arith.constant 0 : i32
    return %c0_i32, %c0_i32_0 : i32, i32
  }
  func.func @transform_3(%arg0: i32) -> (i32, i32) {
    %c0_i32 = arith.constant 0 : i32
    %c0_i32_0 = arith.constant 0 : i32
    %c0_i32_1 = arith.constant 0 : i32
    return %c0_i32, %c0_i32_0 : i32, i32
  }
  func.func @transform_4(%arg0: i32) -> (i32, i32) {
    %c0_i32 = arith.constant 0 : i32
    %c0_i32_0 = arith.constant 0 : i32
    return %arg0, %c0_i32 : i32, i32
  }
}

</mosaic_0001>

<llo_original>
// kernel: _lambda_.5
$region0: #{_lambda_.5}
  #allocation0 [shape = 'u32[]', space=smem, size = 0x4, offset = 0x4, fixed_abs, tag = 'smem constant byte address 0x4 - core index']
  #allocation1 [shape = 'u32[144,128]{1,0:T(1,128)}', space=vmem, size = 0x12000, scoped, tag = 'internal scratch']
  %s0 = inlined_call_operand.vmem [shape: bf16[512,48], index: 0, kind: input, shape index: {}]
  %s1 = inlined_call_operand.vmem [shape: bf16[48,128], index: 1, kind: input, shape index: {}]
  %s2 = inlined_call_operand.vmem [shape: f32[1,128], index: 2, kind: input, shape index: {}]
  %s3 = inlined_call_operand.vmem [shape: bf16[512,128], index: 3, kind: output, shape index: {}]
  %s4 = sld [smem:[#allocation0]]
  $region22: #{_lambda_.5} parent=0
    _
  %s6 = ssub.s32 1, %s4
  %s7 = scalar_select 0, %s6, %s4
  // Predicated region
  $region2: #{_lambda_.5} parent=0 // pred_check
    _
  $region3: #{_lambda_.5} parent=0 // pred_check_branch
    %9 = sbr.rel (0) target = $region5
  $region4: #{_lambda_.5} parent=0 // pred_region
    _
  $region5: #{_lambda_.5} parent=0 // pred_fallthru
    _
  // Predicated region
  $region6: #{_lambda_.5} parent=0 // pred_check
    _
  $region7: #{_lambda_.5} parent=0 // pred_check_branch
    %11 = sbr.rel (0) target = $region9
  $region8: #{_lambda_.5} parent=0 // pred_region
    _
  $region9: #{_lambda_.5} parent=0 // pred_fallthru
    _
  // Predicated region
  $region10: #{_lambda_.5} parent=0 // pred_check
    _
  $region11: #{_lambda_.5} parent=0 // pred_check_branch
    %13 = sbr.rel (0) target = $region13
  $region12: #{_lambda_.5} parent=0 // pred_region
    _
  $region13: #{_lambda_.5} parent=0 // pred_fallthru
    _
  %v15 = vld [vmem:[%s0] sm:$0xf]
  %v16 = vld [vmem:[%s0 + $0x4] sm:$0xf]
  %v17 = vld [vmem:[%s0 + $0x8] sm:$0xf]
  %v18 = vld [vmem:[%s0 + $0xc] sm:$0xf]
  %v19 = vld [vmem:[%s0 + $0x10] sm:$0xf]
  %v20 = vld [vmem:[%s0 + $0x14] sm:$0xf]
  %v21 = vld [vmem:[%s0 + $0x18] sm:$0xf]
  %v22 = vld [vmem:[%s0 + $0x1c] sm:$0xf]
  %v23 = vld [vmem:[%s0 + $0x20] sm:$0xf]
  %v24 = vld [vmem:[%s0 + $0x24] sm:$0xf]
  %v25 = vld [vmem:[%s0 + $0x28] sm:$0xf]
  %v26 = vld [vmem:[%s0 + $0x2c] sm:$0xf]
  %v27 = vld [vmem:[%s0 + $0x30] sm:$0xf]
  %v28 = vld [vmem:[%s0 + $0x34] sm:$0xf]
  %v29 = vld [vmem:[%s0 + $0x38] sm:$0xf]
  %v30 = vld [vmem:[%s0 + $0x3c] sm:$0xf]
  %v31 = vld [vmem:[%s0 + $0x40] sm:$0xf]
  %v32 = vld [vmem:[%s0 + $0x44] sm:$0xf]
  %v33 = vld [vmem:[%s0 + $0x48] sm:$0xf]
  %v34 = vld [vmem:[%s0 + $0x4c] sm:$0xf]
  %v35 = vld [vmem:[%s0 + $0x50] sm:$0xf]
  %v36 = vld [vmem:[%s0 + $0x54] sm:$0xf]
  %v37 = vld [vmem:[%s0 + $0x58] sm:$0xf]
  %v38 = vld [vmem:[%s0 + $0x5c] sm:$0xf]
  %v39 = vld [vmem:[%s0 + $0x60] sm:$0xf]
  %v40 = vld [vmem:[%s0 + $0x64] sm:$0xf]
  %v41 = vld [vmem:[%s0 + $0x68] sm:$0xf]
  %v42 = vld [vmem:[%s0 + $0x6c] sm:$0xf]
  %v43 = vld [vmem:[%s0 + $0x70] sm:$0xf]
  %v44 = vld [vmem:[%s0 + $0x74] sm:$0xf]
  %v45 = vld [vmem:[%s0 + $0x78] sm:$0xf]
  %v46 = vld [vmem:[%s0 + $0x7c] sm:$0xf]
  %v47 = vld [vmem:[%s0 + $0x80] sm:$0xf]
  %v48 = vld [vmem:[%s0 + $0x84] sm:$0xf]
  %v49 = vld [vmem:[%s0 + $0x88] sm:$0xf]
  %v50 = vld [vmem:[%s0 + $0x8c] sm:$0xf]
  %v51 = vld [vmem:[%s0 + $0x90] sm:$0xf]
  %v52 = vld [vmem:[%s0 + $0x94] sm:$0xf]
  %v53 = vld [vmem:[%s0 + $0x98] sm:$0xf]
  %v54 = vld [vmem:[%s0 + $0x9c] sm:$0xf]
  %v55 = vld [vmem:[%s0 + $0xa0] sm:$0xf]
  %v56 = vld [vmem:[%s0 + $0xa4] sm:$0xf]
  %v57 = vld [vmem:[%s0 + $0xa8] sm:$0xf]
  %v58 = vld [vmem:[%s0 + $0xac] sm:$0xf]
  %v59 = vld [vmem:[%s0 + $0xb0] sm:$0xf]
  %v60 = vld [vmem:[%s0 + $0xb4] sm:$0xf]
  %v61 = vld [vmem:[%s0 + $0xb8] sm:$0xf]
  %v62 = vld [vmem:[%s0 + $0xbc] sm:$0xf]
  %v63 = vld [vmem:[%s0 + $0xc0] sm:$0xf]
  %v64 = vld [vmem:[%s0 + $0xc4] sm:$0xf]
  %v65 = vld [vmem:[%s0 + $0xc8] sm:$0xf]
  %v66 = vld [vmem:[%s0 + $0xcc] sm:$0xf]
  %v67 = vld [vmem:[%s0 + $0xd0] sm:$0xf]
  %v68 = vld [vmem:[%s0 + $0xd4] sm:$0xf]
  %v69 = vld [vmem:[%s0 + $0xd8] sm:$0xf]
  %v70 = vld [vmem:[%s0 + $0xdc] sm:$0xf]
  %v71 = vld [vmem:[%s0 + $0xe0] sm:$0xf]
  %v72 = vld [vmem:[%s0 + $0xe4] sm:$0xf]
  %v73 = vld [vmem:[%s0 + $0xe8] sm:$0xf]
  %v74 = vld [vmem:[%s0 + $0xec] sm:$0xf]
  %v75 = vld [vmem:[%s0 + $0xf0] sm:$0xf]
  %v76 = vld [vmem:[%s0 + $0xf4] sm:$0xf]
  %v77 = vld [vmem:[%s0 + $0xf8] sm:$0xf]
  %v78 = vld [vmem:[%s0 + $0xfc] sm:$0xf]
  %v79 = vld [vmem:[%s1] sm:$0xf]
  %v80 = vld [vmem:[%s1 + $0x4] sm:$0xf]
  %v81 = vld [vmem:[%s1 + $0x8] sm:$0xf]
  %v82 = vld [vmem:[%s1 + $0xc] sm:$0xf]
  %v83 = vld [vmem:[%s1 + $0x10] sm:$0xf]
  %v84 = vld [vmem:[%s1 + $0x14] sm:$0xf]
  %v85 = vld [vmem:[%s2] sm:$0x1]
  %v87 = vlaneseq
  %v88 = vshrl.u32 %v87, 7
  %v89 = vsub.s32 0, %v88
  %v90 = vrot.slane %v85, %v89
  %v156 = vunpack.c.l.b16 %v15
  %v157 = vunpack.c.l.b16 %v16
  %v158 = vunpack.c.l.b16 %v17
  %v159 = vunpack.c.l.b16 %v18
  %v160 = vunpack.c.l.b16 %v19
  %v161 = vunpack.c.l.b16 %v20
  %v162 = vunpack.c.l.b16 %v21
  %v163 = vunpack.c.l.b16 %v22
  %v164 = vunpack.c.l.b16 %v23
  %v165 = vunpack.c.l.b16 %v24
  %v166 = vunpack.c.l.b16 %v25
  %v167 = vunpack.c.l.b16 %v26
  %v168 = vunpack.c.l.b16 %v27
  %v169 = vunpack.c.l.b16 %v28
  %v170 = vunpack.c.l.b16 %v29
  %v171 = vunpack.c.l.b16 %v30
  %v172 = vunpack.c.l.b16 %v31
  %v173 = vunpack.c.l.b16 %v32
  %v174 = vunpack.c.l.b16 %v33
  %v175 = vunpack.c.l.b16 %v34
  %v176 = vunpack.c.l.b16 %v35
  %v177 = vunpack.c.l.b16 %v36
  %v178 = vunpack.c.l.b16 %v37
  %v179 = vunpack.c.l.b16 %v38
  %v180 = vunpack.c.l.b16 %v39
  %v181 = vunpack.c.l.b16 %v40
  %v182 = vunpack.c.l.b16 %v41
  %v183 = vunpack.c.l.b16 %v42
  %v184 = vunpack.c.l.b16 %v43
  %v185 = vunpack.c.l.b16 %v44
  %v186 = vunpack.c.l.b16 %v45
  %v187 = vunpack.c.l.b16 %v46
  %v188 = vunpack.c.l.b16 %v47
  %v189 = vunpack.c.l.b16 %v48
  %v190 = vunpack.c.l.b16 %v49
  %v191 = vunpack.c.l.b16 %v50
  %v192 = vunpack.c.l.b16 %v51
  %v193 = vunpack.c.l.b16 %v52
  %v194 = vunpack.c.l.b16 %v53
  %v195 = vunpack.c.l.b16 %v54
  %v196 = vunpack.c.l.b16 %v55
  %v197 = vunpack.c.l.b16 %v56
  %v198 = vunpack.c.l.b16 %v57
  %v199 = vunpack.c.l.b16 %v58
  %v200 = vunpack.c.l.b16 %v59
  %v201 = vunpack.c.l.b16 %v60
  %v202 = vunpack.c.l.b16 %v61
  %v203 = vunpack.c.l.b16 %v62
  %v204 = vunpack.c.l.b16 %v63
  %v205 = vunpack.c.l.b16 %v64
  %v206 = vunpack.c.l.b16 %v65
  %v207 = vunpack.c.l.b16 %v66
  %v208 = vunpack.c.l.b16 %v67
  %v209 = vunpack.c.l.b16 %v68
  %v210 = vunpack.c.l.b16 %v69
  %v211 = vunpack.c.l.b16 %v70
  %v212 = vunpack.c.l.b16 %v71
  %v213 = vunpack.c.l.b16 %v72
  %v214 = vunpack.c.l.b16 %v73
  %v215 = vunpack.c.l.b16 %v74
  %v216 = vunpack.c.l.b16 %v75
  %v217 = vunpack.c.l.b16 %v76
  %v218 = vunpack.c.l.b16 %v77
  %v219 = vunpack.c.l.b16 %v78
  %v220 = vpack.c.b16 %v157, %v156
  %v221 = vpack.c.b16 %v159, %v158
  %v222 = vpack.c.b16 %v161, %v160
  %v223 = vpack.c.b16 %v163, %v162
  %v224 = vpack.c.b16 %v165, %v164
  %v225 = vpack.c.b16 %v167, %v166
  %v226 = vpack.c.b16 %v169, %v168
  %v227 = vpack.c.b16 %v171, %v170
  %v228 = vpack.c.b16 %v173, %v172
  %v229 = vpack.c.b16 %v175, %v174
  %v230 = vpack.c.b16 %v177, %v176
  %v231 = vpack.c.b16 %v179, %v178
  %v232 = vpack.c.b16 %v181, %v180
  %v233 = vpack.c.b16 %v183, %v182
  %v234 = vpack.c.b16 %v185, %v184
  %v235 = vpack.c.b16 %v187, %v186
  %v236 = vpack.c.b16 %v189, %v188
  %v237 = vpack.c.b16 %v191, %v190
  %v238 = vpack.c.b16 %v193, %v192
  %v239 = vpack.c.b16 %v195, %v194
  %v240 = vpack.c.b16 %v197, %v196
  %v241 = vpack.c.b16 %v199, %v198
  %v242 = vpack.c.b16 %v201, %v200
  %v243 = vpack.c.b16 %v203, %v202
  %v244 = vpack.c.b16 %v205, %v204
  %v245 = vpack.c.b16 %v207, %v206
  %v246 = vpack.c.b16 %v209, %v208
  %v247 = vpack.c.b16 %v211, %v210
  %v248 = vpack.c.b16 %v213, %v212
  %v249 = vpack.c.b16 %v215, %v214
  %v250 = vpack.c.b16 %v217, %v216
  %v251 = vpack.c.b16 %v219, %v218
  %v258 = vunpack.c.l.b16 %v79
  %v259 = vunpack.c.l.b16 %v80
  %v260 = vunpack.c.l.b16 %v81
  %v261 = vunpack.c.l.b16 %v82
  %v262 = vunpack.c.l.b16 %v83
  %v263 = vunpack.c.l.b16 %v84
  %v264 = vpack.c.b16 %v259, %v258
  %v265 = vpack.c.b16 %v261, %v260
  %v266 = vpack.c.b16 %v263, %v262
  %vm270 = vcmask 392192
  %v272 = vsel %vm270, %v220, 0
  %v275 = vsel %vm270, %v221, 0
  %v278 = vsel %vm270, %v222, 0
  %v281 = vsel %vm270, %v223, 0
  %v284 = vsel %vm270, %v224, 0
  %v287 = vsel %vm270, %v225, 0
  %v290 = vsel %vm270, %v226, 0
  %v293 = vsel %vm270, %v227, 0
  %v296 = vsel %vm270, %v228, 0
  %v299 = vsel %vm270, %v229, 0
  %v302 = vsel %vm270, %v230, 0
  %v305 = vsel %vm270, %v231, 0
  %v308 = vsel %vm270, %v232, 0
  %v311 = vsel %vm270, %v233, 0
  %v314 = vsel %vm270, %v234, 0
  %v317 = vsel %vm270, %v235, 0
  %v320 = vsel %vm270, %v236, 0
  %v323 = vsel %vm270, %v237, 0
  %v326 = vsel %vm270, %v238, 0
  %v329 = vsel %vm270, %v239, 0
  %v332 = vsel %vm270, %v240, 0
  %v335 = vsel %vm270, %v241, 0
  %v338 = vsel %vm270, %v242, 0
  %v341 = vsel %vm270, %v243, 0
  %v344 = vsel %vm270, %v244, 0
  %v347 = vsel %vm270, %v245, 0
  %v350 = vsel %vm270, %v246, 0
  %v353 = vsel %vm270, %v247, 0
  %v356 = vsel %vm270, %v248, 0
  %v359 = vsel %vm270, %v249, 0
  %v362 = vsel %vm270, %v250, 0
  %v365 = vsel %vm270, %v251, 0
  %367 = vmatprep.subr.bf16.mxu0 0
  %368 = vmatpush1.bf16.msra.mxu0 0
  %369 = vmatprep.subr.bf16.mxu0 0
  %370 = vmatpush1.bf16.msra.mxu0 0
  %371 = vmatprep.subr.bf16.mxu0 0
  %372 = vmatpush1.bf16.msra.mxu0 0
  %373 = vmatprep.subr.bf16.mxu0 0
  %374 = vmatpush1.bf16.msra.mxu0 0
  %375 = vmatprep.subr.bf16.mxu0 0
  %376 = vmatpush1.bf16.msra.mxu0 0
  %377 = vmatprep.subr.bf16.mxu0 0
  %378 = vmatpush1.bf16.msra.mxu0 %v266
  %379 = vmatprep.subr.bf16.mxu0 0
  %380 = vmatpush1.bf16.msra.mxu0 %v265
  %381 = vmatprep.subr.bf16.mxu0 0
  %382 = vmatpush1.bf16.msra.mxu0 %v264
  %383 = vmatprep.subr.bf16.mxu0 0
  %384 = vmatpush2.bf16.msra.mxu0 0
  %385 = vmatprep.subr.bf16.mxu0 0
  %386 = vmatpush2.bf16.msra.mxu0 0
  %387 = vmatprep.subr.bf16.mxu0 0
  %388 = vmatpush2.bf16.msra.mxu0 0
  %389 = vmatprep.subr.bf16.mxu0 0
  %390 = vmatpush2.bf16.msra.mxu0 0
  %391 = vmatprep.subr.bf16.mxu0 0
  %392 = vmatpush2.bf16.msra.mxu0 0
  %393 = vmatprep.subr.bf16.mxu0 0
  %394 = vmatpush2.bf16.msra.mxu0 0
  %395 = vmatprep.subr.bf16.mxu0 0
  %396 = vmatpush2.bf16.msra.mxu0 0
  %397 = vmatprep.subr.bf16.mxu0 0
  %398 = vmatpush2.bf16.msra.mxu0 0
  %399 = vmatprep.mubr.bf16.mxu0 0
  %400 = vmatmul.mubr.bf16.gmra.mxu0 %v272
  %v401 = vpop.f32.mrf.mxu0
  %v402 = vadd.f32 %v90, %v401
  %v403 = vpop.f32.mrf.mxu0
  %v404 = vpop.f32.mrf.mxu0
  %v405 = vadd.f32 %v90, %v404
  %v406 = vpop.f32.mrf.mxu0
  %407 = vmatprep.mubr.bf16.mxu0 0
  %408 = vmatmul.mubr.bf16.gmra.mxu0 %v275
  %v409 = vpop.f32.mrf.mxu0
  %v410 = vadd.f32 %v90, %v409
  %v411 = vpop.f32.mrf.mxu0
  %v412 = vpop.f32.mrf.mxu0
  %v413 = vadd.f32 %v90, %v412
  %v414 = vpop.f32.mrf.mxu0
  %415 = vmatprep.mubr.bf16.mxu0 0
  %416 = vmatmul.mubr.bf16.gmra.mxu0 %v278
  %v417 = vpop.f32.mrf.mxu0
  %v418 = vadd.f32 %v90, %v417
  %v419 = vpop.f32.mrf.mxu0
  %v420 = vpop.f32.mrf.mxu0
  %v421 = vadd.f32 %v90, %v420
  %v422 = vpop.f32.mrf.mxu0
  %423 = vmatprep.mubr.bf16.mxu0 0
  %424 = vmatmul.mubr.bf16.gmra.mxu0 %v281
  %v425 = vpop.f32.mrf.mxu0
  %v426 = vadd.f32 %v90, %v425
  %v427 = vpop.f32.mrf.mxu0
  %v428 = vpop.f32.mrf.mxu0
  %v429 = vadd.f32 %v90, %v428
  %v430 = vpop.f32.mrf.mxu0
  %431 = vmatprep.mubr.bf16.mxu0 0
  %432 = vmatmul.mubr.bf16.gmra.mxu0 %v284
  %v433 = vpop.f32.mrf.mxu0
  %v434 = vadd.f32 %v90, %v433
  %v435 = vpop.f32.mrf.mxu0
  %v436 = vpop.f32.mrf.mxu0
  %v437 = vadd.f32 %v90, %v436
  %v438 = vpop.f32.mrf.mxu0
  %439 = vmatprep.mubr.bf16.mxu0 0
  %440 = vmatmul.mubr.bf16.gmra.mxu0 %v287
  %v441 = vpop.f32.mrf.mxu0
  %v442 = vadd.f32 %v90, %v441
  %v443 = vpop.f32.mrf.mxu0
  %v444 = vpop.f32.mrf.mxu0
  %v445 = vadd.f32 %v90, %v444
  %v446 = vpop.f32.mrf.mxu0
  %447 = vmatprep.mubr.bf16.mxu0 0
  %448 = vmatmul.mubr.bf16.gmra.mxu0 %v290
  %v449 = vpop.f32.mrf.mxu0
  %v450 = vadd.f32 %v90, %v449
  %v451 = vpop.f32.mrf.mxu0
  %v452 = vpop.f32.mrf.mxu0
  %v453 = vadd.f32 %v90, %v452
  %v454 = vpop.f32.mrf.mxu0
  %455 = vmatprep.mubr.bf16.mxu0 0
  %456 = vmatmul.mubr.bf16.gmra.mxu0 %v293
  %v457 = vpop.f32.mrf.mxu0
  %v458 = vadd.f32 %v90, %v457
  %v459 = vpop.f32.mrf.mxu0
  %v460 = vpop.f32.mrf.mxu0
  %v461 = vadd.f32 %v90, %v460
  %v462 = vpop.f32.mrf.mxu0
  %463 = vmatprep.mubr.bf16.mxu0 0
  %464 = vmatmul.mubr.bf16.gmra.mxu0 %v296
  %v465 = vpop.f32.mrf.mxu0
  %v466 = vadd.f32 %v90, %v465
  %v467 = vpop.f32.mrf.mxu0
  %v468 = vpop.f32.mrf.mxu0
  %v469 = vadd.f32 %v90, %v468
  %v470 = vpop.f32.mrf.mxu0
  %471 = vmatprep.mubr.bf16.mxu0 0
  %472 = vmatmul.mubr.bf16.gmra.mxu0 %v299
  %v473 = vpop.f32.mrf.mxu0
  %v474 = vadd.f32 %v90, %v473
  %v475 = vpop.f32.mrf.mxu0
  %v476 = vpop.f32.mrf.mxu0
  %v477 = vadd.f32 %v90, %v476
  %v478 = vpop.f32.mrf.mxu0
  %479 = vmatprep.mubr.bf16.mxu0 0
  %480 = vmatmul.mubr.bf16.gmra.mxu0 %v302
  %v481 = vpop.f32.mrf.mxu0
  %v482 = vadd.f32 %v90, %v481
  %v483 = vpop.f32.mrf.mxu0
  %v484 = vpop.f32.mrf.mxu0
  %v485 = vadd.f32 %v90, %v484
  %v486 = vpop.f32.mrf.mxu0
  %487 = vmatprep.mubr.bf16.mxu0 0
  %488 = vmatmul.mubr.bf16.gmra.mxu0 %v305
  %v489 = vpop.f32.mrf.mxu0
  %v490 = vadd.f32 %v90, %v489
  %v491 = vpop.f32.mrf.mxu0
  %v492 = vpop.f32.mrf.mxu0
  %v493 = vadd.f32 %v90, %v492
  %v494 = vpop.f32.mrf.mxu0
  %495 = vmatprep.mubr.bf16.mxu0 0
  %496 = vmatmul.mubr.bf16.gmra.mxu0 %v308
  %v497 = vpop.f32.mrf.mxu0
  %v498 = vadd.f32 %v90, %v497
  %v499 = vpop.f32.mrf.mxu0
  %v500 = vpop.f32.mrf.mxu0
  %v501 = vadd.f32 %v90, %v500
  %v502 = vpop.f32.mrf.mxu0
  %503 = vmatprep.mubr.bf16.mxu0 0
  %504 = vmatmul.mubr.bf16.gmra.mxu0 %v311
  %v505 = vpop.f32.mrf.mxu0
  %v506 = vadd.f32 %v90, %v505
  %v507 = vpop.f32.mrf.mxu0
  %v508 = vpop.f32.mrf.mxu0
  %v509 = vadd.f32 %v90, %v508
  %v510 = vpop.f32.mrf.mxu0
  %511 = vmatprep.mubr.bf16.mxu0 0
  %512 = vmatmul.mubr.bf16.gmra.mxu0 %v314
  %v513 = vpop.f32.mrf.mxu0
  %v514 = vadd.f32 %v90, %v513
  %v515 = vpop.f32.mrf.mxu0
  %v516 = vpop.f32.mrf.mxu0
  %v517 = vadd.f32 %v90, %v516
  %v518 = vpop.f32.mrf.mxu0
  %519 = vmatprep.mubr.bf16.mxu0 0
  %520 = vmatmul.mubr.bf16.gmra.mxu0 %v317
  %v521 = vpop.f32.mrf.mxu0
  %v522 = vadd.f32 %v90, %v521
  %v523 = vpop.f32.mrf.mxu0
  %v524 = vpop.f32.mrf.mxu0
  %v525 = vadd.f32 %v90, %v524
  %v526 = vpop.f32.mrf.mxu0
  %527 = vmatprep.mubr.bf16.mxu0 0
  %528 = vmatmul.mubr.bf16.gmra.mxu0 %v320
  %v529 = vpop.f32.mrf.mxu0
  %v530 = vadd.f32 %v90, %v529
  %v531 = vpop.f32.mrf.mxu0
  %v532 = vpop.f32.mrf.mxu0
  %v533 = vadd.f32 %v90, %v532
  %v534 = vpop.f32.mrf.mxu0
  %535 = vmatprep.mubr.bf16.mxu0 0
  %536 = vmatmul.mubr.bf16.gmra.mxu0 %v323
  %v537 = vpop.f32.mrf.mxu0
  %v538 = vadd.f32 %v90, %v537
  %v539 = vpop.f32.mrf.mxu0
  %v540 = vpop.f32.mrf.mxu0
  %v541 = vadd.f32 %v90, %v540
  %v542 = vpop.f32.mrf.mxu0
  %543 = vmatprep.mubr.bf16.mxu0 0
  %544 = vmatmul.mubr.bf16.gmra.mxu0 %v326
  %v545 = vpop.f32.mrf.mxu0
  %v546 = vadd.f32 %v90, %v545
  %v547 = vpop.f32.mrf.mxu0
  %v548 = vpop.f32.mrf.mxu0
  %v549 = vadd.f32 %v90, %v548
  %v550 = vpop.f32.mrf.mxu0
  %551 = vmatprep.mubr.bf16.mxu0 0
  %552 = vmatmul.mubr.bf16.gmra.mxu0 %v329
  %v553 = vpop.f32.mrf.mxu0
  %v554 = vadd.f32 %v90, %v553
  %v555 = vpop.f32.mrf.mxu0
  %v556 = vpop.f32.mrf.mxu0
  %v557 = vadd.f32 %v90, %v556
  %v558 = vpop.f32.mrf.mxu0
  %559 = vmatprep.mubr.bf16.mxu0 0
  %560 = vmatmul.mubr.bf16.gmra.mxu0 %v332
  %v561 = vpop.f32.mrf.mxu0
  %v562 = vadd.f32 %v90, %v561
  %v563 = vpop.f32.mrf.mxu0
  %v564 = vpop.f32.mrf.mxu0
  %v565 = vadd.f32 %v90, %v564
  %v566 = vpop.f32.mrf.mxu0
  %567 = vmatprep.mubr.bf16.mxu0 0
  %568 = vmatmul.mubr.bf16.gmra.mxu0 %v335
  %v569 = vpop.f32.mrf.mxu0
  %v570 = vadd.f32 %v90, %v569
  %v571 = vpop.f32.mrf.mxu0
  %v572 = vpop.f32.mrf.mxu0
  %v573 = vadd.f32 %v90, %v572
  %v574 = vpop.f32.mrf.mxu0
  %575 = vmatprep.mubr.bf16.mxu0 0
  %576 = vmatmul.mubr.bf16.gmra.mxu0 %v338
  %v577 = vpop.f32.mrf.mxu0
  %v578 = vadd.f32 %v90, %v577
  %v579 = vpop.f32.mrf.mxu0
  %v580 = vpop.f32.mrf.mxu0
  %v581 = vadd.f32 %v90, %v580
  %v582 = vpop.f32.mrf.mxu0
  %583 = vmatprep.mubr.bf16.mxu0 0
  %584 = vmatmul.mubr.bf16.gmra.mxu0 %v341
  %v585 = vpop.f32.mrf.mxu0
  %v586 = vadd.f32 %v90, %v585
  %v587 = vpop.f32.mrf.mxu0
  %v588 = vpop.f32.mrf.mxu0
  %v589 = vadd.f32 %v90, %v588
  %v590 = vpop.f32.mrf.mxu0
  %591 = vmatprep.mubr.bf16.mxu0 0
  %592 = vmatmul.mubr.bf16.gmra.mxu0 %v344
  %v593 = vpop.f32.mrf.mxu0
  %v594 = vadd.f32 %v90, %v593
  %v595 = vpop.f32.mrf.mxu0
  %v596 = vpop.f32.mrf.mxu0
  %v597 = vadd.f32 %v90, %v596
  %v598 = vpop.f32.mrf.mxu0
  %599 = vmatprep.mubr.bf16.mxu0 0
  %600 = vmatmul.mubr.bf16.gmra.mxu0 %v347
  %v601 = vpop.f32.mrf.mxu0
  %v602 = vadd.f32 %v90, %v601
  %v603 = vpop.f32.mrf.mxu0
  %v604 = vpop.f32.mrf.mxu0
  %v605 = vadd.f32 %v90, %v604
  %v606 = vpop.f32.mrf.mxu0
  %607 = vmatprep.mubr.bf16.mxu0 0
  %608 = vmatmul.mubr.bf16.gmra.mxu0 %v350
  %v609 = vpop.f32.mrf.mxu0
  %v610 = vadd.f32 %v90, %v609
  %v611 = vpop.f32.mrf.mxu0
  %v612 = vpop.f32.mrf.mxu0
  %v613 = vadd.f32 %v90, %v612
  %v614 = vpop.f32.mrf.mxu0
  %615 = vmatprep.mubr.bf16.mxu0 0
  %616 = vmatmul.mubr.bf16.gmra.mxu0 %v353
  %v617 = vpop.f32.mrf.mxu0
  %v618 = vadd.f32 %v90, %v617
  %v619 = vpop.f32.mrf.mxu0
  %v620 = vpop.f32.mrf.mxu0
  %v621 = vadd.f32 %v90, %v620
  %v622 = vpop.f32.mrf.mxu0
  %623 = vmatprep.mubr.bf16.mxu0 0
  %624 = vmatmul.mubr.bf16.gmra.mxu0 %v356
  %v625 = vpop.f32.mrf.mxu0
  %v626 = vadd.f32 %v90, %v625
  %v627 = vpop.f32.mrf.mxu0
  %v628 = vpop.f32.mrf.mxu0
  %v629 = vadd.f32 %v90, %v628
  %v630 = vpop.f32.mrf.mxu0
  %631 = vmatprep.mubr.bf16.mxu0 0
  %632 = vmatmul.mubr.bf16.gmra.mxu0 %v359
  %v633 = vpop.f32.mrf.mxu0
  %v634 = vadd.f32 %v90, %v633
  %v635 = vpop.f32.mrf.mxu0
  %v636 = vpop.f32.mrf.mxu0
  %v637 = vadd.f32 %v90, %v636
  %v638 = vpop.f32.mrf.mxu0
  %639 = vmatprep.mubr.bf16.mxu0 0
  %640 = vmatmul.mubr.bf16.gmra.mxu0 %v362
  %v641 = vpop.f32.mrf.mxu0
  %v642 = vadd.f32 %v90, %v641
  %v643 = vpop.f32.mrf.mxu0
  %v644 = vpop.f32.mrf.mxu0
  %v645 = vadd.f32 %v90, %v644
  %v646 = vpop.f32.mrf.mxu0
  %647 = vmatprep.mubr.bf16.mxu0 0
  %648 = vmatmul.mubr.bf16.gmra.mxu0 %v365
  %v649 = vpop.f32.mrf.mxu0
  %v650 = vadd.f32 %v90, %v649
  %v651 = vpop.f32.mrf.mxu0
  %v652 = vpop.f32.mrf.mxu0
  %v653 = vadd.f32 %v90, %v652
  %v654 = vpop.f32.mrf.mxu0
  %655 = vdwg.mxu0
  %vm656 = vcmp.gt.f32.partialorder %v402, 0.0
  %vm657 = vcmp.gt.f32.partialorder %v405, 0.0
  %vm658 = vcmp.gt.f32.partialorder %v410, 0.0
  %vm659 = vcmp.gt.f32.partialorder %v413, 0.0
  %vm660 = vcmp.gt.f32.partialorder %v418, 0.0
  %vm661 = vcmp.gt.f32.partialorder %v421, 0.0
  %vm662 = vcmp.gt.f32.partialorder %v426, 0.0
  %vm663 = vcmp.gt.f32.partialorder %v429, 0.0
  %vm664 = vcmp.gt.f32.partialorder %v434, 0.0
  %vm665 = vcmp.gt.f32.partialorder %v437, 0.0
  %vm666 = vcmp.gt.f32.partialorder %v442, 0.0
  %vm667 = vcmp.gt.f32.partialorder %v445, 0.0
  %vm668 = vcmp.gt.f32.partialorder %v450, 0.0
  %vm669 = vcmp.gt.f32.partialorder %v453, 0.0
  %vm670 = vcmp.gt.f32.partialorder %v458, 0.0
  %vm671 = vcmp.gt.f32.partialorder %v461, 0.0
  %vm672 = vcmp.gt.f32.partialorder %v466, 0.0
  %vm673 = vcmp.gt.f32.partialorder %v469, 0.0
  %vm674 = vcmp.gt.f32.partialorder %v474, 0.0
  %vm675 = vcmp.gt.f32.partialorder %v477, 0.0
  %vm676 = vcmp.gt.f32.partialorder %v482, 0.0
  %vm677 = vcmp.gt.f32.partialorder %v485, 0.0
  %vm678 = vcmp.gt.f32.partialorder %v490, 0.0
  %vm679 = vcmp.gt.f32.partialorder %v493, 0.0
  %vm680 = vcmp.gt.f32.partialorder %v498, 0.0
  %vm681 = vcmp.gt.f32.partialorder %v501, 0.0
  %vm682 = vcmp.gt.f32.partialorder %v506, 0.0
  %vm683 = vcmp.gt.f32.partialorder %v509, 0.0
  %vm684 = vcmp.gt.f32.partialorder %v514, 0.0
  %vm685 = vcmp.gt.f32.partialorder %v517, 0.0
  %vm686 = vcmp.gt.f32.partialorder %v522, 0.0
  %vm687 = vcmp.gt.f32.partialorder %v525, 0.0
  %vm688 = vcmp.gt.f32.partialorder %v530, 0.0
  %vm689 = vcmp.gt.f32.partialorder %v533, 0.0
  %vm690 = vcmp.gt.f32.partialorder %v538, 0.0
  %vm691 = vcmp.gt.f32.partialorder %v541, 0.0
  %vm692 = vcmp.gt.f32.partialorder %v546, 0.0
  %vm693 = vcmp.gt.f32.partialorder %v549, 0.0
  %vm694 = vcmp.gt.f32.partialorder %v554, 0.0
  %vm695 = vcmp.gt.f32.partialorder %v557, 0.0
  %vm696 = vcmp.gt.f32.partialorder %v562, 0.0
  %vm697 = vcmp.gt.f32.partialorder %v565, 0.0
  %vm698 = vcmp.gt.f32.partialorder %v570, 0.0
  %vm699 = vcmp.gt.f32.partialorder %v573, 0.0
  %vm700 = vcmp.gt.f32.partialorder %v578, 0.0
  %vm701 = vcmp.gt.f32.partialorder %v581, 0.0
  %vm702 = vcmp.gt.f32.partialorder %v586, 0.0
  %vm703 = vcmp.gt.f32.partialorder %v589, 0.0
  %vm704 = vcmp.gt.f32.partialorder %v594, 0.0
  %vm705 = vcmp.gt.f32.partialorder %v597, 0.0
  %vm706 = vcmp.gt.f32.partialorder %v602, 0.0
  %vm707 = vcmp.gt.f32.partialorder %v605, 0.0
  %vm708 = vcmp.gt.f32.partialorder %v610, 0.0
  %vm709 = vcmp.gt.f32.partialorder %v613, 0.0
  %vm710 = vcmp.gt.f32.partialorder %v618, 0.0
  %vm711 = vcmp.gt.f32.partialorder %v621, 0.0
  %vm712 = vcmp.gt.f32.partialorder %v626, 0.0
  %vm713 = vcmp.gt.f32.partialorder %v629, 0.0
  %vm714 = vcmp.gt.f32.partialorder %v634, 0.0
  %vm715 = vcmp.gt.f32.partialorder %v637, 0.0
  %vm716 = vcmp.gt.f32.partialorder %v642, 0.0
  %vm717 = vcmp.gt.f32.partialorder %v645, 0.0
  %vm718 = vcmp.gt.f32.partialorder %v650, 0.0
  %vm719 = vcmp.gt.f32.partialorder %v653, 0.0
  %v720 = vmul.f32 %v402, 0.2
  %v721 = vmul.f32 %v405, 0.2
  %v722 = vmul.f32 %v410, 0.2
  %v723 = vmul.f32 %v413, 0.2
  %v724 = vmul.f32 %v418, 0.2
  %v725 = vmul.f32 %v421, 0.2
  %v726 = vmul.f32 %v426, 0.2
  %v727 = vmul.f32 %v429, 0.2
  %v728 = vmul.f32 %v434, 0.2
  %v729 = vmul.f32 %v437, 0.2
  %v730 = vmul.f32 %v442, 0.2
  %v731 = vmul.f32 %v445, 0.2
  %v732 = vmul.f32 %v450, 0.2
  %v733 = vmul.f32 %v453, 0.2
  %v734 = vmul.f32 %v458, 0.2
  %v735 = vmul.f32 %v461, 0.2
  %v736 = vmul.f32 %v466, 0.2
  %v737 = vmul.f32 %v469, 0.2
  %v738 = vmul.f32 %v474, 0.2
  %v739 = vmul.f32 %v477, 0.2
  %v740 = vmul.f32 %v482, 0.2
  %v741 = vmul.f32 %v485, 0.2
  %v742 = vmul.f32 %v490, 0.2
  %v743 = vmul.f32 %v493, 0.2
  %v744 = vmul.f32 %v498, 0.2
  %v745 = vmul.f32 %v501, 0.2
  %v746 = vmul.f32 %v506, 0.2
  %v747 = vmul.f32 %v509, 0.2
  %v748 = vmul.f32 %v514, 0.2
  %v749 = vmul.f32 %v517, 0.2
  %v750 = vmul.f32 %v522, 0.2
  %v751 = vmul.f32 %v525, 0.2
  %v752 = vmul.f32 %v530, 0.2
  %v753 = vmul.f32 %v533, 0.2
  %v754 = vmul.f32 %v538, 0.2
  %v755 = vmul.f32 %v541, 0.2
  %v756 = vmul.f32 %v546, 0.2
  %v757 = vmul.f32 %v549, 0.2
  %v758 = vmul.f32 %v554, 0.2
  %v759 = vmul.f32 %v557, 0.2
  %v760 = vmul.f32 %v562, 0.2
  %v761 = vmul.f32 %v565, 0.2
  %v762 = vmul.f32 %v570, 0.2
  %v763 = vmul.f32 %v573, 0.2
  %v764 = vmul.f32 %v578, 0.2
  %v765 = vmul.f32 %v581, 0.2
  %v766 = vmul.f32 %v586, 0.2
  %v767 = vmul.f32 %v589, 0.2
  %v768 = vmul.f32 %v594, 0.2
  %v769 = vmul.f32 %v597, 0.2
  %v770 = vmul.f32 %v602, 0.2
  %v771 = vmul.f32 %v605, 0.2
  %v772 = vmul.f32 %v610, 0.2
  %v773 = vmul.f32 %v613, 0.2
  %v774 = vmul.f32 %v618, 0.2
  %v775 = vmul.f32 %v621, 0.2
  %v776 = vmul.f32 %v626, 0.2
  %v777 = vmul.f32 %v629, 0.2
  %v778 = vmul.f32 %v634, 0.2
  %v779 = vmul.f32 %v637, 0.2
  %v780 = vmul.f32 %v642, 0.2
  %v781 = vmul.f32 %v645, 0.2
  %v782 = vmul.f32 %v650, 0.2
  %v783 = vmul.f32 %v653, 0.2
  %v784 = vsel %vm656, %v402, %v720
  %v785 = vsel %vm657, %v405, %v721
  %v786 = vsel %vm658, %v410, %v722
  %v787 = vsel %vm659, %v413, %v723
  %v788 = vsel %vm660, %v418, %v724
  %v789 = vsel %vm661, %v421, %v725
  %v790 = vsel %vm662, %v426, %v726
  %v791 = vsel %vm663, %v429, %v727
  %v792 = vsel %vm664, %v434, %v728
  %v793 = vsel %vm665, %v437, %v729
  %v794 = vsel %vm666, %v442, %v730
  %v795 = vsel %vm667, %v445, %v731
  %v796 = vsel %vm668, %v450, %v732
  %v797 = vsel %vm669, %v453, %v733
  %v798 = vsel %vm670, %v458, %v734
  %v799 = vsel %vm671, %v461, %v735
  %v800 = vsel %vm672, %v466, %v736
  %v801 = vsel %vm673, %v469, %v737
  %v802 = vsel %vm674, %v474, %v738
  %v803 = vsel %vm675, %v477, %v739
  %v804 = vsel %vm676, %v482, %v740
  %v805 = vsel %vm677, %v485, %v741
  %v806 = vsel %vm678, %v490, %v742
  %v807 = vsel %vm679, %v493, %v743
  %v808 = vsel %vm680, %v498, %v744
  %v809 = vsel %vm681, %v501, %v745
  %v810 = vsel %vm682, %v506, %v746
  %v811 = vsel %vm683, %v509, %v747
  %v812 = vsel %vm684, %v514, %v748
  %v813 = vsel %vm685, %v517, %v749
  %v814 = vsel %vm686, %v522, %v750
  %v815 = vsel %vm687, %v525, %v751
  %v816 = vsel %vm688, %v530, %v752
  %v817 = vsel %vm689, %v533, %v753
  %v818 = vsel %vm690, %v538, %v754
  %v819 = vsel %vm691, %v541, %v755
  %v820 = vsel %vm692, %v546, %v756
  %v821 = vsel %vm693, %v549, %v757
  %v822 = vsel %vm694, %v554, %v758
  %v823 = vsel %vm695, %v557, %v759
  %v824 = vsel %vm696, %v562, %v760
  %v825 = vsel %vm697, %v565, %v761
  %v826 = vsel %vm698, %v570, %v762
  %v827 = vsel %vm699, %v573, %v763
  %v828 = vsel %vm700, %v578, %v764
  %v829 = vsel %vm701, %v581, %v765
  %v830 = vsel %vm702, %v586, %v766
  %v831 = vsel %vm703, %v589, %v767
  %v832 = vsel %vm704, %v594, %v768
  %v833 = vsel %vm705, %v597, %v769
  %v834 = vsel %vm706, %v602, %v770
  %v835 = vsel %vm707, %v605, %v771
  %v836 = vsel %vm708, %v610, %v772
  %v837 = vsel %vm709, %v613, %v773
  %v838 = vsel %vm710, %v618, %v774
  %v839 = vsel %vm711, %v621, %v775
  %v840 = vsel %vm712, %v626, %v776
  %v841 = vsel %vm713, %v629, %v777
  %v842 = vsel %vm714, %v634, %v778
  %v843 = vsel %vm715, %v637, %v779
  %v844 = vsel %vm716, %v642, %v780
  %v845 = vsel %vm717, %v645, %v781
  %v846 = vsel %vm718, %v650, %v782
  %v847 = vsel %vm719, %v653, %v783
  %v848 = vpack.c.bf16 %v785, %v784
  %v849 = vpack.c.bf16 %v787, %v786
  %v850 = vpack.c.bf16 %v789, %v788
  %v851 = vpack.c.bf16 %v791, %v790
  %v852 = vpack.c.bf16 %v793, %v792
  %v853 = vpack.c.bf16 %v795, %v794
  %v854 = vpack.c.bf16 %v797, %v796
  %v855 = vpack.c.bf16 %v799, %v798
  %v856 = vpack.c.bf16 %v801, %v800
  %v857 = vpack.c.bf16 %v803, %v802
  %v858 = vpack.c.bf16 %v805, %v804
  %v859 = vpack.c.bf16 %v807, %v806
  %v860 = vpack.c.bf16 %v809, %v808
  %v861 = vpack.c.bf16 %v811, %v810
  %v862 = vpack.c.bf16 %v813, %v812
  %v863 = vpack.c.bf16 %v815, %v814
  %v864 = vpack.c.bf16 %v817, %v816
  %v865 = vpack.c.bf16 %v819, %v818
  %v866 = vpack.c.bf16 %v821, %v820
  %v867 = vpack.c.bf16 %v823, %v822
  %v868 = vpack.c.bf16 %v825, %v824
  %v869 = vpack.c.bf16 %v827, %v826
  %v870 = vpack.c.bf16 %v829, %v828
  %v871 = vpack.c.bf16 %v831, %v830
  %v872 = vpack.c.bf16 %v833, %v832
  %v873 = vpack.c.bf16 %v835, %v834
  %v874 = vpack.c.bf16 %v837, %v836
  %v875 = vpack.c.bf16 %v839, %v838
  %v876 = vpack.c.bf16 %v841, %v840
  %v877 = vpack.c.bf16 %v843, %v842
  %v878 = vpack.c.bf16 %v845, %v844
  %v879 = vpack.c.bf16 %v847, %v846
  %v912 = vunpack.c.l.b16 %v848
  %v913 = vunpack.c.h.b16 %v848
  %v914 = vunpack.c.l.b16 %v849
  %v915 = vunpack.c.h.b16 %v849
  %v916 = vunpack.c.l.b16 %v850
  %v917 = vunpack.c.h.b16 %v850
  %v918 = vunpack.c.l.b16 %v851
  %v919 = vunpack.c.h.b16 %v851
  %v920 = vunpack.c.l.b16 %v852
  %v921 = vunpack.c.h.b16 %v852
  %v922 = vunpack.c.l.b16 %v853
  %v923 = vunpack.c.h.b16 %v853
  %v924 = vunpack.c.l.b16 %v854
  %v925 = vunpack.c.h.b16 %v854
  %v926 = vunpack.c.l.b16 %v855
  %v927 = vunpack.c.h.b16 %v855
  %v928 = vunpack.c.l.b16 %v856
  %v929 = vunpack.c.h.b16 %v856
  %v930 = vunpack.c.l.b16 %v857
  %v931 = vunpack.c.h.b16 %v857
  %v932 = vunpack.c.l.b16 %v858
  %v933 = vunpack.c.h.b16 %v858
  %v934 = vunpack.c.l.b16 %v859
  %v935 = vunpack.c.h.b16 %v859
  %v936 = vunpack.c.l.b16 %v860
  %v937 = vunpack.c.h.b16 %v860
  %v938 = vunpack.c.l.b16 %v861
  %v939 = vunpack.c.h.b16 %v861
  %v940 = vunpack.c.l.b16 %v862
  %v941 = vunpack.c.h.b16 %v862
  %v942 = vunpack.c.l.b16 %v863
  %v943 = vunpack.c.h.b16 %v863
  %v944 = vunpack.c.l.b16 %v864
  %v945 = vunpack.c.h.b16 %v864
  %v946 = vunpack.c.l.b16 %v865
  %v947 = vunpack.c.h.b16 %v865
  %v948 = vunpack.c.l.b16 %v866
  %v949 = vunpack.c.h.b16 %v866
  %v950 = vunpack.c.l.b16 %v867
  %v951 = vunpack.c.h.b16 %v867
  %v952 = vunpack.c.l.b16 %v868
  %v953 = vunpack.c.h.b16 %v868
  %v954 = vunpack.c.l.b16 %v869
  %v955 = vunpack.c.h.b16 %v869
  %v956 = vunpack.c.l.b16 %v870
  %v957 = vunpack.c.h.b16 %v870
  %v958 = vunpack.c.l.b16 %v871
  %v959 = vunpack.c.h.b16 %v871
  %v960 = vunpack.c.l.b16 %v872
  %v961 = vunpack.c.h.b16 %v872
  %v962 = vunpack.c.l.b16 %v873
  %v963 = vunpack.c.h.b16 %v873
  %v964 = vunpack.c.l.b16 %v874
  %v965 = vunpack.c.h.b16 %v874
  %v966 = vunpack.c.l.b16 %v875
  %v967 = vunpack.c.h.b16 %v875
  %v968 = vunpack.c.l.b16 %v876
  %v969 = vunpack.c.h.b16 %v876
  %v970 = vunpack.c.l.b16 %v877
  %v971 = vunpack.c.h.b16 %v877
  %v972 = vunpack.c.l.b16 %v878
  %v973 = vunpack.c.h.b16 %v878
  %v974 = vunpack.c.l.b16 %v879
  %v975 = vunpack.c.h.b16 %v879
  %v976 = vpack.c.b16 %v912, %v912
  %v977 = vpack.c.b16 %v913, %v913
  %v978 = vpack.c.b16 %v914, %v914
  %v979 = vpack.c.b16 %v915, %v915
  %v980 = vpack.c.b16 %v916, %v916
  %v981 = vpack.c.b16 %v917, %v917
  %v982 = vpack.c.b16 %v918, %v918
  %v983 = vpack.c.b16 %v919, %v919
  %v984 = vpack.c.b16 %v920, %v920
  %v985 = vpack.c.b16 %v921, %v921
  %v986 = vpack.c.b16 %v922, %v922
  %v987 = vpack.c.b16 %v923, %v923
  %v988 = vpack.c.b16 %v924, %v924
  %v989 = vpack.c.b16 %v925, %v925
  %v990 = vpack.c.b16 %v926, %v926
  %v991 = vpack.c.b16 %v927, %v927
  %v992 = vpack.c.b16 %v928, %v928
  %v993 = vpack.c.b16 %v929, %v929
  %v994 = vpack.c.b16 %v930, %v930
  %v995 = vpack.c.b16 %v931, %v931
  %v996 = vpack.c.b16 %v932, %v932
  %v997 = vpack.c.b16 %v933, %v933
  %v998 = vpack.c.b16 %v934, %v934
  %v999 = vpack.c.b16 %v935, %v935
  %v1000 = vpack.c.b16 %v936, %v936
  %v1001 = vpack.c.b16 %v937, %v937
  %v1002 = vpack.c.b16 %v938, %v938
  %v1003 = vpack.c.b16 %v939, %v939
  %v1004 = vpack.c.b16 %v940, %v940
  %v1005 = vpack.c.b16 %v941, %v941
  %v1006 = vpack.c.b16 %v942, %v942
  %v1007 = vpack.c.b16 %v943, %v943
  %v1008 = vpack.c.b16 %v944, %v944
  %v1009 = vpack.c.b16 %v945, %v945
  %v1010 = vpack.c.b16 %v946, %v946
  %v1011 = vpack.c.b16 %v947, %v947
  %v1012 = vpack.c.b16 %v948, %v948
  %v1013 = vpack.c.b16 %v949, %v949
  %v1014 = vpack.c.b16 %v950, %v950
  %v1015 = vpack.c.b16 %v951, %v951
  %v1016 = vpack.c.b16 %v952, %v952
  %v1017 = vpack.c.b16 %v953, %v953
  %v1018 = vpack.c.b16 %v954, %v954
  %v1019 = vpack.c.b16 %v955, %v955
  %v1020 = vpack.c.b16 %v956, %v956
  %v1021 = vpack.c.b16 %v957, %v957
  %v1022 = vpack.c.b16 %v958, %v958
  %v1023 = vpack.c.b16 %v959, %v959
  %v1024 = vpack.c.b16 %v960, %v960
  %v1025 = vpack.c.b16 %v961, %v961
  %v1026 = vpack.c.b16 %v962, %v962
  %v1027 = vpack.c.b16 %v963, %v963
  %v1028 = vpack.c.b16 %v964, %v964
  %v1029 = vpack.c.b16 %v965, %v965
  %v1030 = vpack.c.b16 %v966, %v966
  %v1031 = vpack.c.b16 %v967, %v967
  %v1032 = vpack.c.b16 %v968, %v968
  %v1033 = vpack.c.b16 %v969, %v969
  %v1034 = vpack.c.b16 %v970, %v970
  %v1035 = vpack.c.b16 %v971, %v971
  %v1036 = vpack.c.b16 %v972, %v972
  %v1037 = vpack.c.b16 %v973, %v973
  %v1038 = vpack.c.b16 %v974, %v974
  %v1039 = vpack.c.b16 %v975, %v975
  %1104 = vst [vmem:[%s3] sm:$0xf] %v976
  %1105 = vst [vmem:[%s3 + $0x4] sm:$0xf] %v977
  %1106 = vst [vmem:[%s3 + $0x8] sm:$0xf] %v978
  %1107 = vst [vmem:[%s3 + $0xc] sm:$0xf] %v979
  %1108 = vst [vmem:[%s3 + $0x10] sm:$0xf] %v980
  %1109 = vst [vmem:[%s3 + $0x14] sm:$0xf] %v981
  %1110 = vst [vmem:[%s3 + $0x18] sm:$0xf] %v982
  %1111 = vst [vmem:[%s3 + $0x1c] sm:$0xf] %v983
  %1112 = vst [vmem:[%s3 + $0x20] sm:$0xf] %v984
  %1113 = vst [vmem:[%s3 + $0x24] sm:$0xf] %v985
  %1114 = vst [vmem:[%s3 + $0x28] sm:$0xf] %v986
  %1115 = vst [vmem:[%s3 + $0x2c] sm:$0xf] %v987
  %1116 = vst [vmem:[%s3 + $0x30] sm:$0xf] %v988
  %1117 = vst [vmem:[%s3 + $0x34] sm:$0xf] %v989
  %1118 = vst [vmem:[%s3 + $0x38] sm:$0xf] %v990
  %1119 = vst [vmem:[%s3 + $0x3c] sm:$0xf] %v991
  %1120 = vst [vmem:[%s3 + $0x40] sm:$0xf] %v992
  %1121 = vst [vmem:[%s3 + $0x44] sm:$0xf] %v993
  %1122 = vst [vmem:[%s3 + $0x48] sm:$0xf] %v994
  %1123 = vst [vmem:[%s3 + $0x4c] sm:$0xf] %v995
  %1124 = vst [vmem:[%s3 + $0x50] sm:$0xf] %v996
  %1125 = vst [vmem:[%s3 + $0x54] sm:$0xf] %v997
  %1126 = vst [vmem:[%s3 + $0x58] sm:$0xf] %v998
  %1127 = vst [vmem:[%s3 + $0x5c] sm:$0xf] %v999
  %1128 = vst [vmem:[%s3 + $0x60] sm:$0xf] %v1000
  %1129 = vst [vmem:[%s3 + $0x64] sm:$0xf] %v1001
  %1130 = vst [vmem:[%s3 + $0x68] sm:$0xf] %v1002
  %1131 = vst [vmem:[%s3 + $0x6c] sm:$0xf] %v1003
  %1132 = vst [vmem:[%s3 + $0x70] sm:$0xf] %v1004
  %1133 = vst [vmem:[%s3 + $0x74] sm:$0xf] %v1005
  %1134 = vst [vmem:[%s3 + $0x78] sm:$0xf] %v1006
  %1135 = vst [vmem:[%s3 + $0x7c] sm:$0xf] %v1007
  %1136 = vst [vmem:[%s3 + $0x80] sm:$0xf] %v1008
  %1137 = vst [vmem:[%s3 + $0x84] sm:$0xf] %v1009
  %1138 = vst [vmem:[%s3 + $0x88] sm:$0xf] %v1010
  %1139 = vst [vmem:[%s3 + $0x8c] sm:$0xf] %v1011
  %1140 = vst [vmem:[%s3 + $0x90] sm:$0xf] %v1012
  %1141 = vst [vmem:[%s3 + $0x94] sm:$0xf] %v1013
  %1142 = vst [vmem:[%s3 + $0x98] sm:$0xf] %v1014
  %1143 = vst [vmem:[%s3 + $0x9c] sm:$0xf] %v1015
  %1144 = vst [vmem:[%s3 + $0xa0] sm:$0xf] %v1016
  %1145 = vst [vmem:[%s3 + $0xa4] sm:$0xf] %v1017
  %1146 = vst [vmem:[%s3 + $0xa8] sm:$0xf] %v1018
  %1147 = vst [vmem:[%s3 + $0xac] sm:$0xf] %v1019
  %1148 = vst [vmem:[%s3 + $0xb0] sm:$0xf] %v1020
  %1149 = vst [vmem:[%s3 + $0xb4] sm:$0xf] %v1021
  %1150 = vst [vmem:[%s3 + $0xb8] sm:$0xf] %v1022
  %1151 = vst [vmem:[%s3 + $0xbc] sm:$0xf] %v1023
  %1152 = vst [vmem:[%s3 + $0xc0] sm:$0xf] %v1024
  %1153 = vst [vmem:[%s3 + $0xc4] sm:$0xf] %v1025
  %1154 = vst [vmem:[%s3 + $0xc8] sm:$0xf] %v1026
  %1155 = vst [vmem:[%s3 + $0xcc] sm:$0xf] %v1027
  %1156 = vst [vmem:[%s3 + $0xd0] sm:$0xf] %v1028
  %1157 = vst [vmem:[%s3 + $0xd4] sm:$0xf] %v1029
  %1158 = vst [vmem:[%s3 + $0xd8] sm:$0xf] %v1030
  %1159 = vst [vmem:[%s3 + $0xdc] sm:$0xf] %v1031
  %1160 = vst [vmem:[%s3 + $0xe0] sm:$0xf] %v1032
  %1161 = vst [vmem:[%s3 + $0xe4] sm:$0xf] %v1033
  %1162 = vst [vmem:[%s3 + $0xe8] sm:$0xf] %v1034
  %1163 = vst [vmem:[%s3 + $0xec] sm:$0xf] %v1035
  %1164 = vst [vmem:[%s3 + $0xf0] sm:$0xf] %v1036
  %1165 = vst [vmem:[%s3 + $0xf4] sm:$0xf] %v1037
  %1166 = vst [vmem:[%s3 + $0xf8] sm:$0xf] %v1038
  %1167 = vst [vmem:[%s3 + $0xfc] sm:$0xf] %v1039
  // Predicated region
  $region14: #{_lambda_.5} parent=0 // pred_check
    _
  $region15: #{_lambda_.5} parent=0 // pred_check_branch
    %1169 = sbr.rel (0) target = $region17
  $region16: #{_lambda_.5} parent=0 // pred_region
    _
  $region17: #{_lambda_.5} parent=0 // pred_fallthru
    _
  // Predicated region
  $region18: #{_lambda_.5} parent=0 // pred_check
    _
  $region19: #{_lambda_.5} parent=0 // pred_check_branch
    %1171 = sbr.rel (0) target = $region21
  $region20: #{_lambda_.5} parent=0 // pred_region
    _
  $region21: #{_lambda_.5} parent=0 // pred_fallthru
    _

// kernel: _lambda_.6
$region0: #{_lambda_.6}
  #allocation0 [shape = 'u32[]', space=smem, size = 0x4, offset = 0x4, fixed_abs, tag = 'smem constant byte address 0x4 - core index']
  #allocation1 [shape = 'u32[144,128]{1,0:T(1,128)}', space=vmem, size = 0x12000, scoped, tag = 'internal scratch']
  %s0 = inlined_call_operand.vmem [shape: bf16[128,256], index: 0, kind: input, shape index: {}]
  %s1 = inlined_call_operand.vmem [shape: bf16[256,128], index: 1, kind: input, shape index: {}]
  %s2 = inlined_call_operand.vmem [shape: f32[1,128], index: 2, kind: input, shape index: {}]
  %s3 = inlined_call_operand.vmem [shape: bf16[128,128], index: 3, kind: output, shape index: {0}]
  %s4 = inlined_call_operand.vmem [shape: f32[1,2,128], index: 4, kind: output, shape index: {1}]
  %5 = xla_tuple %s3, %s4
  %s6 = sld [smem:[#allocation0]]
  $region30: #{_lambda_.6} parent=0
    _
  %s8 = ssub.s32 1, %s6
  %s9 = scalar_select 0, %s8, %s6
  // Predicated region
  $region2: #{_lambda_.6} parent=0 // pred_check
    _
  $region3: #{_lambda_.6} parent=0 // pred_check_branch
    %11 = sbr.rel (0) target = $region5
  $region4: #{_lambda_.6} parent=0 // pred_region
    _
  $region5: #{_lambda_.6} parent=0 // pred_fallthru
    _
  // Predicated region
  $region6: #{_lambda_.6} parent=0 // pred_check
    _
  $region7: #{_lambda_.6} parent=0 // pred_check_branch
    %13 = sbr.rel (0) target = $region9
  $region8: #{_lambda_.6} parent=0 // pred_region
    _
  $region9: #{_lambda_.6} parent=0 // pred_fallthru
    _
  // Predicated region
  $region10: #{_lambda_.6} parent=0 // pred_check
    _
  $region11: #{_lambda_.6} parent=0 // pred_check_branch
    %15 = sbr.rel (0) target = $region13
  $region12: #{_lambda_.6} parent=0 // pred_region
    _
  $region13: #{_lambda_.6} parent=0 // pred_fallthru
    _
  %v17 = vld [vmem:[%s0] sm:$0xff]
  %v18 = vld [vmem:[%s0 + $0x8] sm:$0xff]
  %v19 = vld [vmem:[%s0 + $0x10] sm:$0xff]
  %v20 = vld [vmem:[%s0 + $0x18] sm:$0xff]
  %v21 = vld [vmem:[%s0 + $0x20] sm:$0xff]
  %v22 = vld [vmem:[%s0 + $0x28] sm:$0xff]
  %v23 = vld [vmem:[%s0 + $0x30] sm:$0xff]
  %v24 = vld [vmem:[%s0 + $0x38] sm:$0xff]
  %v25 = vld [vmem:[%s0 + $0x40] sm:$0xff]
  %v26 = vld [vmem:[%s0 + $0x48] sm:$0xff]
  %v27 = vld [vmem:[%s0 + $0x50] sm:$0xff]
  %v28 = vld [vmem:[%s0 + $0x58] sm:$0xff]
  %v29 = vld [vmem:[%s0 + $0x60] sm:$0xff]
  %v30 = vld [vmem:[%s0 + $0x68] sm:$0xff]
  %v31 = vld [vmem:[%s0 + $0x70] sm:$0xff]
  %v32 = vld [vmem:[%s0 + $0x78] sm:$0xff]
  %v33 = vld [vmem:[%s1] sm:$0xf]
  %v34 = vld [vmem:[%s1 + $0x4] sm:$0xf]
  %v35 = vld [vmem:[%s1 + $0x8] sm:$0xf]
  %v36 = vld [vmem:[%s1 + $0xc] sm:$0xf]
  %v37 = vld [vmem:[%s1 + $0x10] sm:$0xf]
  %v38 = vld [vmem:[%s1 + $0x14] sm:$0xf]
  %v39 = vld [vmem:[%s1 + $0x18] sm:$0xf]
  %v40 = vld [vmem:[%s1 + $0x1c] sm:$0xf]
  %v41 = vld [vmem:[%s1 + $0x20] sm:$0xf]
  %v42 = vld [vmem:[%s1 + $0x24] sm:$0xf]
  %v43 = vld [vmem:[%s1 + $0x28] sm:$0xf]
  %v44 = vld [vmem:[%s1 + $0x2c] sm:$0xf]
  %v45 = vld [vmem:[%s1 + $0x30] sm:$0xf]
  %v46 = vld [vmem:[%s1 + $0x34] sm:$0xf]
  %v47 = vld [vmem:[%s1 + $0x38] sm:$0xf]
  %v48 = vld [vmem:[%s1 + $0x3c] sm:$0xf]
  %v49 = vld [vmem:[%s1 + $0x40] sm:$0xf]
  %v50 = vld [vmem:[%s1 + $0x44] sm:$0xf]
  %v51 = vld [vmem:[%s1 + $0x48] sm:$0xf]
  %v52 = vld [vmem:[%s1 + $0x4c] sm:$0xf]
  %v53 = vld [vmem:[%s1 + $0x50] sm:$0xf]
  %v54 = vld [vmem:[%s1 + $0x54] sm:$0xf]
  %v55 = vld [vmem:[%s1 + $0x58] sm:$0xf]
  %v56 = vld [vmem:[%s1 + $0x5c] sm:$0xf]
  %v57 = vld [vmem:[%s1 + $0x60] sm:$0xf]
  %v58 = vld [vmem:[%s1 + $0x64] sm:$0xf]
  %v59 = vld [vmem:[%s1 + $0x68] sm:$0xf]
  %v60 = vld [vmem:[%s1 + $0x6c] sm:$0xf]
  %v61 = vld [vmem:[%s1 + $0x70] sm:$0xf]
  %v62 = vld [vmem:[%s1 + $0x74] sm:$0xf]
  %v63 = vld [vmem:[%s1 + $0x78] sm:$0xf]
  %v64 = vld [vmem:[%s1 + $0x7c] sm:$0xf]
  %v65 = vld [vmem:[%s2] sm:$0x1]
  %v67 = vlaneseq
  %v68 = vshrl.u32 %v67, 7
  %v69 = vsub.s32 0, %v68
  %v70 = vrot.slane %v65, %v69
  %v88 = vunpack.c.l.b16 %v17
  %v89 = vunpack.c.h.b16 %v17
  %v90 = vunpack.c.l.b16 %v18
  %v91 = vunpack.c.h.b16 %v18
  %v92 = vunpack.c.l.b16 %v19
  %v93 = vunpack.c.h.b16 %v19
  %v94 = vunpack.c.l.b16 %v20
  %v95 = vunpack.c.h.b16 %v20
  %v96 = vunpack.c.l.b16 %v21
  %v97 = vunpack.c.h.b16 %v21
  %v98 = vunpack.c.l.b16 %v22
  %v99 = vunpack.c.h.b16 %v22
  %v100 = vunpack.c.l.b16 %v23
  %v101 = vunpack.c.h.b16 %v23
  %v102 = vunpack.c.l.b16 %v24
  %v103 = vunpack.c.h.b16 %v24
  %v104 = vunpack.c.l.b16 %v25
  %v105 = vunpack.c.h.b16 %v25
  %v106 = vunpack.c.l.b16 %v26
  %v107 = vunpack.c.h.b16 %v26
  %v108 = vunpack.c.l.b16 %v27
  %v109 = vunpack.c.h.b16 %v27
  %v110 = vunpack.c.l.b16 %v28
  %v111 = vunpack.c.h.b16 %v28
  %v112 = vunpack.c.l.b16 %v29
  %v113 = vunpack.c.h.b16 %v29
  %v114 = vunpack.c.l.b16 %v30
  %v115 = vunpack.c.h.b16 %v30
  %v116 = vunpack.c.l.b16 %v31
  %v117 = vunpack.c.h.b16 %v31
  %v118 = vunpack.c.l.b16 %v32
  %v119 = vunpack.c.h.b16 %v32
  %v120 = vpack.c.b16 %v90, %v88
  %v121 = vpack.c.b16 %v91, %v89
  %v122 = vpack.c.b16 %v94, %v92
  %v123 = vpack.c.b16 %v95, %v93
  %v124 = vpack.c.b16 %v98, %v96
  %v125 = vpack.c.b16 %v99, %v97
  %v126 = vpack.c.b16 %v102, %v100
  %v127 = vpack.c.b16 %v103, %v101
  %v128 = vpack.c.b16 %v106, %v104
  %v129 = vpack.c.b16 %v107, %v105
  %v130 = vpack.c.b16 %v110, %v108
  %v131 = vpack.c.b16 %v111, %v109
  %v132 = vpack.c.b16 %v114, %v112
  %v133 = vpack.c.b16 %v115, %v113
  %v134 = vpack.c.b16 %v118, %v116
  %v135 = vpack.c.b16 %v119, %v117
  %v184 = vunpack.c.l.b16 %v33
  %v185 = vunpack.c.l.b16 %v34
  %v186 = vunpack.c.l.b16 %v35
  %v187 = vunpack.c.l.b16 %v36
  %v188 = vunpack.c.l.b16 %v37
  %v189 = vunpack.c.l.b16 %v38
  %v190 = vunpack.c.l.b16 %v39
  %v191 = vunpack.c.l.b16 %v40
  %v192 = vunpack.c.l.b16 %v41
  %v193 = vunpack.c.l.b16 %v42
  %v194 = vunpack.c.l.b16 %v43
  %v195 = vunpack.c.l.b16 %v44
  %v196 = vunpack.c.l.b16 %v45
  %v197 = vunpack.c.l.b16 %v46
  %v198 = vunpack.c.l.b16 %v47
  %v199 = vunpack.c.l.b16 %v48
  %v200 = vunpack.c.l.b16 %v49
  %v201 = vunpack.c.l.b16 %v50
  %v202 = vunpack.c.l.b16 %v51
  %v203 = vunpack.c.l.b16 %v52
  %v204 = vunpack.c.l.b16 %v53
  %v205 = vunpack.c.l.b16 %v54
  %v206 = vunpack.c.l.b16 %v55
  %v207 = vunpack.c.l.b16 %v56
  %v208 = vunpack.c.l.b16 %v57
  %v209 = vunpack.c.l.b16 %v58
  %v210 = vunpack.c.l.b16 %v59
  %v211 = vunpack.c.l.b16 %v60
  %v212 = vunpack.c.l.b16 %v61
  %v213 = vunpack.c.l.b16 %v62
  %v214 = vunpack.c.l.b16 %v63
  %v215 = vunpack.c.l.b16 %v64
  %v216 = vpack.c.b16 %v185, %v184
  %v217 = vpack.c.b16 %v187, %v186
  %v218 = vpack.c.b16 %v189, %v188
  %v219 = vpack.c.b16 %v191, %v190
  %v220 = vpack.c.b16 %v193, %v192
  %v221 = vpack.c.b16 %v195, %v194
  %v222 = vpack.c.b16 %v197, %v196
  %v223 = vpack.c.b16 %v199, %v198
  %v224 = vpack.c.b16 %v201, %v200
  %v225 = vpack.c.b16 %v203, %v202
  %v226 = vpack.c.b16 %v205, %v204
  %v227 = vpack.c.b16 %v207, %v206
  %v228 = vpack.c.b16 %v209, %v208
  %v229 = vpack.c.b16 %v211, %v210
  %v230 = vpack.c.b16 %v213, %v212
  %v231 = vpack.c.b16 %v215, %v214
  %248 = vmatprep.subr.bf16.mxu0 0
  %249 = vmatpush1.bf16.msra.mxu0 %v223
  %250 = vmatprep.subr.bf16.mxu0 0
  %251 = vmatpush1.bf16.msra.mxu0 %v222
  %252 = vmatprep.subr.bf16.mxu0 0
  %253 = vmatpush1.bf16.msra.mxu0 %v221
  %254 = vmatprep.subr.bf16.mxu0 0
  %255 = vmatpush1.bf16.msra.mxu0 %v220
  %256 = vmatprep.subr.bf16.mxu0 0
  %257 = vmatpush1.bf16.msra.mxu0 %v219
  %258 = vmatprep.subr.bf16.mxu0 0
  %259 = vmatpush1.bf16.msra.mxu0 %v218
  %260 = vmatprep.subr.bf16.mxu0 0
  %261 = vmatpush1.bf16.msra.mxu0 %v217
  %262 = vmatprep.subr.bf16.mxu0 0
  %263 = vmatpush1.bf16.msra.mxu0 %v216
  %264 = vmatprep.subr.bf16.mxu0 0
  %265 = vmatpush2.bf16.msra.mxu0 %v231
  %266 = vmatprep.subr.bf16.mxu0 0
  %267 = vmatpush2.bf16.msra.mxu0 %v230
  %268 = vmatprep.subr.bf16.mxu0 0
  %269 = vmatpush2.bf16.msra.mxu0 %v229
  %270 = vmatprep.subr.bf16.mxu0 0
  %271 = vmatpush2.bf16.msra.mxu0 %v228
  %272 = vmatprep.subr.bf16.mxu0 0
  %273 = vmatpush2.bf16.msra.mxu0 %v227
  %274 = vmatprep.subr.bf16.mxu0 0
  %275 = vmatpush2.bf16.msra.mxu0 %v226
  %276 = vmatprep.subr.bf16.mxu0 0
  %277 = vmatpush2.bf16.msra.mxu0 %v225
  %278 = vmatprep.subr.bf16.mxu0 0
  %279 = vmatpush2.bf16.msra.mxu0 %v224
  %280 = vmatprep.mubr.bf16.mxu0 %v121
  %281 = vmatmul.mubr.bf16.gmra.mxu0 %v120
  %v282 = vpop.f32.mrf.mxu0
  %v283 = vadd.f32 %v70, %v282
  %v284 = vpop.f32.mrf.mxu0
  %v285 = vpop.f32.mrf.mxu0
  %v286 = vadd.f32 %v70, %v285
  %v287 = vpop.f32.mrf.mxu0
  %288 = vmatprep.mubr.bf16.mxu0 %v123
  %289 = vmatmul.mubr.bf16.gmra.mxu0 %v122
  %v290 = vpop.f32.mrf.mxu0
  %v291 = vadd.f32 %v70, %v290
  %v292 = vpop.f32.mrf.mxu0
  %v293 = vpop.f32.mrf.mxu0
  %v294 = vadd.f32 %v70, %v293
  %v295 = vpop.f32.mrf.mxu0
  %296 = vmatprep.mubr.bf16.mxu0 %v125
  %297 = vmatmul.mubr.bf16.gmra.mxu0 %v124
  %v298 = vpop.f32.mrf.mxu0
  %v299 = vadd.f32 %v70, %v298
  %v300 = vpop.f32.mrf.mxu0
  %v301 = vpop.f32.mrf.mxu0
  %v302 = vadd.f32 %v70, %v301
  %v303 = vpop.f32.mrf.mxu0
  %304 = vmatprep.mubr.bf16.mxu0 %v127
  %305 = vmatmul.mubr.bf16.gmra.mxu0 %v126
  %v306 = vpop.f32.mrf.mxu0
  %v307 = vadd.f32 %v70, %v306
  %v308 = vpop.f32.mrf.mxu0
  %v309 = vpop.f32.mrf.mxu0
  %v310 = vadd.f32 %v70, %v309
  %v311 = vpop.f32.mrf.mxu0
  %312 = vmatprep.mubr.bf16.mxu0 %v129
  %313 = vmatmul.mubr.bf16.gmra.mxu0 %v128
  %v314 = vpop.f32.mrf.mxu0
  %v315 = vadd.f32 %v70, %v314
  %v316 = vpop.f32.mrf.mxu0
  %v317 = vpop.f32.mrf.mxu0
  %v318 = vadd.f32 %v70, %v317
  %v319 = vpop.f32.mrf.mxu0
  %320 = vmatprep.mubr.bf16.mxu0 %v131
  %321 = vmatmul.mubr.bf16.gmra.mxu0 %v130
  %v322 = vpop.f32.mrf.mxu0
  %v323 = vadd.f32 %v70, %v322
  %v324 = vpop.f32.mrf.mxu0
  %v325 = vpop.f32.mrf.mxu0
  %v326 = vadd.f32 %v70, %v325
  %v327 = vpop.f32.mrf.mxu0
  %328 = vmatprep.mubr.bf16.mxu0 %v133
  %329 = vmatmul.mubr.bf16.gmra.mxu0 %v132
  %v330 = vpop.f32.mrf.mxu0
  %v331 = vadd.f32 %v70, %v330
  %v332 = vpop.f32.mrf.mxu0
  %v333 = vpop.f32.mrf.mxu0
  %v334 = vadd.f32 %v70, %v333
  %v335 = vpop.f32.mrf.mxu0
  %336 = vmatprep.mubr.bf16.mxu0 %v135
  %337 = vmatmul.mubr.bf16.gmra.mxu0 %v134
  %v338 = vpop.f32.mrf.mxu0
  %v339 = vadd.f32 %v70, %v338
  %v340 = vpop.f32.mrf.mxu0
  %v341 = vpop.f32.mrf.mxu0
  %v342 = vadd.f32 %v70, %v341
  %v343 = vpop.f32.mrf.mxu0
  %344 = vdwg.mxu0
  %v345 = vpack.c.bf16 %v286, %v283
  %v346 = vpack.c.bf16 %v294, %v291
  %v347 = vpack.c.bf16 %v302, %v299
  %v348 = vpack.c.bf16 %v310, %v307
  %v349 = vpack.c.bf16 %v318, %v315
  %v350 = vpack.c.bf16 %v326, %v323
  %v351 = vpack.c.bf16 %v334, %v331
  %v352 = vpack.c.bf16 %v342, %v339
  %v361 = vunpack.c.l.b16 %v345
  %v362 = vunpack.c.h.b16 %v345
  %v363 = vunpack.c.l.b16 %v346
  %v364 = vunpack.c.h.b16 %v346
  %v365 = vunpack.c.l.b16 %v347
  %v366 = vunpack.c.h.b16 %v347
  %v367 = vunpack.c.l.b16 %v348
  %v368 = vunpack.c.h.b16 %v348
  %v369 = vunpack.c.l.b16 %v349
  %v370 = vunpack.c.h.b16 %v349
  %v371 = vunpack.c.l.b16 %v350
  %v372 = vunpack.c.h.b16 %v350
  %v373 = vunpack.c.l.b16 %v351
  %v374 = vunpack.c.h.b16 %v351
  %v375 = vunpack.c.l.b16 %v352
  %v376 = vunpack.c.h.b16 %v352
  %v377 = vpack.c.b16 %v361, %v361
  %v378 = vpack.c.b16 %v362, %v362
  %v379 = vpack.c.b16 %v363, %v363
  %v380 = vpack.c.b16 %v364, %v364
  %v381 = vpack.c.b16 %v365, %v365
  %v382 = vpack.c.b16 %v366, %v366
  %v383 = vpack.c.b16 %v367, %v367
  %v384 = vpack.c.b16 %v368, %v368
  %v385 = vpack.c.b16 %v369, %v369
  %v386 = vpack.c.b16 %v370, %v370
  %v387 = vpack.c.b16 %v371, %v371
  %v388 = vpack.c.b16 %v372, %v372
  %v389 = vpack.c.b16 %v373, %v373
  %v390 = vpack.c.b16 %v374, %v374
  %v391 = vpack.c.b16 %v375, %v375
  %v392 = vpack.c.b16 %v376, %v376
  %409 = vst [vmem:[%s3] sm:$0xf] %v377
  %410 = vst [vmem:[%s3 + $0x4] sm:$0xf] %v378
  %411 = vst [vmem:[%s3 + $0x8] sm:$0xf] %v379
  %412 = vst [vmem:[%s3 + $0xc] sm:$0xf] %v380
  %413 = vst [vmem:[%s3 + $0x10] sm:$0xf] %v381
  %414 = vst [vmem:[%s3 + $0x14] sm:$0xf] %v382
  %415 = vst [vmem:[%s3 + $0x18] sm:$0xf] %v383
  %416 = vst [vmem:[%s3 + $0x1c] sm:$0xf] %v384
  %417 = vst [vmem:[%s3 + $0x20] sm:$0xf] %v385
  %418 = vst [vmem:[%s3 + $0x24] sm:$0xf] %v386
  %419 = vst [vmem:[%s3 + $0x28] sm:$0xf] %v387
  %420 = vst [vmem:[%s3 + $0x2c] sm:$0xf] %v388
  %421 = vst [vmem:[%s3 + $0x30] sm:$0xf] %v389
  %422 = vst [vmem:[%s3 + $0x34] sm:$0xf] %v390
  %423 = vst [vmem:[%s3 + $0x38] sm:$0xf] %v391
  %424 = vst [vmem:[%s3 + $0x3c] sm:$0xf] %v392
  %v425 = vadd.f32 %v283, %v286
  %v426 = vadd.f32 %v425, %v291
  %v427 = vadd.f32 %v426, %v294
  %v428 = vadd.f32 %v427, %v299
  %v429 = vadd.f32 %v428, %v302
  %v430 = vadd.f32 %v429, %v307
  %v431 = vadd.f32 %v430, %v310
  %v432 = vadd.f32 %v431, %v315
  %v433 = vadd.f32 %v432, %v318
  %v434 = vadd.f32 %v433, %v323
  %v435 = vadd.f32 %v434, %v326
  %v436 = vadd.f32 %v435, %v331
  %v437 = vadd.f32 %v436, %v334
  %v438 = vadd.f32 %v437, %v339
  %v439 = vadd.f32 %v438, %v342
  %v440 = vrot.slane %v439, 4
  %v441 = vadd.f32 %v439, %v440
  %v442 = vrot.slane %v441, 2
  %v443 = vadd.f32 %v441, %v442
  %v444 = vrot.slane %v443, 1
  %v445 = vadd.f32 %v443, %v444
  %v446 = vmul.f32 %v283, %v283
  %v447 = vmul.f32 %v286, %v286
  %v448 = vmul.f32 %v291, %v291
  %v449 = vmul.f32 %v294, %v294
  %v450 = vmul.f32 %v299, %v299
  %v451 = vmul.f32 %v302, %v302
  %v452 = vmul.f32 %v307, %v307
  %v453 = vmul.f32 %v310, %v310
  %v454 = vmul.f32 %v315, %v315
  %v455 = vmul.f32 %v318, %v318
  %v456 = vmul.f32 %v323, %v323
  %v457 = vmul.f32 %v326, %v326
  %v458 = vmul.f32 %v331, %v331
  %v459 = vmul.f32 %v334, %v334
  %v460 = vmul.f32 %v339, %v339
  %v461 = vmul.f32 %v342, %v342
  %v462 = vadd.f32 %v446, %v447
  %v463 = vadd.f32 %v462, %v448
  %v464 = vadd.f32 %v463, %v449
  %v465 = vadd.f32 %v464, %v450
  %v466 = vadd.f32 %v465, %v451
  %v467 = vadd.f32 %v466, %v452
  %v468 = vadd.f32 %v467, %v453
  %v469 = vadd.f32 %v468, %v454
  %v470 = vadd.f32 %v469, %v455
  %v471 = vadd.f32 %v470, %v456
  %v472 = vadd.f32 %v471, %v457
  %v473 = vadd.f32 %v472, %v458
  %v474 = vadd.f32 %v473, %v459
  %v475 = vadd.f32 %v474, %v460
  %v476 = vadd.f32 %v475, %v461
  %v477 = vrot.slane %v476, 4
  %v478 = vadd.f32 %v476, %v477
  %v479 = vrot.slane %v478, 2
  %v480 = vadd.f32 %v478, %v479
  %v481 = vrot.slane %v480, 1
  %v482 = vadd.f32 %v480, %v481
  %483 = vst [vmem:[%s4] sm:$0x1] %v445
  %484 = vst [vmem:[%s4 + $0x1] sm:$0x1] %v482
  // Predicated region
  $region14: #{_lambda_.6} parent=0 // pred_check
    _
  $region15: #{_lambda_.6} parent=0 // pred_check_branch
    %486 = sbr.rel (0) target = $region17
  $region16: #{_lambda_.6} parent=0 // pred_region
    _
  $region17: #{_lambda_.6} parent=0 // pred_fallthru
    _
  // Predicated region
  $region18: #{_lambda_.6} parent=0 // pred_check
    _
  $region19: #{_lambda_.6} parent=0 // pred_check_branch
    %488 = sbr.rel (0) target = $region21
  $region20: #{_lambda_.6} parent=0 // pred_region
    _
  $region21: #{_lambda_.6} parent=0 // pred_fallthru
    _
  // Predicated region
  $region22: #{_lambda_.6} parent=0 // pred_check
    _
  $region23: #{_lambda_.6} parent=0 // pred_check_branch
    %490 = sbr.rel (0) target = $region25
  $region24: #{_lambda_.6} parent=0 // pred_region
    _
  $region25: #{_lambda_.6} parent=0 // pred_fallthru
    _
  // Predicated region
  $region26: #{_lambda_.6} parent=0 // pred_check
    _
  $region27: #{_lambda_.6} parent=0 // pred_check_branch
    %492 = sbr.rel (0) target = $region29
  $region28: #{_lambda_.6} parent=0 // pred_region
    _
  $region29: #{_lambda_.6} parent=0 // pred_fallthru
    _

// kernel: tile.18
$region0: #{tile.18}
  #allocation0 [shape = 's32[1]{0}', space=sflag, size = 0x4, scoped, tag = 'scoped memory for tile.18']
  %s0 = inlined_call_operand.vmem [shape: f32[32], index: 0, kind: input, shape index: {}]
  %s1 = inlined_call_operand.vmem [shape: f32[16,32], index: 1, kind: output, shape index: {}]
  // Predicated region
  $region2: #{tile.18} parent=0 // pred_check
    _
  $region3: #{tile.18} parent=0 // pred_check_branch
    %3 = sbr.rel (0) target = $region5
  $region4: #{tile.18} parent=0 // pred_region
    _
  $region5: #{tile.18} parent=0 // pred_fallthru
    _
  %v4 = vld [vmem:[%s0] ss:$0 sm:$0xff]
  %5 = vst [vmem:[%s1] sm:$0xff] %v4
  %s6 = scalar_lea.vmem %s1, 8
  %7 = vst [vmem:[%s6] sm:$0xff] %v4

// kernel: tile.19
$region0: #{tile.19}
  %s0 = inlined_call_operand.vmem [shape: f32[16,32], index: 0, kind: input, shape index: {}]
  %s1 = inlined_call_operand.vmem [shape: f32[1,512], index: 1, kind: output, shape index: {}]
  $region1: #{tile.19} parent=0
    #allocation0 [shape = 'u8[16384]{0}', space=vmem, size = 0x4000, scoped, tag = 'scoped mem for output reshape']
    %v2 = vld [vmem:[%s0] ss:$4 sm:$0xf]
    %vm3 = vcmask 261120
    %4 = vst.msk [vmem:[#allocation0] ss:$8 sm:$0xf] %vm3, %v2
    %s5 = scalar_lea.vmem %s0, 3
    %v6 = vld [vmem:[%s5] ss:$4 sm:$0xf]
    %7 = vrot.lane.b32.xlu0 %v6, 96
    %v8 = vpop.permute.xlu0 %7
    %vm9 = vcmask 1048320
    %10 = vst.msk [vmem:[#allocation0] ss:$8 sm:$0xf] %vm9, %v8
    %s11 = scalar_lea.vmem %s0, 2
    %v12 = vld [vmem:[%s11] ss:$4 sm:$0xf]
    %13 = vrot.lane.b32.xlu0 %v12, 64
    %v14 = vpop.permute.xlu0 %13
    %vm15 = vcmask 785920
    %16 = vst.msk [vmem:[#allocation0] ss:$8 sm:$0xf] %vm15, %v14
    %s17 = scalar_lea.vmem %s0, 1
    %v18 = vld [vmem:[%s17] ss:$4 sm:$0xf]
    %19 = vrot.lane.b32.xlu0 %v18, 32
    %v20 = vpop.permute.xlu0 %19
    %vm21 = vcmask 523520
    %22 = vst.msk [vmem:[#allocation0] ss:$8 sm:$0xf] %vm21, %v20
    %s24 = sshll.u32 1, 1
    %s25 = ssub.s32 %s24, 1
    %v27 = vld [vmem:[#allocation0] sm:%s25]
    %s28 = sshll.u32 1, 1
    %s29 = ssub.s32 %s28, 1
    %30 = vst [vmem:[%s1] sm:%s29] %v27
    %s31 = scalar_lea.vmem [#allocation0], 8
    %v32 = vld [vmem:[%s31] sm:%s25]
    %s33 = sshll.u32 1, 1
    %s34 = ssub.s32 %s33, 1
    %s35 = scalar_lea.vmem %s1, 1
    %36 = vst [vmem:[%s35] sm:%s34] %v32
    %s37 = scalar_lea.vmem [#allocation0], 16
    %v38 = vld [vmem:[%s37] sm:%s25]
    %s39 = sshll.u32 1, 1
    %s40 = ssub.s32 %s39, 1
    %s41 = smul.addr 1, 2
    %s42 = scalar_lea.vmem %s1, %s41
    %43 = vst [vmem:[%s42] sm:%s40] %v38
    %s44 = scalar_lea.vmem [#allocation0], 24
    %v45 = vld [vmem:[%s44] sm:%s25]
    %s46 = sshll.u32 1, 1
    %s47 = ssub.s32 %s46, 1
    %s48 = smul.addr 1, 3
    %s49 = scalar_lea.vmem %s1, %s48
    %50 = vst [vmem:[%s49] sm:%s47] %v45

// kernel: tile.23
$region0: #{tile.23}
  #allocation0 [shape = 's32[1]{0}', space=sflag, size = 0x4, scoped, tag = 'scoped memory for tile.23']
  %s0 = inlined_call_operand.vmem [shape: f32[64], index: 0, kind: input, shape index: {}]
  %s1 = inlined_call_operand.vmem [shape: f32[16,64], index: 1, kind: output, shape index: {}]
  // Predicated region
  $region2: #{tile.23} parent=0 // pred_check
    _
  $region3: #{tile.23} parent=0 // pred_check_branch
    %3 = sbr.rel (0) target = $region5
  $region4: #{tile.23} parent=0 // pred_region
    _
  $region5: #{tile.23} parent=0 // pred_fallthru
    _
  %v4 = vld [vmem:[%s0] ss:$0 sm:$0xff]
  %5 = vst [vmem:[%s1] sm:$0xff] %v4
  %s6 = scalar_lea.vmem %s1, 8
  %7 = vst [vmem:[%s6] sm:$0xff] %v4

// kernel: tile.24
$region0: #{tile.24}
  %s0 = inlined_call_operand.vmem [shape: f32[16,64], index: 0, kind: input, shape index: {}]
  %s1 = inlined_call_operand.vmem [shape: f32[1,1024], index: 1, kind: output, shape index: {}]
  $region1: #{tile.24} parent=0
    #allocation0 [shape = 'u8[32768]{0}', space=vmem, size = 0x8000, scoped, tag = 'scoped mem for output reshape']
    %v2 = vld [vmem:[%s0] ss:$2 sm:$0xff]
    %vm3 = vcmask 523264
    %4 = vst.msk [vmem:[#allocation0] ss:$8 sm:$0xf] %vm3, %v2
    %5 = vst.msk [vmem:[#allocation0] ss:$8 sm:$0xf0] %vm3, %v2
    %s6 = scalar_lea.vmem %s0, 1
    %v7 = vld [vmem:[%s6] ss:$2 sm:$0xff]
    %8 = vrot.lane.b32.xlu0 %v7, 64
    %v9 = vpop.permute.xlu0 %8
    %vm10 = vcmask 1048064
    %11 = vst.msk [vmem:[#allocation0] ss:$8 sm:$0xf] %vm10, %v9
    %12 = vst.msk [vmem:[#allocation0] ss:$8 sm:$0xf0] %vm10, %v9
    %s14 = sshll.u32 1, 1
    %s15 = ssub.s32 %s14, 1
    %v17 = vld [vmem:[#allocation0] sm:%s15]
    %s18 = sshll.u32 1, 1
    %s19 = ssub.s32 %s18, 1
    %20 = vst [vmem:[%s1] sm:%s19] %v17
    %s21 = scalar_lea.vmem [#allocation0], 8
    %v22 = vld [vmem:[%s21] sm:%s15]
    %s23 = sshll.u32 1, 1
    %s24 = ssub.s32 %s23, 1
    %s25 = scalar_lea.vmem %s1, 1
    %26 = vst [vmem:[%s25] sm:%s24] %v22
    %s27 = scalar_lea.vmem [#allocation0], 16
    %v28 = vld [vmem:[%s27] sm:%s15]
    %s29 = sshll.u32 1, 1
    %s30 = ssub.s32 %s29, 1
    %s31 = smul.addr 1, 2
    %s32 = scalar_lea.vmem %s1, %s31
    %33 = vst [vmem:[%s32] sm:%s30] %v28
    %s34 = scalar_lea.vmem [#allocation0], 24
    %v35 = vld [vmem:[%s34] sm:%s15]
    %s36 = sshll.u32 1, 1
    %s37 = ssub.s32 %s36, 1
    %s38 = smul.addr 1, 3
    %s39 = scalar_lea.vmem %s1, %s38
    %40 = vst [vmem:[%s39] sm:%s37] %v35
    %s41 = scalar_lea.vmem [#allocation0], 32
    %v42 = vld [vmem:[%s41] sm:%s15]
    %s43 = sshll.u32 1, 1
    %s44 = ssub.s32 %s43, 1
    %s45 = smul.addr 1, 4
    %s46 = scalar_lea.vmem %s1, %s45
    %47 = vst [vmem:[%s46] sm:%s44] %v42
    %s48 = scalar_lea.vmem [#allocation0], 40
    %v49 = vld [vmem:[%s48] sm:%s15]
    %s50 = sshll.u32 1, 1
    %s51 = ssub.s32 %s50, 1
    %s52 = smul.addr 1, 5
    %s53 = scalar_lea.vmem %s1, %s52
    %54 = vst [vmem:[%s53] sm:%s51] %v49
    %s55 = scalar_lea.vmem [#allocation0], 48
    %v56 = vld [vmem:[%s55] sm:%s15]
    %s57 = sshll.u32 1, 1
    %s58 = ssub.s32 %s57, 1
    %s59 = smul.addr 1, 6
    %s60 = scalar_lea.vmem %s1, %s59
    %61 = vst [vmem:[%s60] sm:%s58] %v56
    %s62 = scalar_lea.vmem [#allocation0], 56
    %v63 = vld [vmem:[%s62] sm:%s15]
    %s64 = sshll.u32 1, 1
    %s65 = ssub.s32 %s64, 1
    %s66 = smul.addr 1, 7
    %s67 = scalar_lea.vmem %s1, %s66
    %68 = vst [vmem:[%s67] sm:%s65] %v63

// kernel: _lambda_.7
$region0: #{_lambda_.7}
  #allocation0 [shape = 'u32[]', space=smem, size = 0x4, offset = 0x4, fixed_abs, tag = 'smem constant byte address 0x4 - core index']
  #allocation1 [shape = 'u32[144,128]{1,0:T(1,128)}', space=vmem, size = 0x12000, scoped, tag = 'internal scratch']
  %s0 = inlined_call_operand.vmem [shape: f32[1,512], index: 0, kind: input, shape index: {}]
  %s1 = inlined_call_operand.vmem [shape: bf16[32,512], index: 1, kind: input, shape index: {}]
  %s2 = inlined_call_operand.vmem [shape: bf16[512,128], index: 2, kind: input, shape index: {}]
  %s3 = inlined_call_operand.vmem [shape: f32[1,128], index: 3, kind: input, shape index: {}]
  %s4 = inlined_call_operand.vmem [shape: bf16[32,128], index: 4, kind: output, shape index: {0}]
  %s5 = inlined_call_operand.vmem [shape: f32[1,2,128], index: 5, kind: output, shape index: {1}]
  %6 = xla_tuple %s4, %s5
  %s7 = sld [smem:[#allocation0]]
  $region34: #{_lambda_.7} parent=0
    _
  %s9 = ssub.s32 1, %s7
  %s10 = scalar_select 0, %s9, %s7
  // Predicated region
  $region2: #{_lambda_.7} parent=0 // pred_check
    _
  $region3: #{_lambda_.7} parent=0 // pred_check_branch
    %12 = sbr.rel (0) target = $region5
  $region4: #{_lambda_.7} parent=0 // pred_region
    _
  $region5: #{_lambda_.7} parent=0 // pred_fallthru
    _
  // Predicated region
  $region6: #{_lambda_.7} parent=0 // pred_check
    _
  $region7: #{_lambda_.7} parent=0 // pred_check_branch
    %14 = sbr.rel (0) target = $region9
  $region8: #{_lambda_.7} parent=0 // pred_region
    _
  $region9: #{_lambda_.7} parent=0 // pred_fallthru
    _
  // Predicated region
  $region10: #{_lambda_.7} parent=0 // pred_check
    _
  $region11: #{_lambda_.7} parent=0 // pred_check_branch
    %16 = sbr.rel (0) target = $region13
  $region12: #{_lambda_.7} parent=0 // pred_region
    _
  $region13: #{_lambda_.7} parent=0 // pred_fallthru
    _
  // Predicated region
  $region14: #{_lambda_.7} parent=0 // pred_check
    _
  $region15: #{_lambda_.7} parent=0 // pred_check_branch
    %18 = sbr.rel (0) target = $region17
  $region16: #{_lambda_.7} parent=0 // pred_region
    _
  $region17: #{_lambda_.7} parent=0 // pred_fallthru
    _
  %v20 = vld [vmem:[%s1] sm:$0xff]
  %v21 = vld [vmem:[%s1 + $0x8] sm:$0xff]
  %v22 = vld [vmem:[%s1 + $0x10] sm:$0xff]
  %v23 = vld [vmem:[%s1 + $0x18] sm:$0xff]
  %v24 = vld [vmem:[%s1 + $0x20] sm:$0xff]
  %v25 = vld [vmem:[%s1 + $0x28] sm:$0xff]
  %v26 = vld [vmem:[%s1 + $0x30] sm:$0xff]
  %v27 = vld [vmem:[%s1 + $0x38] sm:$0xff]
  %v28 = vunpack.c.l.bf16 %v20
  %v29 = vunpack.c.h.bf16 %v20
  %v30 = vunpack.c.l.bf16 %v21
  %v31 = vunpack.c.h.bf16 %v21
  %v32 = vunpack.c.l.bf16 %v22
  %v33 = vunpack.c.h.bf16 %v22
  %v34 = vunpack.c.l.bf16 %v23
  %v35 = vunpack.c.h.bf16 %v23
  %v36 = vunpack.c.l.bf16 %v24
  %v37 = vunpack.c.h.bf16 %v24
  %v38 = vunpack.c.l.bf16 %v25
  %v39 = vunpack.c.h.bf16 %v25
  %v40 = vunpack.c.l.bf16 %v26
  %v41 = vunpack.c.h.bf16 %v26
  %v42 = vunpack.c.l.bf16 %v27
  %v43 = vunpack.c.h.bf16 %v27
  %v44 = vld [vmem:[%s0] sm:$0xf]
  %v46 = vlaneseq
  %v47 = vshrl.u32 %v46, 7
  %v48 = vsub.s32 0, %v47
  %v49 = vrot.slane %v44, %v48
  %v50 = vlaneseq
  %v51 = vshrl.u32 %v50, 7
  %v52 = vsub.s32 1, %v51
  %v53 = vrot.slane %v44, %v52
  %v54 = vlaneseq
  %v55 = vshrl.u32 %v54, 7
  %v56 = vsub.s32 2, %v55
  %v57 = vrot.slane %v44, %v56
  %v58 = vlaneseq
  %v59 = vshrl.u32 %v58, 7
  %v60 = vsub.s32 3, %v59
  %v61 = vrot.slane %v44, %v60
  %v66 = vmul.f32 %v28, %v49
  %v67 = vmul.f32 %v29, %v53
  %v68 = vmul.f32 %v30, %v57
  %v69 = vmul.f32 %v31, %v61
  %v70 = vmul.f32 %v32, %v49
  %v71 = vmul.f32 %v33, %v53
  %v72 = vmul.f32 %v34, %v57
  %v73 = vmul.f32 %v35, %v61
  %v74 = vmul.f32 %v36, %v49
  %v75 = vmul.f32 %v37, %v53
  %v76 = vmul.f32 %v38, %v57
  %v77 = vmul.f32 %v39, %v61
  %v78 = vmul.f32 %v40, %v49
  %v79 = vmul.f32 %v41, %v53
  %v80 = vmul.f32 %v42, %v57
  %v81 = vmul.f32 %v43, %v61
  %vm82 = vcmp.gt.f32.partialorder %v66, 0.0
  %vm83 = vcmp.gt.f32.partialorder %v67, 0.0
  %vm84 = vcmp.gt.f32.partialorder %v68, 0.0
  %vm85 = vcmp.gt.f32.partialorder %v69, 0.0
  %vm86 = vcmp.gt.f32.partialorder %v70, 0.0
  %vm87 = vcmp.gt.f32.partialorder %v71, 0.0
  %vm88 = vcmp.gt.f32.partialorder %v72, 0.0
  %vm89 = vcmp.gt.f32.partialorder %v73, 0.0
  %vm90 = vcmp.gt.f32.partialorder %v74, 0.0
  %vm91 = vcmp.gt.f32.partialorder %v75, 0.0
  %vm92 = vcmp.gt.f32.partialorder %v76, 0.0
  %vm93 = vcmp.gt.f32.partialorder %v77, 0.0
  %vm94 = vcmp.gt.f32.partialorder %v78, 0.0
  %vm95 = vcmp.gt.f32.partialorder %v79, 0.0
  %vm96 = vcmp.gt.f32.partialorder %v80, 0.0
  %vm97 = vcmp.gt.f32.partialorder %v81, 0.0
  %v98 = vmul.f32 %v66, 0.2
  %v99 = vmul.f32 %v67, 0.2
  %v100 = vmul.f32 %v68, 0.2
  %v101 = vmul.f32 %v69, 0.2
  %v102 = vmul.f32 %v70, 0.2
  %v103 = vmul.f32 %v71, 0.2
  %v104 = vmul.f32 %v72, 0.2
  %v105 = vmul.f32 %v73, 0.2
  %v106 = vmul.f32 %v74, 0.2
  %v107 = vmul.f32 %v75, 0.2
  %v108 = vmul.f32 %v76, 0.2
  %v109 = vmul.f32 %v77, 0.2
  %v110 = vmul.f32 %v78, 0.2
  %v111 = vmul.f32 %v79, 0.2
  %v112 = vmul.f32 %v80, 0.2
  %v113 = vmul.f32 %v81, 0.2
  %v114 = vsel %vm82, %v66, %v98
  %v115 = vsel %vm83, %v67, %v99
  %v116 = vsel %vm84, %v68, %v100
  %v117 = vsel %vm85, %v69, %v101
  %v118 = vsel %vm86, %v70, %v102
  %v119 = vsel %vm87, %v71, %v103
  %v120 = vsel %vm88, %v72, %v104
  %v121 = vsel %vm89, %v73, %v105
  %v122 = vsel %vm90, %v74, %v106
  %v123 = vsel %vm91, %v75, %v107
  %v124 = vsel %vm92, %v76, %v108
  %v125 = vsel %vm93, %v77, %v109
  %v126 = vsel %vm94, %v78, %v110
  %v127 = vsel %vm95, %v79, %v111
  %v128 = vsel %vm96, %v80, %v112
  %v129 = vsel %vm97, %v81, %v113
  %v130 = vpack.c.bf16 %v118, %v114
  %v131 = vpack.c.bf16 %v119, %v115
  %v132 = vpack.c.bf16 %v120, %v116
  %v133 = vpack.c.bf16 %v121, %v117
  %v134 = vpack.c.bf16 %v126, %v122
  %v135 = vpack.c.bf16 %v127, %v123
  %v136 = vpack.c.bf16 %v128, %v124
  %v137 = vpack.c.bf16 %v129, %v125
  %v138 = vld [vmem:[%s2] sm:$0xf]
  %v139 = vld [vmem:[%s2 + $0x4] sm:$0xf]
  %v140 = vld [vmem:[%s2 + $0x8] sm:$0xf]
  %v141 = vld [vmem:[%s2 + $0xc] sm:$0xf]
  %v142 = vld [vmem:[%s2 + $0x10] sm:$0xf]
  %v143 = vld [vmem:[%s2 + $0x14] sm:$0xf]
  %v144 = vld [vmem:[%s2 + $0x18] sm:$0xf]
  %v145 = vld [vmem:[%s2 + $0x1c] sm:$0xf]
  %v146 = vld [vmem:[%s2 + $0x20] sm:$0xf]
  %v147 = vld [vmem:[%s2 + $0x24] sm:$0xf]
  %v148 = vld [vmem:[%s2 + $0x28] sm:$0xf]
  %v149 = vld [vmem:[%s2 + $0x2c] sm:$0xf]
  %v150 = vld [vmem:[%s2 + $0x30] sm:$0xf]
  %v151 = vld [vmem:[%s2 + $0x34] sm:$0xf]
  %v152 = vld [vmem:[%s2 + $0x38] sm:$0xf]
  %v153 = vld [vmem:[%s2 + $0x3c] sm:$0xf]
  %v154 = vld [vmem:[%s2 + $0x40] sm:$0xf]
  %v155 = vld [vmem:[%s2 + $0x44] sm:$0xf]
  %v156 = vld [vmem:[%s2 + $0x48] sm:$0xf]
  %v157 = vld [vmem:[%s2 + $0x4c] sm:$0xf]
  %v158 = vld [vmem:[%s2 + $0x50] sm:$0xf]
  %v159 = vld [vmem:[%s2 + $0x54] sm:$0xf]
  %v160 = vld [vmem:[%s2 + $0x58] sm:$0xf]
  %v161 = vld [vmem:[%s2 + $0x5c] sm:$0xf]
  %v162 = vld [vmem:[%s2 + $0x60] sm:$0xf]
  %v163 = vld [vmem:[%s2 + $0x64] sm:$0xf]
  %v164 = vld [vmem:[%s2 + $0x68] sm:$0xf]
  %v165 = vld [vmem:[%s2 + $0x6c] sm:$0xf]
  %v166 = vld [vmem:[%s2 + $0x70] sm:$0xf]
  %v167 = vld [vmem:[%s2 + $0x74] sm:$0xf]
  %v168 = vld [vmem:[%s2 + $0x78] sm:$0xf]
  %v169 = vld [vmem:[%s2 + $0x7c] sm:$0xf]
  %v170 = vld [vmem:[%s2 + $0x80] sm:$0xf]
  %v171 = vld [vmem:[%s2 + $0x84] sm:$0xf]
  %v172 = vld [vmem:[%s2 + $0x88] sm:$0xf]
  %v173 = vld [vmem:[%s2 + $0x8c] sm:$0xf]
  %v174 = vld [vmem:[%s2 + $0x90] sm:$0xf]
  %v175 = vld [vmem:[%s2 + $0x94] sm:$0xf]
  %v176 = vld [vmem:[%s2 + $0x98] sm:$0xf]
  %v177 = vld [vmem:[%s2 + $0x9c] sm:$0xf]
  %v178 = vld [vmem:[%s2 + $0xa0] sm:$0xf]
  %v179 = vld [vmem:[%s2 + $0xa4] sm:$0xf]
  %v180 = vld [vmem:[%s2 + $0xa8] sm:$0xf]
  %v181 = vld [vmem:[%s2 + $0xac] sm:$0xf]
  %v182 = vld [vmem:[%s2 + $0xb0] sm:$0xf]
  %v183 = vld [vmem:[%s2 + $0xb4] sm:$0xf]
  %v184 = vld [vmem:[%s2 + $0xb8] sm:$0xf]
  %v185 = vld [vmem:[%s2 + $0xbc] sm:$0xf]
  %v186 = vld [vmem:[%s2 + $0xc0] sm:$0xf]
  %v187 = vld [vmem:[%s2 + $0xc4] sm:$0xf]
  %v188 = vld [vmem:[%s2 + $0xc8] sm:$0xf]
  %v189 = vld [vmem:[%s2 + $0xcc] sm:$0xf]
  %v190 = vld [vmem:[%s2 + $0xd0] sm:$0xf]
  %v191 = vld [vmem:[%s2 + $0xd4] sm:$0xf]
  %v192 = vld [vmem:[%s2 + $0xd8] sm:$0xf]
  %v193 = vld [vmem:[%s2 + $0xdc] sm:$0xf]
  %v194 = vld [vmem:[%s2 + $0xe0] sm:$0xf]
  %v195 = vld [vmem:[%s2 + $0xe4] sm:$0xf]
  %v196 = vld [vmem:[%s2 + $0xe8] sm:$0xf]
  %v197 = vld [vmem:[%s2 + $0xec] sm:$0xf]
  %v198 = vld [vmem:[%s2 + $0xf0] sm:$0xf]
  %v199 = vld [vmem:[%s2 + $0xf4] sm:$0xf]
  %v200 = vld [vmem:[%s2 + $0xf8] sm:$0xf]
  %v201 = vld [vmem:[%s2 + $0xfc] sm:$0xf]
  %v202 = vld [vmem:[%s3] sm:$0x1]
  %v204 = vlaneseq
  %v205 = vshrl.u32 %v204, 7
  %v206 = vsub.s32 0, %v205
  %v207 = vrot.slane %v202, %v206
  %v273 = vunpack.c.l.b16 %v138
  %v274 = vunpack.c.l.b16 %v139
  %v275 = vunpack.c.l.b16 %v140
  %v276 = vunpack.c.l.b16 %v141
  %v277 = vunpack.c.l.b16 %v142
  %v278 = vunpack.c.l.b16 %v143
  %v279 = vunpack.c.l.b16 %v144
  %v280 = vunpack.c.l.b16 %v145
  %v281 = vunpack.c.l.b16 %v146
  %v282 = vunpack.c.l.b16 %v147
  %v283 = vunpack.c.l.b16 %v148
  %v284 = vunpack.c.l.b16 %v149
  %v285 = vunpack.c.l.b16 %v150
  %v286 = vunpack.c.l.b16 %v151
  %v287 = vunpack.c.l.b16 %v152
  %v288 = vunpack.c.l.b16 %v153
  %v289 = vunpack.c.l.b16 %v154
  %v290 = vunpack.c.l.b16 %v155
  %v291 = vunpack.c.l.b16 %v156
  %v292 = vunpack.c.l.b16 %v157
  %v293 = vunpack.c.l.b16 %v158
  %v294 = vunpack.c.l.b16 %v159
  %v295 = vunpack.c.l.b16 %v160
  %v296 = vunpack.c.l.b16 %v161
  %v297 = vunpack.c.l.b16 %v162
  %v298 = vunpack.c.l.b16 %v163
  %v299 = vunpack.c.l.b16 %v164
  %v300 = vunpack.c.l.b16 %v165
  %v301 = vunpack.c.l.b16 %v166
  %v302 = vunpack.c.l.b16 %v167
  %v303 = vunpack.c.l.b16 %v168
  %v304 = vunpack.c.l.b16 %v169
  %v305 = vunpack.c.l.b16 %v170
  %v306 = vunpack.c.l.b16 %v171
  %v307 = vunpack.c.l.b16 %v172
  %v308 = vunpack.c.l.b16 %v173
  %v309 = vunpack.c.l.b16 %v174
  %v310 = vunpack.c.l.b16 %v175
  %v311 = vunpack.c.l.b16 %v176
  %v312 = vunpack.c.l.b16 %v177
  %v313 = vunpack.c.l.b16 %v178
  %v314 = vunpack.c.l.b16 %v179
  %v315 = vunpack.c.l.b16 %v180
  %v316 = vunpack.c.l.b16 %v181
  %v317 = vunpack.c.l.b16 %v182
  %v318 = vunpack.c.l.b16 %v183
  %v319 = vunpack.c.l.b16 %v184
  %v320 = vunpack.c.l.b16 %v185
  %v321 = vunpack.c.l.b16 %v186
  %v322 = vunpack.c.l.b16 %v187
  %v323 = vunpack.c.l.b16 %v188
  %v324 = vunpack.c.l.b16 %v189
  %v325 = vunpack.c.l.b16 %v190
  %v326 = vunpack.c.l.b16 %v191
  %v327 = vunpack.c.l.b16 %v192
  %v328 = vunpack.c.l.b16 %v193
  %v329 = vunpack.c.l.b16 %v194
  %v330 = vunpack.c.l.b16 %v195
  %v331 = vunpack.c.l.b16 %v196
  %v332 = vunpack.c.l.b16 %v197
  %v333 = vunpack.c.l.b16 %v198
  %v334 = vunpack.c.l.b16 %v199
  %v335 = vunpack.c.l.b16 %v200
  %v336 = vunpack.c.l.b16 %v201
  %v337 = vpack.c.b16 %v274, %v273
  %v338 = vpack.c.b16 %v276, %v275
  %v339 = vpack.c.b16 %v278, %v277
  %v340 = vpack.c.b16 %v280, %v279
  %v341 = vpack.c.b16 %v282, %v281
  %v342 = vpack.c.b16 %v284, %v283
  %v343 = vpack.c.b16 %v286, %v285
  %v344 = vpack.c.b16 %v288, %v287
  %v345 = vpack.c.b16 %v290, %v289
  %v346 = vpack.c.b16 %v292, %v291
  %v347 = vpack.c.b16 %v294, %v293
  %v348 = vpack.c.b16 %v296, %v295
  %v349 = vpack.c.b16 %v298, %v297
  %v350 = vpack.c.b16 %v300, %v299
  %v351 = vpack.c.b16 %v302, %v301
  %v352 = vpack.c.b16 %v304, %v303
  %v353 = vpack.c.b16 %v306, %v305
  %v354 = vpack.c.b16 %v308, %v307
  %v355 = vpack.c.b16 %v310, %v309
  %v356 = vpack.c.b16 %v312, %v311
  %v357 = vpack.c.b16 %v314, %v313
  %v358 = vpack.c.b16 %v316, %v315
  %v359 = vpack.c.b16 %v318, %v317
  %v360 = vpack.c.b16 %v320, %v319
  %v361 = vpack.c.b16 %v322, %v321
  %v362 = vpack.c.b16 %v324, %v323
  %v363 = vpack.c.b16 %v326, %v325
  %v364 = vpack.c.b16 %v328, %v327
  %v365 = vpack.c.b16 %v330, %v329
  %v366 = vpack.c.b16 %v332, %v331
  %v367 = vpack.c.b16 %v334, %v333
  %v368 = vpack.c.b16 %v336, %v335
  %401 = vmatprep.subr.bf16.mxu0 0
  %402 = vmatpush1.bf16.msra.mxu0 %v344
  %403 = vmatprep.subr.bf16.mxu0 0
  %404 = vmatpush1.bf16.msra.mxu0 %v343
  %405 = vmatprep.subr.bf16.mxu0 0
  %406 = vmatpush1.bf16.msra.mxu0 %v342
  %407 = vmatprep.subr.bf16.mxu0 0
  %408 = vmatpush1.bf16.msra.mxu0 %v341
  %409 = vmatprep.subr.bf16.mxu0 0
  %410 = vmatpush1.bf16.msra.mxu0 %v340
  %411 = vmatprep.subr.bf16.mxu0 0
  %412 = vmatpush1.bf16.msra.mxu0 %v339
  %413 = vmatprep.subr.bf16.mxu0 0
  %414 = vmatpush1.bf16.msra.mxu0 %v338
  %415 = vmatprep.subr.bf16.mxu0 0
  %416 = vmatpush1.bf16.msra.mxu0 %v337
  %417 = vmatprep.subr.bf16.mxu0 0
  %418 = vmatpush2.bf16.msra.mxu0 %v352
  %419 = vmatprep.subr.bf16.mxu0 0
  %420 = vmatpush2.bf16.msra.mxu0 %v351
  %421 = vmatprep.subr.bf16.mxu0 0
  %422 = vmatpush2.bf16.msra.mxu0 %v350
  %423 = vmatprep.subr.bf16.mxu0 0
  %424 = vmatpush2.bf16.msra.mxu0 %v349
  %425 = vmatprep.subr.bf16.mxu0 0
  %426 = vmatpush2.bf16.msra.mxu0 %v348
  %427 = vmatprep.subr.bf16.mxu0 0
  %428 = vmatpush2.bf16.msra.mxu0 %v347
  %429 = vmatprep.subr.bf16.mxu0 0
  %430 = vmatpush2.bf16.msra.mxu0 %v346
  %431 = vmatprep.subr.bf16.mxu0 0
  %432 = vmatpush2.bf16.msra.mxu0 %v345
  %433 = vmatprep.mubr.bf16.mxu0 %v131
  %434 = vmatmul.mubr.bf16.gmra.mxu0 %v130
  %v435 = vpop.f32.mrf.mxu0
  %v436 = vadd.f32 %v207, %v435
  %v437 = vpop.f32.mrf.mxu0
  %v438 = vpop.f32.mrf.mxu0
  %v439 = vadd.f32 %v207, %v438
  %v440 = vpop.f32.mrf.mxu0
  %441 = vmatprep.mubr.bf16.mxu0 %v135
  %442 = vmatmul.mubr.bf16.gmra.mxu0 %v134
  %v443 = vpop.f32.mrf.mxu0
  %v444 = vadd.f32 %v207, %v443
  %v445 = vpop.f32.mrf.mxu0
  %v446 = vpop.f32.mrf.mxu0
  %v447 = vadd.f32 %v207, %v446
  %v448 = vpop.f32.mrf.mxu0
  %449 = vdwg.mxu0
  %450 = vmatprep.subr.bf16.mxu0 0
  %451 = vmatpush1.bf16.msra.mxu0 %v360
  %452 = vmatprep.subr.bf16.mxu0 0
  %453 = vmatpush1.bf16.msra.mxu0 %v359
  %454 = vmatprep.subr.bf16.mxu0 0
  %455 = vmatpush1.bf16.msra.mxu0 %v358
  %456 = vmatprep.subr.bf16.mxu0 0
  %457 = vmatpush1.bf16.msra.mxu0 %v357
  %458 = vmatprep.subr.bf16.mxu0 0
  %459 = vmatpush1.bf16.msra.mxu0 %v356
  %460 = vmatprep.subr.bf16.mxu0 0
  %461 = vmatpush1.bf16.msra.mxu0 %v355
  %462 = vmatprep.subr.bf16.mxu0 0
  %463 = vmatpush1.bf16.msra.mxu0 %v354
  %464 = vmatprep.subr.bf16.mxu0 0
  %465 = vmatpush1.bf16.msra.mxu0 %v353
  %466 = vmatprep.subr.bf16.mxu0 0
  %467 = vmatpush2.bf16.msra.mxu0 %v368
  %468 = vmatprep.subr.bf16.mxu0 0
  %469 = vmatpush2.bf16.msra.mxu0 %v367
  %470 = vmatprep.subr.bf16.mxu0 0
  %471 = vmatpush2.bf16.msra.mxu0 %v366
  %472 = vmatprep.subr.bf16.mxu0 0
  %473 = vmatpush2.bf16.msra.mxu0 %v365
  %474 = vmatprep.subr.bf16.mxu0 0
  %475 = vmatpush2.bf16.msra.mxu0 %v364
  %476 = vmatprep.subr.bf16.mxu0 0
  %477 = vmatpush2.bf16.msra.mxu0 %v363
  %478 = vmatprep.subr.bf16.mxu0 0
  %479 = vmatpush2.bf16.msra.mxu0 %v362
  %480 = vmatprep.subr.bf16.mxu0 0
  %481 = vmatpush2.bf16.msra.mxu0 %v361
  %482 = vmatprep.mubr.bf16.mxu0 %v133
  %483 = vmatmul.mubr.bf16.gmra.mxu0 %v132
  %v484 = vpop.f32.mrf.mxu0
  %v485 = vadd.f32 %v436, %v484
  %v486 = vpop.f32.mrf.mxu0
  %v487 = vpop.f32.mrf.mxu0
  %v488 = vadd.f32 %v439, %v487
  %v489 = vpop.f32.mrf.mxu0
  %490 = vmatprep.mubr.bf16.mxu0 %v137
  %491 = vmatmul.mubr.bf16.gmra.mxu0 %v136
  %v492 = vpop.f32.mrf.mxu0
  %v493 = vadd.f32 %v444, %v492
  %v494 = vpop.f32.mrf.mxu0
  %v495 = vpop.f32.mrf.mxu0
  %v496 = vadd.f32 %v447, %v495
  %v497 = vpop.f32.mrf.mxu0
  %498 = vdwg.mxu0
  %v499 = vpack.c.bf16 %v488, %v485
  %v500 = vpack.c.bf16 %v496, %v493
  %v503 = vunpack.c.l.b16 %v499
  %v504 = vunpack.c.h.b16 %v499
  %v505 = vunpack.c.l.b16 %v500
  %v506 = vunpack.c.h.b16 %v500
  %v507 = vpack.c.b16 %v503, %v503
  %v508 = vpack.c.b16 %v504, %v504
  %v509 = vpack.c.b16 %v505, %v505
  %v510 = vpack.c.b16 %v506, %v506
  %515 = vst [vmem:[%s4] sm:$0xf] %v507
  %516 = vst [vmem:[%s4 + $0x4] sm:$0xf] %v508
  %517 = vst [vmem:[%s4 + $0x8] sm:$0xf] %v509
  %518 = vst [vmem:[%s4 + $0xc] sm:$0xf] %v510
  %v519 = vadd.f32 %v485, %v488
  %v520 = vadd.f32 %v519, %v493
  %v521 = vadd.f32 %v520, %v496
  %v522 = vrot.slane %v521, 4
  %v523 = vadd.f32 %v521, %v522
  %v524 = vrot.slane %v523, 2
  %v525 = vadd.f32 %v523, %v524
  %v526 = vrot.slane %v525, 1
  %v527 = vadd.f32 %v525, %v526
  %v528 = vmul.f32 %v485, %v485
  %v529 = vmul.f32 %v488, %v488
  %v530 = vmul.f32 %v493, %v493
  %v531 = vmul.f32 %v496, %v496
  %v532 = vadd.f32 %v528, %v529
  %v533 = vadd.f32 %v532, %v530
  %v534 = vadd.f32 %v533, %v531
  %v535 = vrot.slane %v534, 4
  %v536 = vadd.f32 %v534, %v535
  %v537 = vrot.slane %v536, 2
  %v538 = vadd.f32 %v536, %v537
  %v539 = vrot.slane %v538, 1
  %v540 = vadd.f32 %v538, %v539
  %541 = vst [vmem:[%s5] sm:$0x1] %v527
  %542 = vst [vmem:[%s5 + $0x1] sm:$0x1] %v540
  // Predicated region
  $region18: #{_lambda_.7} parent=0 // pred_check
    _
  $region19: #{_lambda_.7} parent=0 // pred_check_branch
    %544 = sbr.rel (0) target = $region21
  $region20: #{_lambda_.7} parent=0 // pred_region
    _
  $region21: #{_lambda_.7} parent=0 // pred_fallthru
    _
  // Predicated region
  $region22: #{_lambda_.7} parent=0 // pred_check
    _
  $region23: #{_lambda_.7} parent=0 // pred_check_branch
    %546 = sbr.rel (0) target = $region25
  $region24: #{_lambda_.7} parent=0 // pred_region
    _
  $region25: #{_lambda_.7} parent=0 // pred_fallthru
    _
  // Predicated region
  $region26: #{_lambda_.7} parent=0 // pred_check
    _
  $region27: #{_lambda_.7} parent=0 // pred_check_branch
    %548 = sbr.rel (0) target = $region29
  $region28: #{_lambda_.7} parent=0 // pred_region
    _
  $region29: #{_lambda_.7} parent=0 // pred_fallthru
    _
  // Predicated region
  $region30: #{_lambda_.7} parent=0 // pred_check
    _
  $region31: #{_lambda_.7} parent=0 // pred_check_branch
    %550 = sbr.rel (0) target = $region33
  $region32: #{_lambda_.7} parent=0 // pred_region
    _
  $region33: #{_lambda_.7} parent=0 // pred_fallthru
    _

// kernel: tile.28
$region0: #{tile.28}
  #allocation0 [shape = 's32[1]{0}', space=sflag, size = 0x4, scoped, tag = 'scoped memory for tile.28']
  %s0 = inlined_call_operand.vmem [shape: f32[128], index: 0, kind: input, shape index: {}]
  %s1 = inlined_call_operand.vmem [shape: f32[16,128], index: 1, kind: output, shape index: {}]
  // Predicated region
  $region2: #{tile.28} parent=0 // pred_check
    _
  $region3: #{tile.28} parent=0 // pred_check_branch
    %3 = sbr.rel (0) target = $region5
  $region4: #{tile.28} parent=0 // pred_region
    _
  $region5: #{tile.28} parent=0 // pred_fallthru
    _
  %v4 = vld [vmem:[%s0] ss:$0 sm:$0xff]
  %5 = vst [vmem:[%s1] sm:$0xff] %v4
  %s6 = scalar_lea.vmem %s1, 8
  %7 = vst [vmem:[%s6] sm:$0xff] %v4

// kernel: _lambda_.8
$region0: #{_lambda_.8}
  #allocation0 [shape = 'u32[]', space=smem, size = 0x4, offset = 0x4, fixed_abs, tag = 'smem constant byte address 0x4 - core index']
  #allocation1 [shape = 'u32[144,128]{1,0:T(1,128)}', space=vmem, size = 0x12000, scoped, tag = 'internal scratch']
  %s0 = inlined_call_operand.vmem [shape: f32[1,1024], index: 0, kind: input, shape index: {}]
  %s1 = inlined_call_operand.vmem [shape: bf16[32,1024], index: 1, kind: input, shape index: {}]
  %s2 = inlined_call_operand.vmem [shape: bf16[1024,128], index: 2, kind: input, shape index: {}]
  %s3 = inlined_call_operand.vmem [shape: f32[1,128], index: 3, kind: input, shape index: {}]
  %s4 = inlined_call_operand.vmem [shape: bf16[32,128], index: 4, kind: output, shape index: {0}]
  %s5 = inlined_call_operand.vmem [shape: f32[1,2,128], index: 5, kind: output, shape index: {1}]
  %6 = xla_tuple %s4, %s5
  %s7 = sld [smem:[#allocation0]]
  $region34: #{_lambda_.8} parent=0
    _
  %s9 = ssub.s32 1, %s7
  %s10 = scalar_select 0, %s9, %s7
  // Predicated region
  $region2: #{_lambda_.8} parent=0 // pred_check
    _
  $region3: #{_lambda_.8} parent=0 // pred_check_branch
    %12 = sbr.rel (0) target = $region5
  $region4: #{_lambda_.8} parent=0 // pred_region
    _
  $region5: #{_lambda_.8} parent=0 // pred_fallthru
    _
  // Predicated region
  $region6: #{_lambda_.8} parent=0 // pred_check
    _
  $region7: #{_lambda_.8} parent=0 // pred_check_branch
    %14 = sbr.rel (0) target = $region9
  $region8: #{_lambda_.8} parent=0 // pred_region
    _
  $region9: #{_lambda_.8} parent=0 // pred_fallthru
    _
  // Predicated region
  $region10: #{_lambda_.8} parent=0 // pred_check
    _
  $region11: #{_lambda_.8} parent=0 // pred_check_branch
    %16 = sbr.rel (0) target = $region13
  $region12: #{_lambda_.8} parent=0 // pred_region
    _
  $region13: #{_lambda_.8} parent=0 // pred_fallthru
    _
  // Predicated region
  $region14: #{_lambda_.8} parent=0 // pred_check
    _
  $region15: #{_lambda_.8} parent=0 // pred_check_branch
    %18 = sbr.rel (0) target = $region17
  $region16: #{_lambda_.8} parent=0 // pred_region
    _
  $region17: #{_lambda_.8} parent=0 // pred_fallthru
    _
  %v20 = vld [vmem:[%s1] sm:$0xff]
  %v21 = vld [vmem:[%s1 + $0x8] sm:$0xff]
  %v22 = vld [vmem:[%s1 + $0x10] sm:$0xff]
  %v23 = vld [vmem:[%s1 + $0x18] sm:$0xff]
  %v24 = vld [vmem:[%s1 + $0x20] sm:$0xff]
  %v25 = vld [vmem:[%s1 + $0x28] sm:$0xff]
  %v26 = vld [vmem:[%s1 + $0x30] sm:$0xff]
  %v27 = vld [vmem:[%s1 + $0x38] sm:$0xff]
  %v28 = vld [vmem:[%s1 + $0x40] sm:$0xff]
  %v29 = vld [vmem:[%s1 + $0x48] sm:$0xff]
  %v30 = vld [vmem:[%s1 + $0x50] sm:$0xff]
  %v31 = vld [vmem:[%s1 + $0x58] sm:$0xff]
  %v32 = vld [vmem:[%s1 + $0x60] sm:$0xff]
  %v33 = vld [vmem:[%s1 + $0x68] sm:$0xff]
  %v34 = vld [vmem:[%s1 + $0x70] sm:$0xff]
  %v35 = vld [vmem:[%s1 + $0x78] sm:$0xff]
  %v36 = vunpack.c.l.bf16 %v20
  %v37 = vunpack.c.h.bf16 %v20
  %v38 = vunpack.c.l.bf16 %v21
  %v39 = vunpack.c.h.bf16 %v21
  %v40 = vunpack.c.l.bf16 %v22
  %v41 = vunpack.c.h.bf16 %v22
  %v42 = vunpack.c.l.bf16 %v23
  %v43 = vunpack.c.h.bf16 %v23
  %v44 = vunpack.c.l.bf16 %v24
  %v45 = vunpack.c.h.bf16 %v24
  %v46 = vunpack.c.l.bf16 %v25
  %v47 = vunpack.c.h.bf16 %v25
  %v48 = vunpack.c.l.bf16 %v26
  %v49 = vunpack.c.h.bf16 %v26
  %v50 = vunpack.c.l.bf16 %v27
  %v51 = vunpack.c.h.bf16 %v27
  %v52 = vunpack.c.l.bf16 %v28
  %v53 = vunpack.c.h.bf16 %v28
  %v54 = vunpack.c.l.bf16 %v29
  %v55 = vunpack.c.h.bf16 %v29
  %v56 = vunpack.c.l.bf16 %v30
  %v57 = vunpack.c.h.bf16 %v30
  %v58 = vunpack.c.l.bf16 %v31
  %v59 = vunpack.c.h.bf16 %v31
  %v60 = vunpack.c.l.bf16 %v32
  %v61 = vunpack.c.h.bf16 %v32
  %v62 = vunpack.c.l.bf16 %v33
  %v63 = vunpack.c.h.bf16 %v33
  %v64 = vunpack.c.l.bf16 %v34
  %v65 = vunpack.c.h.bf16 %v34
  %v66 = vunpack.c.l.bf16 %v35
  %v67 = vunpack.c.h.bf16 %v35
  %v68 = vld [vmem:[%s0] sm:$0xff]
  %v70 = vlaneseq
  %v71 = vshrl.u32 %v70, 7
  %v72 = vsub.s32 0, %v71
  %v73 = vrot.slane %v68, %v72
  %v74 = vlaneseq
  %v75 = vshrl.u32 %v74, 7
  %v76 = vsub.s32 1, %v75
  %v77 = vrot.slane %v68, %v76
  %v78 = vlaneseq
  %v79 = vshrl.u32 %v78, 7
  %v80 = vsub.s32 2, %v79
  %v81 = vrot.slane %v68, %v80
  %v82 = vlaneseq
  %v83 = vshrl.u32 %v82, 7
  %v84 = vsub.s32 3, %v83
  %v85 = vrot.slane %v68, %v84
  %v86 = vlaneseq
  %v87 = vshrl.u32 %v86, 7
  %v88 = vsub.s32 4, %v87
  %v89 = vrot.slane %v68, %v88
  %v90 = vlaneseq
  %v91 = vshrl.u32 %v90, 7
  %v92 = vsub.s32 5, %v91
  %v93 = vrot.slane %v68, %v92
  %v94 = vlaneseq
  %v95 = vshrl.u32 %v94, 7
  %v96 = vsub.s32 6, %v95
  %v97 = vrot.slane %v68, %v96
  %v98 = vlaneseq
  %v99 = vshrl.u32 %v98, 7
  %v100 = vsub.s32 7, %v99
  %v101 = vrot.slane %v68, %v100
  %v110 = vmul.f32 %v36, %v73
  %v111 = vmul.f32 %v37, %v77
  %v112 = vmul.f32 %v38, %v81
  %v113 = vmul.f32 %v39, %v85
  %v114 = vmul.f32 %v40, %v89
  %v115 = vmul.f32 %v41, %v93
  %v116 = vmul.f32 %v42, %v97
  %v117 = vmul.f32 %v43, %v101
  %v118 = vmul.f32 %v44, %v73
  %v119 = vmul.f32 %v45, %v77
  %v120 = vmul.f32 %v46, %v81
  %v121 = vmul.f32 %v47, %v85
  %v122 = vmul.f32 %v48, %v89
  %v123 = vmul.f32 %v49, %v93
  %v124 = vmul.f32 %v50, %v97
  %v125 = vmul.f32 %v51, %v101
  %v126 = vmul.f32 %v52, %v73
  %v127 = vmul.f32 %v53, %v77
  %v128 = vmul.f32 %v54, %v81
  %v129 = vmul.f32 %v55, %v85
  %v130 = vmul.f32 %v56, %v89
  %v131 = vmul.f32 %v57, %v93
  %v132 = vmul.f32 %v58, %v97
  %v133 = vmul.f32 %v59, %v101
  %v134 = vmul.f32 %v60, %v73
  %v135 = vmul.f32 %v61, %v77
  %v136 = vmul.f32 %v62, %v81
  %v137 = vmul.f32 %v63, %v85
  %v138 = vmul.f32 %v64, %v89
  %v139 = vmul.f32 %v65, %v93
  %v140 = vmul.f32 %v66, %v97
  %v141 = vmul.f32 %v67, %v101
  %vm142 = vcmp.gt.f32.partialorder %v110, 0.0
  %vm143 = vcmp.gt.f32.partialorder %v111, 0.0
  %vm144 = vcmp.gt.f32.partialorder %v112, 0.0
  %vm145 = vcmp.gt.f32.partialorder %v113, 0.0
  %vm146 = vcmp.gt.f32.partialorder %v114, 0.0
  %vm147 = vcmp.gt.f32.partialorder %v115, 0.0
  %vm148 = vcmp.gt.f32.partialorder %v116, 0.0
  %vm149 = vcmp.gt.f32.partialorder %v117, 0.0
  %vm150 = vcmp.gt.f32.partialorder %v118, 0.0
  %vm151 = vcmp.gt.f32.partialorder %v119, 0.0
  %vm152 = vcmp.gt.f32.partialorder %v120, 0.0
  %vm153 = vcmp.gt.f32.partialorder %v121, 0.0
  %vm154 = vcmp.gt.f32.partialorder %v122, 0.0
  %vm155 = vcmp.gt.f32.partialorder %v123, 0.0
  %vm156 = vcmp.gt.f32.partialorder %v124, 0.0
  %vm157 = vcmp.gt.f32.partialorder %v125, 0.0
  %vm158 = vcmp.gt.f32.partialorder %v126, 0.0
  %vm159 = vcmp.gt.f32.partialorder %v127, 0.0
  %vm160 = vcmp.gt.f32.partialorder %v128, 0.0
  %vm161 = vcmp.gt.f32.partialorder %v129, 0.0
  %vm162 = vcmp.gt.f32.partialorder %v130, 0.0
  %vm163 = vcmp.gt.f32.partialorder %v131, 0.0
  %vm164 = vcmp.gt.f32.partialorder %v132, 0.0
  %vm165 = vcmp.gt.f32.partialorder %v133, 0.0
  %vm166 = vcmp.gt.f32.partialorder %v134, 0.0
  %vm167 = vcmp.gt.f32.partialorder %v135, 0.0
  %vm168 = vcmp.gt.f32.partialorder %v136, 0.0
  %vm169 = vcmp.gt.f32.partialorder %v137, 0.0
  %vm170 = vcmp.gt.f32.partialorder %v138, 0.0
  %vm171 = vcmp.gt.f32.partialorder %v139, 0.0
  %vm172 = vcmp.gt.f32.partialorder %v140, 0.0
  %vm173 = vcmp.gt.f32.partialorder %v141, 0.0
  %v174 = vmul.f32 %v110, 0.2
  %v175 = vmul.f32 %v111, 0.2
  %v176 = vmul.f32 %v112, 0.2
  %v177 = vmul.f32 %v113, 0.2
  %v178 = vmul.f32 %v114, 0.2
  %v179 = vmul.f32 %v115, 0.2
  %v180 = vmul.f32 %v116, 0.2
  %v181 = vmul.f32 %v117, 0.2
  %v182 = vmul.f32 %v118, 0.2
  %v183 = vmul.f32 %v119, 0.2
  %v184 = vmul.f32 %v120, 0.2
  %v185 = vmul.f32 %v121, 0.2
  %v186 = vmul.f32 %v122, 0.2
  %v187 = vmul.f32 %v123, 0.2
  %v188 = vmul.f32 %v124, 0.2
  %v189 = vmul.f32 %v125, 0.2
  %v190 = vmul.f32 %v126, 0.2
  %v191 = vmul.f32 %v127, 0.2
  %v192 = vmul.f32 %v128, 0.2
  %v193 = vmul.f32 %v129, 0.2
  %v194 = vmul.f32 %v130, 0.2
  %v195 = vmul.f32 %v131, 0.2
  %v196 = vmul.f32 %v132, 0.2
  %v197 = vmul.f32 %v133, 0.2
  %v198 = vmul.f32 %v134, 0.2
  %v199 = vmul.f32 %v135, 0.2
  %v200 = vmul.f32 %v136, 0.2
  %v201 = vmul.f32 %v137, 0.2
  %v202 = vmul.f32 %v138, 0.2
  %v203 = vmul.f32 %v139, 0.2
  %v204 = vmul.f32 %v140, 0.2
  %v205 = vmul.f32 %v141, 0.2
  %v206 = vsel %vm142, %v110, %v174
  %v207 = vsel %vm143, %v111, %v175
  %v208 = vsel %vm144, %v112, %v176
  %v209 = vsel %vm145, %v113, %v177
  %v210 = vsel %vm146, %v114, %v178
  %v211 = vsel %vm147, %v115, %v179
  %v212 = vsel %vm148, %v116, %v180
  %v213 = vsel %vm149, %v117, %v181
  %v214 = vsel %vm150, %v118, %v182
  %v215 = vsel %vm151, %v119, %v183
  %v216 = vsel %vm152, %v120, %v184
  %v217 = vsel %vm153, %v121, %v185
  %v218 = vsel %vm154, %v122, %v186
  %v219 = vsel %vm155, %v123, %v187
  %v220 = vsel %vm156, %v124, %v188
  %v221 = vsel %vm157, %v125, %v189
  %v222 = vsel %vm158, %v126, %v190
  %v223 = vsel %vm159, %v127, %v191
  %v224 = vsel %vm160, %v128, %v192
  %v225 = vsel %vm161, %v129, %v193
  %v226 = vsel %vm162, %v130, %v194
  %v227 = vsel %vm163, %v131, %v195
  %v228 = vsel %vm164, %v132, %v196
  %v229 = vsel %vm165, %v133, %v197
  %v230 = vsel %vm166, %v134, %v198
  %v231 = vsel %vm167, %v135, %v199
  %v232 = vsel %vm168, %v136, %v200
  %v233 = vsel %vm169, %v137, %v201
  %v234 = vsel %vm170, %v138, %v202
  %v235 = vsel %vm171, %v139, %v203
  %v236 = vsel %vm172, %v140, %v204
  %v237 = vsel %vm173, %v141, %v205
  %v238 = vpack.c.bf16 %v214, %v206
  %v239 = vpack.c.bf16 %v215, %v207
  %v240 = vpack.c.bf16 %v216, %v208
  %v241 = vpack.c.bf16 %v217, %v209
  %v242 = vpack.c.bf16 %v218, %v210
  %v243 = vpack.c.bf16 %v219, %v211
  %v244 = vpack.c.bf16 %v220, %v212
  %v245 = vpack.c.bf16 %v221, %v213
  %v246 = vpack.c.bf16 %v230, %v222
  %v247 = vpack.c.bf16 %v231, %v223
  %v248 = vpack.c.bf16 %v232, %v224
  %v249 = vpack.c.bf16 %v233, %v225
  %v250 = vpack.c.bf16 %v234, %v226
  %v251 = vpack.c.bf16 %v235, %v227
  %v252 = vpack.c.bf16 %v236, %v228
  %v253 = vpack.c.bf16 %v237, %v229
  %v254 = vld [vmem:[%s2] sm:$0xf]
  %v255 = vld [vmem:[%s2 + $0x4] sm:$0xf]
  %v256 = vld [vmem:[%s2 + $0x8] sm:$0xf]
  %v257 = vld [vmem:[%s2 + $0xc] sm:$0xf]
  %v258 = vld [vmem:[%s2 + $0x10] sm:$0xf]
  %v259 = vld [vmem:[%s2 + $0x14] sm:$0xf]
  %v260 = vld [vmem:[%s2 + $0x18] sm:$0xf]
  %v261 = vld [vmem:[%s2 + $0x1c] sm:$0xf]
  %v262 = vld [vmem:[%s2 + $0x20] sm:$0xf]
  %v263 = vld [vmem:[%s2 + $0x24] sm:$0xf]
  %v264 = vld [vmem:[%s2 + $0x28] sm:$0xf]
  %v265 = vld [vmem:[%s2 + $0x2c] sm:$0xf]
  %v266 = vld [vmem:[%s2 + $0x30] sm:$0xf]
  %v267 = vld [vmem:[%s2 + $0x34] sm:$0xf]
  %v268 = vld [vmem:[%s2 + $0x38] sm:$0xf]
  %v269 = vld [vmem:[%s2 + $0x3c] sm:$0xf]
  %v270 = vld [vmem:[%s2 + $0x40] sm:$0xf]
  %v271 = vld [vmem:[%s2 + $0x44] sm:$0xf]
  %v272 = vld [vmem:[%s2 + $0x48] sm:$0xf]
  %v273 = vld [vmem:[%s2 + $0x4c] sm:$0xf]
  %v274 = vld [vmem:[%s2 + $0x50] sm:$0xf]
  %v275 = vld [vmem:[%s2 + $0x54] sm:$0xf]
  %v276 = vld [vmem:[%s2 + $0x58] sm:$0xf]
  %v277 = vld [vmem:[%s2 + $0x5c] sm:$0xf]
  %v278 = vld [vmem:[%s2 + $0x60] sm:$0xf]
  %v279 = vld [vmem:[%s2 + $0x64] sm:$0xf]
  %v280 = vld [vmem:[%s2 + $0x68] sm:$0xf]
  %v281 = vld [vmem:[%s2 + $0x6c] sm:$0xf]
  %v282 = vld [vmem:[%s2 + $0x70] sm:$0xf]
  %v283 = vld [vmem:[%s2 + $0x74] sm:$0xf]
  %v284 = vld [vmem:[%s2 + $0x78] sm:$0xf]
  %v285 = vld [vmem:[%s2 + $0x7c] sm:$0xf]
  %v286 = vld [vmem:[%s2 + $0x80] sm:$0xf]
  %v287 = vld [vmem:[%s2 + $0x84] sm:$0xf]
  %v288 = vld [vmem:[%s2 + $0x88] sm:$0xf]
  %v289 = vld [vmem:[%s2 + $0x8c] sm:$0xf]
  %v290 = vld [vmem:[%s2 + $0x90] sm:$0xf]
  %v291 = vld [vmem:[%s2 + $0x94] sm:$0xf]
  %v292 = vld [vmem:[%s2 + $0x98] sm:$0xf]
  %v293 = vld [vmem:[%s2 + $0x9c] sm:$0xf]
  %v294 = vld [vmem:[%s2 + $0xa0] sm:$0xf]
  %v295 = vld [vmem:[%s2 + $0xa4] sm:$0xf]
  %v296 = vld [vmem:[%s2 + $0xa8] sm:$0xf]
  %v297 = vld [vmem:[%s2 + $0xac] sm:$0xf]
  %v298 = vld [vmem:[%s2 + $0xb0] sm:$0xf]
  %v299 = vld [vmem:[%s2 + $0xb4] sm:$0xf]
  %v300 = vld [vmem:[%s2 + $0xb8] sm:$0xf]
  %v301 = vld [vmem:[%s2 + $0xbc] sm:$0xf]
  %v302 = vld [vmem:[%s2 + $0xc0] sm:$0xf]
  %v303 = vld [vmem:[%s2 + $0xc4] sm:$0xf]
  %v304 = vld [vmem:[%s2 + $0xc8] sm:$0xf]
  %v305 = vld [vmem:[%s2 + $0xcc] sm:$0xf]
  %v306 = vld [vmem:[%s2 + $0xd0] sm:$0xf]
  %v307 = vld [vmem:[%s2 + $0xd4] sm:$0xf]
  %v308 = vld [vmem:[%s2 + $0xd8] sm:$0xf]
  %v309 = vld [vmem:[%s2 + $0xdc] sm:$0xf]
  %v310 = vld [vmem:[%s2 + $0xe0] sm:$0xf]
  %v311 = vld [vmem:[%s2 + $0xe4] sm:$0xf]
  %v312 = vld [vmem:[%s2 + $0xe8] sm:$0xf]
  %v313 = vld [vmem:[%s2 + $0xec] sm:$0xf]
  %v314 = vld [vmem:[%s2 + $0xf0] sm:$0xf]
  %v315 = vld [vmem:[%s2 + $0xf4] sm:$0xf]
  %v316 = vld [vmem:[%s2 + $0xf8] sm:$0xf]
  %v317 = vld [vmem:[%s2 + $0xfc] sm:$0xf]
  %v318 = vld [vmem:[%s2 + $0x100] sm:$0xf]
  %v319 = vld [vmem:[%s2 + $0x104] sm:$0xf]
  %v320 = vld [vmem:[%s2 + $0x108] sm:$0xf]
  %v321 = vld [vmem:[%s2 + $0x10c] sm:$0xf]
  %v322 = vld [vmem:[%s2 + $0x110] sm:$0xf]
  %v323 = vld [vmem:[%s2 + $0x114] sm:$0xf]
  %v324 = vld [vmem:[%s2 + $0x118] sm:$0xf]
  %v325 = vld [vmem:[%s2 + $0x11c] sm:$0xf]
  %v326 = vld [vmem:[%s2 + $0x120] sm:$0xf]
  %v327 = vld [vmem:[%s2 + $0x124] sm:$0xf]
  %v328 = vld [vmem:[%s2 + $0x128] sm:$0xf]
  %v329 = vld [vmem:[%s2 + $0x12c] sm:$0xf]
  %v330 = vld [vmem:[%s2 + $0x130] sm:$0xf]
  %v331 = vld [vmem:[%s2 + $0x134] sm:$0xf]
  %v332 = vld [vmem:[%s2 + $0x138] sm:$0xf]
  %v333 = vld [vmem:[%s2 + $0x13c] sm:$0xf]
  %v334 = vld [vmem:[%s2 + $0x140] sm:$0xf]
  %v335 = vld [vmem:[%s2 + $0x144] sm:$0xf]
  %v336 = vld [vmem:[%s2 + $0x148] sm:$0xf]
  %v337 = vld [vmem:[%s2 + $0x14c] sm:$0xf]
  %v338 = vld [vmem:[%s2 + $0x150] sm:$0xf]
  %v339 = vld [vmem:[%s2 + $0x154] sm:$0xf]
  %v340 = vld [vmem:[%s2 + $0x158] sm:$0xf]
  %v341 = vld [vmem:[%s2 + $0x15c] sm:$0xf]
  %v342 = vld [vmem:[%s2 + $0x160] sm:$0xf]
  %v343 = vld [vmem:[%s2 + $0x164] sm:$0xf]
  %v344 = vld [vmem:[%s2 + $0x168] sm:$0xf]
  %v345 = vld [vmem:[%s2 + $0x16c] sm:$0xf]
  %v346 = vld [vmem:[%s2 + $0x170] sm:$0xf]
  %v347 = vld [vmem:[%s2 + $0x174] sm:$0xf]
  %v348 = vld [vmem:[%s2 + $0x178] sm:$0xf]
  %v349 = vld [vmem:[%s2 + $0x17c] sm:$0xf]
  %v350 = vld [vmem:[%s2 + $0x180] sm:$0xf]
  %v351 = vld [vmem:[%s2 + $0x184] sm:$0xf]
  %v352 = vld [vmem:[%s2 + $0x188] sm:$0xf]
  %v353 = vld [vmem:[%s2 + $0x18c] sm:$0xf]
  %v354 = vld [vmem:[%s2 + $0x190] sm:$0xf]
  %v355 = vld [vmem:[%s2 + $0x194] sm:$0xf]
  %v356 = vld [vmem:[%s2 + $0x198] sm:$0xf]
  %v357 = vld [vmem:[%s2 + $0x19c] sm:$0xf]
  %v358 = vld [vmem:[%s2 + $0x1a0] sm:$0xf]
  %v359 = vld [vmem:[%s2 + $0x1a4] sm:$0xf]
  %v360 = vld [vmem:[%s2 + $0x1a8] sm:$0xf]
  %v361 = vld [vmem:[%s2 + $0x1ac] sm:$0xf]
  %v362 = vld [vmem:[%s2 + $0x1b0] sm:$0xf]
  %v363 = vld [vmem:[%s2 + $0x1b4] sm:$0xf]
  %v364 = vld [vmem:[%s2 + $0x1b8] sm:$0xf]
  %v365 = vld [vmem:[%s2 + $0x1bc] sm:$0xf]
  %v366 = vld [vmem:[%s2 + $0x1c0] sm:$0xf]
  %v367 = vld [vmem:[%s2 + $0x1c4] sm:$0xf]
  %v368 = vld [vmem:[%s2 + $0x1c8] sm:$0xf]
  %v369 = vld [vmem:[%s2 + $0x1cc] sm:$0xf]
  %v370 = vld [vmem:[%s2 + $0x1d0] sm:$0xf]
  %v371 = vld [vmem:[%s2 + $0x1d4] sm:$0xf]
  %v372 = vld [vmem:[%s2 + $0x1d8] sm:$0xf]
  %v373 = vld [vmem:[%s2 + $0x1dc] sm:$0xf]
  %v374 = vld [vmem:[%s2 + $0x1e0] sm:$0xf]
  %v375 = vld [vmem:[%s2 + $0x1e4] sm:$0xf]
  %v376 = vld [vmem:[%s2 + $0x1e8] sm:$0xf]
  %v377 = vld [vmem:[%s2 + $0x1ec] sm:$0xf]
  %v378 = vld [vmem:[%s2 + $0x1f0] sm:$0xf]
  %v379 = vld [vmem:[%s2 + $0x1f4] sm:$0xf]
  %v380 = vld [vmem:[%s2 + $0x1f8] sm:$0xf]
  %v381 = vld [vmem:[%s2 + $0x1fc] sm:$0xf]
  %v382 = vld [vmem:[%s3] sm:$0x1]
  %v384 = vlaneseq
  %v385 = vshrl.u32 %v384, 7
  %v386 = vsub.s32 0, %v385
  %v387 = vrot.slane %v382, %v386
  %v517 = vunpack.c.l.b16 %v254
  %v518 = vunpack.c.l.b16 %v255
  %v519 = vunpack.c.l.b16 %v256
  %v520 = vunpack.c.l.b16 %v257
  %v521 = vunpack.c.l.b16 %v258
  %v522 = vunpack.c.l.b16 %v259
  %v523 = vunpack.c.l.b16 %v260
  %v524 = vunpack.c.l.b16 %v261
  %v525 = vunpack.c.l.b16 %v262
  %v526 = vunpack.c.l.b16 %v263
  %v527 = vunpack.c.l.b16 %v264
  %v528 = vunpack.c.l.b16 %v265
  %v529 = vunpack.c.l.b16 %v266
  %v530 = vunpack.c.l.b16 %v267
  %v531 = vunpack.c.l.b16 %v268
  %v532 = vunpack.c.l.b16 %v269
  %v533 = vunpack.c.l.b16 %v270
  %v534 = vunpack.c.l.b16 %v271
  %v535 = vunpack.c.l.b16 %v272
  %v536 = vunpack.c.l.b16 %v273
  %v537 = vunpack.c.l.b16 %v274
  %v538 = vunpack.c.l.b16 %v275
  %v539 = vunpack.c.l.b16 %v276
  %v540 = vunpack.c.l.b16 %v277
  %v541 = vunpack.c.l.b16 %v278
  %v542 = vunpack.c.l.b16 %v279
  %v543 = vunpack.c.l.b16 %v280
  %v544 = vunpack.c.l.b16 %v281
  %v545 = vunpack.c.l.b16 %v282
  %v546 = vunpack.c.l.b16 %v283
  %v547 = vunpack.c.l.b16 %v284
  %v548 = vunpack.c.l.b16 %v285
  %v549 = vunpack.c.l.b16 %v286
  %v550 = vunpack.c.l.b16 %v287
  %v551 = vunpack.c.l.b16 %v288
  %v552 = vunpack.c.l.b16 %v289
  %v553 = vunpack.c.l.b16 %v290
  %v554 = vunpack.c.l.b16 %v291
  %v555 = vunpack.c.l.b16 %v292
  %v556 = vunpack.c.l.b16 %v293
  %v557 = vunpack.c.l.b16 %v294
  %v558 = vunpack.c.l.b16 %v295
  %v559 = vunpack.c.l.b16 %v296
  %v560 = vunpack.c.l.b16 %v297
  %v561 = vunpack.c.l.b16 %v298
  %v562 = vunpack.c.l.b16 %v299
  %v563 = vunpack.c.l.b16 %v300
  %v564 = vunpack.c.l.b16 %v301
  %v565 = vunpack.c.l.b16 %v302
  %v566 = vunpack.c.l.b16 %v303
  %v567 = vunpack.c.l.b16 %v304
  %v568 = vunpack.c.l.b16 %v305
  %v569 = vunpack.c.l.b16 %v306
  %v570 = vunpack.c.l.b16 %v307
  %v571 = vunpack.c.l.b16 %v308
  %v572 = vunpack.c.l.b16 %v309
  %v573 = vunpack.c.l.b16 %v310
  %v574 = vunpack.c.l.b16 %v311
  %v575 = vunpack.c.l.b16 %v312
  %v576 = vunpack.c.l.b16 %v313
  %v577 = vunpack.c.l.b16 %v314
  %v578 = vunpack.c.l.b16 %v315
  %v579 = vunpack.c.l.b16 %v316
  %v580 = vunpack.c.l.b16 %v317
  %v581 = vunpack.c.l.b16 %v318
  %v582 = vunpack.c.l.b16 %v319
  %v583 = vunpack.c.l.b16 %v320
  %v584 = vunpack.c.l.b16 %v321
  %v585 = vunpack.c.l.b16 %v322
  %v586 = vunpack.c.l.b16 %v323
  %v587 = vunpack.c.l.b16 %v324
  %v588 = vunpack.c.l.b16 %v325
  %v589 = vunpack.c.l.b16 %v326
  %v590 = vunpack.c.l.b16 %v327
  %v591 = vunpack.c.l.b16 %v328
  %v592 = vunpack.c.l.b16 %v329
  %v593 = vunpack.c.l.b16 %v330
  %v594 = vunpack.c.l.b16 %v331
  %v595 = vunpack.c.l.b16 %v332
  %v596 = vunpack.c.l.b16 %v333
  %v597 = vunpack.c.l.b16 %v334
  %v598 = vunpack.c.l.b16 %v335
  %v599 = vunpack.c.l.b16 %v336
  %v600 = vunpack.c.l.b16 %v337
  %v601 = vunpack.c.l.b16 %v338
  %v602 = vunpack.c.l.b16 %v339
  %v603 = vunpack.c.l.b16 %v340
  %v604 = vunpack.c.l.b16 %v341
  %v605 = vunpack.c.l.b16 %v342
  %v606 = vunpack.c.l.b16 %v343
  %v607 = vunpack.c.l.b16 %v344
  %v608 = vunpack.c.l.b16 %v345
  %v609 = vunpack.c.l.b16 %v346
  %v610 = vunpack.c.l.b16 %v347
  %v611 = vunpack.c.l.b16 %v348
  %v612 = vunpack.c.l.b16 %v349
  %v613 = vunpack.c.l.b16 %v350
  %v614 = vunpack.c.l.b16 %v351
  %v615 = vunpack.c.l.b16 %v352
  %v616 = vunpack.c.l.b16 %v353
  %v617 = vunpack.c.l.b16 %v354
  %v618 = vunpack.c.l.b16 %v355
  %v619 = vunpack.c.l.b16 %v356
  %v620 = vunpack.c.l.b16 %v357
  %v621 = vunpack.c.l.b16 %v358
  %v622 = vunpack.c.l.b16 %v359
  %v623 = vunpack.c.l.b16 %v360
  %v624 = vunpack.c.l.b16 %v361
  %v625 = vunpack.c.l.b16 %v362
  %v626 = vunpack.c.l.b16 %v363
  %v627 = vunpack.c.l.b16 %v364
  %v628 = vunpack.c.l.b16 %v365
  %v629 = vunpack.c.l.b16 %v366
  %v630 = vunpack.c.l.b16 %v367
  %v631 = vunpack.c.l.b16 %v368
  %v632 = vunpack.c.l.b16 %v369
  %v633 = vunpack.c.l.b16 %v370
  %v634 = vunpack.c.l.b16 %v371
  %v635 = vunpack.c.l.b16 %v372
  %v636 = vunpack.c.l.b16 %v373
  %v637 = vunpack.c.l.b16 %v374
  %v638 = vunpack.c.l.b16 %v375
  %v639 = vunpack.c.l.b16 %v376
  %v640 = vunpack.c.l.b16 %v377
  %v641 = vunpack.c.l.b16 %v378
  %v642 = vunpack.c.l.b16 %v379
  %v643 = vunpack.c.l.b16 %v380
  %v644 = vunpack.c.l.b16 %v381
  %v645 = vpack.c.b16 %v518, %v517
  %v646 = vpack.c.b16 %v520, %v519
  %v647 = vpack.c.b16 %v522, %v521
  %v648 = vpack.c.b16 %v524, %v523
  %v649 = vpack.c.b16 %v526, %v525
  %v650 = vpack.c.b16 %v528, %v527
  %v651 = vpack.c.b16 %v530, %v529
  %v652 = vpack.c.b16 %v532, %v531
  %v653 = vpack.c.b16 %v534, %v533
  %v654 = vpack.c.b16 %v536, %v535
  %v655 = vpack.c.b16 %v538, %v537
  %v656 = vpack.c.b16 %v540, %v539
  %v657 = vpack.c.b16 %v542, %v541
  %v658 = vpack.c.b16 %v544, %v543
  %v659 = vpack.c.b16 %v546, %v545
  %v660 = vpack.c.b16 %v548, %v547
  %v661 = vpack.c.b16 %v550, %v549
  %v662 = vpack.c.b16 %v552, %v551
  %v663 = vpack.c.b16 %v554, %v553
  %v664 = vpack.c.b16 %v556, %v555
  %v665 = vpack.c.b16 %v558, %v557
  %v666 = vpack.c.b16 %v560, %v559
  %v667 = vpack.c.b16 %v562, %v561
  %v668 = vpack.c.b16 %v564, %v563
  %v669 = vpack.c.b16 %v566, %v565
  %v670 = vpack.c.b16 %v568, %v567
  %v671 = vpack.c.b16 %v570, %v569
  %v672 = vpack.c.b16 %v572, %v571
  %v673 = vpack.c.b16 %v574, %v573
  %v674 = vpack.c.b16 %v576, %v575
  %v675 = vpack.c.b16 %v578, %v577
  %v676 = vpack.c.b16 %v580, %v579
  %v677 = vpack.c.b16 %v582, %v581
  %v678 = vpack.c.b16 %v584, %v583
  %v679 = vpack.c.b16 %v586, %v585
  %v680 = vpack.c.b16 %v588, %v587
  %v681 = vpack.c.b16 %v590, %v589
  %v682 = vpack.c.b16 %v592, %v591
  %v683 = vpack.c.b16 %v594, %v593
  %v684 = vpack.c.b16 %v596, %v595
  %v685 = vpack.c.b16 %v598, %v597
  %v686 = vpack.c.b16 %v600, %v599
  %v687 = vpack.c.b16 %v602, %v601
  %v688 = vpack.c.b16 %v604, %v603
  %v689 = vpack.c.b16 %v606, %v605
  %v690 = vpack.c.b16 %v608, %v607
  %v691 = vpack.c.b16 %v610, %v609
  %v692 = vpack.c.b16 %v612, %v611
  %v693 = vpack.c.b16 %v614, %v613
  %v694 = vpack.c.b16 %v616, %v615
  %v695 = vpack.c.b16 %v618, %v617
  %v696 = vpack.c.b16 %v620, %v619
  %v697 = vpack.c.b16 %v622, %v621
  %v698 = vpack.c.b16 %v624, %v623
  %v699 = vpack.c.b16 %v626, %v625
  %v700 = vpack.c.b16 %v628, %v627
  %v701 = vpack.c.b16 %v630, %v629
  %v702 = vpack.c.b16 %v632, %v631
  %v703 = vpack.c.b16 %v634, %v633
  %v704 = vpack.c.b16 %v636, %v635
  %v705 = vpack.c.b16 %v638, %v637
  %v706 = vpack.c.b16 %v640, %v639
  %v707 = vpack.c.b16 %v642, %v641
  %v708 = vpack.c.b16 %v644, %v643
  %773 = vmatprep.subr.bf16.mxu0 0
  %774 = vmatpush1.bf16.msra.mxu0 %v652
  %775 = vmatprep.subr.bf16.mxu0 0
  %776 = vmatpush1.bf16.msra.mxu0 %v651
  %777 = vmatprep.subr.bf16.mxu0 0
  %778 = vmatpush1.bf16.msra.mxu0 %v650
  %779 = vmatprep.subr.bf16.mxu0 0
  %780 = vmatpush1.bf16.msra.mxu0 %v649
  %781 = vmatprep.subr.bf16.mxu0 0
  %782 = vmatpush1.bf16.msra.mxu0 %v648
  %783 = vmatprep.subr.bf16.mxu0 0
  %784 = vmatpush1.bf16.msra.mxu0 %v647
  %785 = vmatprep.subr.bf16.mxu0 0
  %786 = vmatpush1.bf16.msra.mxu0 %v646
  %787 = vmatprep.subr.bf16.mxu0 0
  %788 = vmatpush1.bf16.msra.mxu0 %v645
  %789 = vmatprep.subr.bf16.mxu0 0
  %790 = vmatpush2.bf16.msra.mxu0 %v660
  %791 = vmatprep.subr.bf16.mxu0 0
  %792 = vmatpush2.bf16.msra.mxu0 %v659
  %793 = vmatprep.subr.bf16.mxu0 0
  %794 = vmatpush2.bf16.msra.mxu0 %v658
  %795 = vmatprep.subr.bf16.mxu0 0
  %796 = vmatpush2.bf16.msra.mxu0 %v657
  %797 = vmatprep.subr.bf16.mxu0 0
  %798 = vmatpush2.bf16.msra.mxu0 %v656
  %799 = vmatprep.subr.bf16.mxu0 0
  %800 = vmatpush2.bf16.msra.mxu0 %v655
  %801 = vmatprep.subr.bf16.mxu0 0
  %802 = vmatpush2.bf16.msra.mxu0 %v654
  %803 = vmatprep.subr.bf16.mxu0 0
  %804 = vmatpush2.bf16.msra.mxu0 %v653
  %805 = vmatprep.mubr.bf16.mxu0 %v239
  %806 = vmatmul.mubr.bf16.gmra.mxu0 %v238
  %v807 = vpop.f32.mrf.mxu0
  %v808 = vadd.f32 %v387, %v807
  %v809 = vpop.f32.mrf.mxu0
  %v810 = vpop.f32.mrf.mxu0
  %v811 = vadd.f32 %v387, %v810
  %v812 = vpop.f32.mrf.mxu0
  %813 = vmatprep.mubr.bf16.mxu0 %v247
  %814 = vmatmul.mubr.bf16.gmra.mxu0 %v246
  %v815 = vpop.f32.mrf.mxu0
  %v816 = vadd.f32 %v387, %v815
  %v817 = vpop.f32.mrf.mxu0
  %v818 = vpop.f32.mrf.mxu0
  %v819 = vadd.f32 %v387, %v818
  %v820 = vpop.f32.mrf.mxu0
  %821 = vdwg.mxu0
  %822 = vmatprep.subr.bf16.mxu0 0
  %823 = vmatpush1.bf16.msra.mxu0 %v668
  %824 = vmatprep.subr.bf16.mxu0 0
  %825 = vmatpush1.bf16.msra.mxu0 %v667
  %826 = vmatprep.subr.bf16.mxu0 0
  %827 = vmatpush1.bf16.msra.mxu0 %v666
  %828 = vmatprep.subr.bf16.mxu0 0
  %829 = vmatpush1.bf16.msra.mxu0 %v665
  %830 = vmatprep.subr.bf16.mxu0 0
  %831 = vmatpush1.bf16.msra.mxu0 %v664
  %832 = vmatprep.subr.bf16.mxu0 0
  %833 = vmatpush1.bf16.msra.mxu0 %v663
  %834 = vmatprep.subr.bf16.mxu0 0
  %835 = vmatpush1.bf16.msra.mxu0 %v662
  %836 = vmatprep.subr.bf16.mxu0 0
  %837 = vmatpush1.bf16.msra.mxu0 %v661
  %838 = vmatprep.subr.bf16.mxu0 0
  %839 = vmatpush2.bf16.msra.mxu0 %v676
  %840 = vmatprep.subr.bf16.mxu0 0
  %841 = vmatpush2.bf16.msra.mxu0 %v675
  %842 = vmatprep.subr.bf16.mxu0 0
  %843 = vmatpush2.bf16.msra.mxu0 %v674
  %844 = vmatprep.subr.bf16.mxu0 0
  %845 = vmatpush2.bf16.msra.mxu0 %v673
  %846 = vmatprep.subr.bf16.mxu0 0
  %847 = vmatpush2.bf16.msra.mxu0 %v672
  %848 = vmatprep.subr.bf16.mxu0 0
  %849 = vmatpush2.bf16.msra.mxu0 %v671
  %850 = vmatprep.subr.bf16.mxu0 0
  %851 = vmatpush2.bf16.msra.mxu0 %v670
  %852 = vmatprep.subr.bf16.mxu0 0
  %853 = vmatpush2.bf16.msra.mxu0 %v669
  %854 = vmatprep.mubr.bf16.mxu0 %v241
  %855 = vmatmul.mubr.bf16.gmra.mxu0 %v240
  %v856 = vpop.f32.mrf.mxu0
  %v857 = vadd.f32 %v808, %v856
  %v858 = vpop.f32.mrf.mxu0
  %v859 = vpop.f32.mrf.mxu0
  %v860 = vadd.f32 %v811, %v859
  %v861 = vpop.f32.mrf.mxu0
  %862 = vmatprep.mubr.bf16.mxu0 %v249
  %863 = vmatmul.mubr.bf16.gmra.mxu0 %v248
  %v864 = vpop.f32.mrf.mxu0
  %v865 = vadd.f32 %v816, %v864
  %v866 = vpop.f32.mrf.mxu0
  %v867 = vpop.f32.mrf.mxu0
  %v868 = vadd.f32 %v819, %v867
  %v869 = vpop.f32.mrf.mxu0
  %870 = vdwg.mxu0
  %871 = vmatprep.subr.bf16.mxu0 0
  %872 = vmatpush1.bf16.msra.mxu0 %v684
  %873 = vmatprep.subr.bf16.mxu0 0
  %874 = vmatpush1.bf16.msra.mxu0 %v683
  %875 = vmatprep.subr.bf16.mxu0 0
  %876 = vmatpush1.bf16.msra.mxu0 %v682
  %877 = vmatprep.subr.bf16.mxu0 0
  %878 = vmatpush1.bf16.msra.mxu0 %v681
  %879 = vmatprep.subr.bf16.mxu0 0
  %880 = vmatpush1.bf16.msra.mxu0 %v680
  %881 = vmatprep.subr.bf16.mxu0 0
  %882 = vmatpush1.bf16.msra.mxu0 %v679
  %883 = vmatprep.subr.bf16.mxu0 0
  %884 = vmatpush1.bf16.msra.mxu0 %v678
  %885 = vmatprep.subr.bf16.mxu0 0
  %886 = vmatpush1.bf16.msra.mxu0 %v677
  %887 = vmatprep.subr.bf16.mxu0 0
  %888 = vmatpush2.bf16.msra.mxu0 %v692
  %889 = vmatprep.subr.bf16.mxu0 0
  %890 = vmatpush2.bf16.msra.mxu0 %v691
  %891 = vmatprep.subr.bf16.mxu0 0
  %892 = vmatpush2.bf16.msra.mxu0 %v690
  %893 = vmatprep.subr.bf16.mxu0 0
  %894 = vmatpush2.bf16.msra.mxu0 %v689
  %895 = vmatprep.subr.bf16.mxu0 0
  %896 = vmatpush2.bf16.msra.mxu0 %v688
  %897 = vmatprep.subr.bf16.mxu0 0
  %898 = vmatpush2.bf16.msra.mxu0 %v687
  %899 = vmatprep.subr.bf16.mxu0 0
  %900 = vmatpush2.bf16.msra.mxu0 %v686
  %901 = vmatprep.subr.bf16.mxu0 0
  %902 = vmatpush2.bf16.msra.mxu0 %v685
  %903 = vmatprep.mubr.bf16.mxu0 %v243
  %904 = vmatmul.mubr.bf16.gmra.mxu0 %v242
  %v905 = vpop.f32.mrf.mxu0
  %v906 = vadd.f32 %v857, %v905
  %v907 = vpop.f32.mrf.mxu0
  %v908 = vpop.f32.mrf.mxu0
  %v909 = vadd.f32 %v860, %v908
  %v910 = vpop.f32.mrf.mxu0
  %911 = vmatprep.mubr.bf16.mxu0 %v251
  %912 = vmatmul.mubr.bf16.gmra.mxu0 %v250
  %v913 = vpop.f32.mrf.mxu0
  %v914 = vadd.f32 %v865, %v913
  %v915 = vpop.f32.mrf.mxu0
  %v916 = vpop.f32.mrf.mxu0
  %v917 = vadd.f32 %v868, %v916
  %v918 = vpop.f32.mrf.mxu0
  %919 = vdwg.mxu0
  %920 = vmatprep.subr.bf16.mxu0 0
  %921 = vmatpush1.bf16.msra.mxu0 %v700
  %922 = vmatprep.subr.bf16.mxu0 0
  %923 = vmatpush1.bf16.msra.mxu0 %v699
  %924 = vmatprep.subr.bf16.mxu0 0
  %925 = vmatpush1.bf16.msra.mxu0 %v698
  %926 = vmatprep.subr.bf16.mxu0 0
  %927 = vmatpush1.bf16.msra.mxu0 %v697
  %928 = vmatprep.subr.bf16.mxu0 0
  %929 = vmatpush1.bf16.msra.mxu0 %v696
  %930 = vmatprep.subr.bf16.mxu0 0
  %931 = vmatpush1.bf16.msra.mxu0 %v695
  %932 = vmatprep.subr.bf16.mxu0 0
  %933 = vmatpush1.bf16.msra.mxu0 %v694
  %934 = vmatprep.subr.bf16.mxu0 0
  %935 = vmatpush1.bf16.msra.mxu0 %v693
  %936 = vmatprep.subr.bf16.mxu0 0
  %937 = vmatpush2.bf16.msra.mxu0 %v708
  %938 = vmatprep.subr.bf16.mxu0 0
  %939 = vmatpush2.bf16.msra.mxu0 %v707
  %940 = vmatprep.subr.bf16.mxu0 0
  %941 = vmatpush2.bf16.msra.mxu0 %v706
  %942 = vmatprep.subr.bf16.mxu0 0
  %943 = vmatpush2.bf16.msra.mxu0 %v705
  %944 = vmatprep.subr.bf16.mxu0 0
  %945 = vmatpush2.bf16.msra.mxu0 %v704
  %946 = vmatprep.subr.bf16.mxu0 0
  %947 = vmatpush2.bf16.msra.mxu0 %v703
  %948 = vmatprep.subr.bf16.mxu0 0
  %949 = vmatpush2.bf16.msra.mxu0 %v702
  %950 = vmatprep.subr.bf16.mxu0 0
  %951 = vmatpush2.bf16.msra.mxu0 %v701
  %952 = vmatprep.mubr.bf16.mxu0 %v245
  %953 = vmatmul.mubr.bf16.gmra.mxu0 %v244
  %v954 = vpop.f32.mrf.mxu0
  %v955 = vadd.f32 %v906, %v954
  %v956 = vpop.f32.mrf.mxu0
  %v957 = vpop.f32.mrf.mxu0
  %v958 = vadd.f32 %v909, %v957
  %v959 = vpop.f32.mrf.mxu0
  %960 = vmatprep.mubr.bf16.mxu0 %v253
  %961 = vmatmul.mubr.bf16.gmra.mxu0 %v252
  %v962 = vpop.f32.mrf.mxu0
  %v963 = vadd.f32 %v914, %v962
  %v964 = vpop.f32.mrf.mxu0
  %v965 = vpop.f32.mrf.mxu0
  %v966 = vadd.f32 %v917, %v965
  %v967 = vpop.f32.mrf.mxu0
  %968 = vdwg.mxu0
  %v969 = vpack.c.bf16 %v958, %v955
  %v970 = vpack.c.bf16 %v966, %v963
  %v973 = vunpack.c.l.b16 %v969
  %v974 = vunpack.c.h.b16 %v969
  %v975 = vunpack.c.l.b16 %v970
  %v976 = vunpack.c.h.b16 %v970
  %v977 = vpack.c.b16 %v973, %v973
  %v978 = vpack.c.b16 %v974, %v974
  %v979 = vpack.c.b16 %v975, %v975
  %v980 = vpack.c.b16 %v976, %v976
  %985 = vst [vmem:[%s4] sm:$0xf] %v977
  %986 = vst [vmem:[%s4 + $0x4] sm:$0xf] %v978
  %987 = vst [vmem:[%s4 + $0x8] sm:$0xf] %v979
  %988 = vst [vmem:[%s4 + $0xc] sm:$0xf] %v980
  %v989 = vadd.f32 %v955, %v958
  %v990 = vadd.f32 %v989, %v963
  %v991 = vadd.f32 %v990, %v966
  %v992 = vrot.slane %v991, 4
  %v993 = vadd.f32 %v991, %v992
  %v994 = vrot.slane %v993, 2
  %v995 = vadd.f32 %v993, %v994
  %v996 = vrot.slane %v995, 1
  %v997 = vadd.f32 %v995, %v996
  %v998 = vmul.f32 %v955, %v955
  %v999 = vmul.f32 %v958, %v958
  %v1000 = vmul.f32 %v963, %v963
  %v1001 = vmul.f32 %v966, %v966
  %v1002 = vadd.f32 %v998, %v999
  %v1003 = vadd.f32 %v1002, %v1000
  %v1004 = vadd.f32 %v1003, %v1001
  %v1005 = vrot.slane %v1004, 4
  %v1006 = vadd.f32 %v1004, %v1005
  %v1007 = vrot.slane %v1006, 2
  %v1008 = vadd.f32 %v1006, %v1007
  %v1009 = vrot.slane %v1008, 1
  %v1010 = vadd.f32 %v1008, %v1009
  %1011 = vst [vmem:[%s5] sm:$0x1] %v997
  %1012 = vst [vmem:[%s5 + $0x1] sm:$0x1] %v1010
  // Predicated region
  $region18: #{_lambda_.8} parent=0 // pred_check
    _
  $region19: #{_lambda_.8} parent=0 // pred_check_branch
    %1014 = sbr.rel (0) target = $region21
  $region20: #{_lambda_.8} parent=0 // pred_region
    _
  $region21: #{_lambda_.8} parent=0 // pred_fallthru
    _
  // Predicated region
  $region22: #{_lambda_.8} parent=0 // pred_check
    _
  $region23: #{_lambda_.8} parent=0 // pred_check_branch
    %1016 = sbr.rel (0) target = $region25
  $region24: #{_lambda_.8} parent=0 // pred_region
    _
  $region25: #{_lambda_.8} parent=0 // pred_fallthru
    _
  // Predicated region
  $region26: #{_lambda_.8} parent=0 // pred_check
    _
  $region27: #{_lambda_.8} parent=0 // pred_check_branch
    %1018 = sbr.rel (0) target = $region29
  $region28: #{_lambda_.8} parent=0 // pred_region
    _
  $region29: #{_lambda_.8} parent=0 // pred_fallthru
    _
  // Predicated region
  $region30: #{_lambda_.8} parent=0 // pred_check
    _
  $region31: #{_lambda_.8} parent=0 // pred_check_branch
    %1020 = sbr.rel (0) target = $region33
  $region32: #{_lambda_.8} parent=0 // pred_region
    _
  $region33: #{_lambda_.8} parent=0 // pred_fallthru
    _

// kernel: _lambda_.9
$region0: #{_lambda_.9}
  #allocation0 [shape = 'u32[]', space=smem, size = 0x4, offset = 0x4, fixed_abs, tag = 'smem constant byte address 0x4 - core index']
  #allocation1 [shape = 'u32[144,128]{1,0:T(1,128)}', space=vmem, size = 0x12000, scoped, tag = 'internal scratch']
  %s0 = inlined_call_operand.vmem [shape: f32[1,2048], index: 0, kind: input, shape index: {}]
  %s1 = inlined_call_operand.vmem [shape: bf16[16,2048], index: 1, kind: input, shape index: {}]
  %s2 = inlined_call_operand.vmem [shape: bf16[2048,128], index: 2, kind: input, shape index: {}]
  %s3 = inlined_call_operand.vmem [shape: f32[1,128], index: 3, kind: input, shape index: {}]
  %s4 = inlined_call_operand.vmem [shape: f32[16,128], index: 4, kind: output, shape index: {}]
  %s5 = sld [smem:[#allocation0]]
  $region26: #{_lambda_.9} parent=0
    _
  %s7 = ssub.s32 1, %s5
  %s8 = scalar_select 0, %s7, %s5
  // Predicated region
  $region2: #{_lambda_.9} parent=0 // pred_check
    _
  $region3: #{_lambda_.9} parent=0 // pred_check_branch
    %10 = sbr.rel (0) target = $region5
  $region4: #{_lambda_.9} parent=0 // pred_region
    _
  $region5: #{_lambda_.9} parent=0 // pred_fallthru
    _
  // Predicated region
  $region6: #{_lambda_.9} parent=0 // pred_check
    _
  $region7: #{_lambda_.9} parent=0 // pred_check_branch
    %12 = sbr.rel (0) target = $region9
  $region8: #{_lambda_.9} parent=0 // pred_region
    _
  $region9: #{_lambda_.9} parent=0 // pred_fallthru
    _
  // Predicated region
  $region10: #{_lambda_.9} parent=0 // pred_check
    _
  $region11: #{_lambda_.9} parent=0 // pred_check_branch
    %14 = sbr.rel (0) target = $region13
  $region12: #{_lambda_.9} parent=0 // pred_region
    _
  $region13: #{_lambda_.9} parent=0 // pred_fallthru
    _
  // Predicated region
  $region14: #{_lambda_.9} parent=0 // pred_check
    _
  $region15: #{_lambda_.9} parent=0 // pred_check_branch
    %16 = sbr.rel (0) target = $region17
  $region16: #{_lambda_.9} parent=0 // pred_region
    _
  $region17: #{_lambda_.9} parent=0 // pred_fallthru
    _
  %v18 = vld [vmem:[%s1] sm:$0xff]
  %v19 = vld [vmem:[%s1 + $0x8] sm:$0xff]
  %v20 = vld [vmem:[%s1 + $0x10] sm:$0xff]
  %v21 = vld [vmem:[%s1 + $0x18] sm:$0xff]
  %v22 = vld [vmem:[%s1 + $0x20] sm:$0xff]
  %v23 = vld [vmem:[%s1 + $0x28] sm:$0xff]
  %v24 = vld [vmem:[%s1 + $0x30] sm:$0xff]
  %v25 = vld [vmem:[%s1 + $0x38] sm:$0xff]
  %v26 = vld [vmem:[%s1 + $0x40] sm:$0xff]
  %v27 = vld [vmem:[%s1 + $0x48] sm:$0xff]
  %v28 = vld [vmem:[%s1 + $0x50] sm:$0xff]
  %v29 = vld [vmem:[%s1 + $0x58] sm:$0xff]
  %v30 = vld [vmem:[%s1 + $0x60] sm:$0xff]
  %v31 = vld [vmem:[%s1 + $0x68] sm:$0xff]
  %v32 = vld [vmem:[%s1 + $0x70] sm:$0xff]
  %v33 = vld [vmem:[%s1 + $0x78] sm:$0xff]
  %v34 = vunpack.c.l.bf16 %v18
  %v35 = vunpack.c.h.bf16 %v18
  %v36 = vunpack.c.l.bf16 %v19
  %v37 = vunpack.c.h.bf16 %v19
  %v38 = vunpack.c.l.bf16 %v20
  %v39 = vunpack.c.h.bf16 %v20
  %v40 = vunpack.c.l.bf16 %v21
  %v41 = vunpack.c.h.bf16 %v21
  %v42 = vunpack.c.l.bf16 %v22
  %v43 = vunpack.c.h.bf16 %v22
  %v44 = vunpack.c.l.bf16 %v23
  %v45 = vunpack.c.h.bf16 %v23
  %v46 = vunpack.c.l.bf16 %v24
  %v47 = vunpack.c.h.bf16 %v24
  %v48 = vunpack.c.l.bf16 %v25
  %v49 = vunpack.c.h.bf16 %v25
  %v50 = vunpack.c.l.bf16 %v26
  %v51 = vunpack.c.h.bf16 %v26
  %v52 = vunpack.c.l.bf16 %v27
  %v53 = vunpack.c.h.bf16 %v27
  %v54 = vunpack.c.l.bf16 %v28
  %v55 = vunpack.c.h.bf16 %v28
  %v56 = vunpack.c.l.bf16 %v29
  %v57 = vunpack.c.h.bf16 %v29
  %v58 = vunpack.c.l.bf16 %v30
  %v59 = vunpack.c.h.bf16 %v30
  %v60 = vunpack.c.l.bf16 %v31
  %v61 = vunpack.c.h.bf16 %v31
  %v62 = vunpack.c.l.bf16 %v32
  %v63 = vunpack.c.h.bf16 %v32
  %v64 = vunpack.c.l.bf16 %v33
  %v65 = vunpack.c.h.bf16 %v33
  %v66 = vld [vmem:[%s0] sm:$0xff]
  %v67 = vld [vmem:[%s0 + $0x8] sm:$0xff]
  %v70 = vlaneseq
  %v71 = vshrl.u32 %v70, 7
  %v72 = vsub.s32 0, %v71
  %v73 = vrot.slane %v66, %v72
  %v74 = vlaneseq
  %v75 = vshrl.u32 %v74, 7
  %v76 = vsub.s32 1, %v75
  %v77 = vrot.slane %v66, %v76
  %v78 = vlaneseq
  %v79 = vshrl.u32 %v78, 7
  %v80 = vsub.s32 2, %v79
  %v81 = vrot.slane %v66, %v80
  %v82 = vlaneseq
  %v83 = vshrl.u32 %v82, 7
  %v84 = vsub.s32 3, %v83
  %v85 = vrot.slane %v66, %v84
  %v86 = vlaneseq
  %v87 = vshrl.u32 %v86, 7
  %v88 = vsub.s32 4, %v87
  %v89 = vrot.slane %v66, %v88
  %v90 = vlaneseq
  %v91 = vshrl.u32 %v90, 7
  %v92 = vsub.s32 5, %v91
  %v93 = vrot.slane %v66, %v92
  %v94 = vlaneseq
  %v95 = vshrl.u32 %v94, 7
  %v96 = vsub.s32 6, %v95
  %v97 = vrot.slane %v66, %v96
  %v98 = vlaneseq
  %v99 = vshrl.u32 %v98, 7
  %v100 = vsub.s32 7, %v99
  %v101 = vrot.slane %v66, %v100
  %v102 = vlaneseq
  %v103 = vshrl.u32 %v102, 7
  %v104 = vsub.s32 0, %v103
  %v105 = vrot.slane %v67, %v104
  %v106 = vlaneseq
  %v107 = vshrl.u32 %v106, 7
  %v108 = vsub.s32 1, %v107
  %v109 = vrot.slane %v67, %v108
  %v110 = vlaneseq
  %v111 = vshrl.u32 %v110, 7
  %v112 = vsub.s32 2, %v111
  %v113 = vrot.slane %v67, %v112
  %v114 = vlaneseq
  %v115 = vshrl.u32 %v114, 7
  %v116 = vsub.s32 3, %v115
  %v117 = vrot.slane %v67, %v116
  %v118 = vlaneseq
  %v119 = vshrl.u32 %v118, 7
  %v120 = vsub.s32 4, %v119
  %v121 = vrot.slane %v67, %v120
  %v122 = vlaneseq
  %v123 = vshrl.u32 %v122, 7
  %v124 = vsub.s32 5, %v123
  %v125 = vrot.slane %v67, %v124
  %v126 = vlaneseq
  %v127 = vshrl.u32 %v126, 7
  %v128 = vsub.s32 6, %v127
  %v129 = vrot.slane %v67, %v128
  %v130 = vlaneseq
  %v131 = vshrl.u32 %v130, 7
  %v132 = vsub.s32 7, %v131
  %v133 = vrot.slane %v67, %v132
  %v150 = vmul.f32 %v34, %v73
  %v151 = vmul.f32 %v35, %v77
  %v152 = vmul.f32 %v36, %v81
  %v153 = vmul.f32 %v37, %v85
  %v154 = vmul.f32 %v38, %v89
  %v155 = vmul.f32 %v39, %v93
  %v156 = vmul.f32 %v40, %v97
  %v157 = vmul.f32 %v41, %v101
  %v158 = vmul.f32 %v42, %v105
  %v159 = vmul.f32 %v43, %v109
  %v160 = vmul.f32 %v44, %v113
  %v161 = vmul.f32 %v45, %v117
  %v162 = vmul.f32 %v46, %v121
  %v163 = vmul.f32 %v47, %v125
  %v164 = vmul.f32 %v48, %v129
  %v165 = vmul.f32 %v49, %v133
  %v166 = vmul.f32 %v50, %v73
  %v167 = vmul.f32 %v51, %v77
  %v168 = vmul.f32 %v52, %v81
  %v169 = vmul.f32 %v53, %v85
  %v170 = vmul.f32 %v54, %v89
  %v171 = vmul.f32 %v55, %v93
  %v172 = vmul.f32 %v56, %v97
  %v173 = vmul.f32 %v57, %v101
  %v174 = vmul.f32 %v58, %v105
  %v175 = vmul.f32 %v59, %v109
  %v176 = vmul.f32 %v60, %v113
  %v177 = vmul.f32 %v61, %v117
  %v178 = vmul.f32 %v62, %v121
  %v179 = vmul.f32 %v63, %v125
  %v180 = vmul.f32 %v64, %v129
  %v181 = vmul.f32 %v65, %v133
  %vm182 = vcmp.gt.f32.partialorder %v150, 0.0
  %vm183 = vcmp.gt.f32.partialorder %v151, 0.0
  %vm184 = vcmp.gt.f32.partialorder %v152, 0.0
  %vm185 = vcmp.gt.f32.partialorder %v153, 0.0
  %vm186 = vcmp.gt.f32.partialorder %v154, 0.0
  %vm187 = vcmp.gt.f32.partialorder %v155, 0.0
  %vm188 = vcmp.gt.f32.partialorder %v156, 0.0
  %vm189 = vcmp.gt.f32.partialorder %v157, 0.0
  %vm190 = vcmp.gt.f32.partialorder %v158, 0.0
  %vm191 = vcmp.gt.f32.partialorder %v159, 0.0
  %vm192 = vcmp.gt.f32.partialorder %v160, 0.0
  %vm193 = vcmp.gt.f32.partialorder %v161, 0.0
  %vm194 = vcmp.gt.f32.partialorder %v162, 0.0
  %vm195 = vcmp.gt.f32.partialorder %v163, 0.0
  %vm196 = vcmp.gt.f32.partialorder %v164, 0.0
  %vm197 = vcmp.gt.f32.partialorder %v165, 0.0
  %vm198 = vcmp.gt.f32.partialorder %v166, 0.0
  %vm199 = vcmp.gt.f32.partialorder %v167, 0.0
  %vm200 = vcmp.gt.f32.partialorder %v168, 0.0
  %vm201 = vcmp.gt.f32.partialorder %v169, 0.0
  %vm202 = vcmp.gt.f32.partialorder %v170, 0.0
  %vm203 = vcmp.gt.f32.partialorder %v171, 0.0
  %vm204 = vcmp.gt.f32.partialorder %v172, 0.0
  %vm205 = vcmp.gt.f32.partialorder %v173, 0.0
  %vm206 = vcmp.gt.f32.partialorder %v174, 0.0
  %vm207 = vcmp.gt.f32.partialorder %v175, 0.0
  %vm208 = vcmp.gt.f32.partialorder %v176, 0.0
  %vm209 = vcmp.gt.f32.partialorder %v177, 0.0
  %vm210 = vcmp.gt.f32.partialorder %v178, 0.0
  %vm211 = vcmp.gt.f32.partialorder %v179, 0.0
  %vm212 = vcmp.gt.f32.partialorder %v180, 0.0
  %vm213 = vcmp.gt.f32.partialorder %v181, 0.0
  %v214 = vmul.f32 %v150, 0.2
  %v215 = vmul.f32 %v151, 0.2
  %v216 = vmul.f32 %v152, 0.2
  %v217 = vmul.f32 %v153, 0.2
  %v218 = vmul.f32 %v154, 0.2
  %v219 = vmul.f32 %v155, 0.2
  %v220 = vmul.f32 %v156, 0.2
  %v221 = vmul.f32 %v157, 0.2
  %v222 = vmul.f32 %v158, 0.2
  %v223 = vmul.f32 %v159, 0.2
  %v224 = vmul.f32 %v160, 0.2
  %v225 = vmul.f32 %v161, 0.2
  %v226 = vmul.f32 %v162, 0.2
  %v227 = vmul.f32 %v163, 0.2
  %v228 = vmul.f32 %v164, 0.2
  %v229 = vmul.f32 %v165, 0.2
  %v230 = vmul.f32 %v166, 0.2
  %v231 = vmul.f32 %v167, 0.2
  %v232 = vmul.f32 %v168, 0.2
  %v233 = vmul.f32 %v169, 0.2
  %v234 = vmul.f32 %v170, 0.2
  %v235 = vmul.f32 %v171, 0.2
  %v236 = vmul.f32 %v172, 0.2
  %v237 = vmul.f32 %v173, 0.2
  %v238 = vmul.f32 %v174, 0.2
  %v239 = vmul.f32 %v175, 0.2
  %v240 = vmul.f32 %v176, 0.2
  %v241 = vmul.f32 %v177, 0.2
  %v242 = vmul.f32 %v178, 0.2
  %v243 = vmul.f32 %v179, 0.2
  %v244 = vmul.f32 %v180, 0.2
  %v245 = vmul.f32 %v181, 0.2
  %v246 = vsel %vm182, %v150, %v214
  %v247 = vsel %vm183, %v151, %v215
  %v248 = vsel %vm184, %v152, %v216
  %v249 = vsel %vm185, %v153, %v217
  %v250 = vsel %vm186, %v154, %v218
  %v251 = vsel %vm187, %v155, %v219
  %v252 = vsel %vm188, %v156, %v220
  %v253 = vsel %vm189, %v157, %v221
  %v254 = vsel %vm190, %v158, %v222
  %v255 = vsel %vm191, %v159, %v223
  %v256 = vsel %vm192, %v160, %v224
  %v257 = vsel %vm193, %v161, %v225
  %v258 = vsel %vm194, %v162, %v226
  %v259 = vsel %vm195, %v163, %v227
  %v260 = vsel %vm196, %v164, %v228
  %v261 = vsel %vm197, %v165, %v229
  %v262 = vsel %vm198, %v166, %v230
  %v263 = vsel %vm199, %v167, %v231
  %v264 = vsel %vm200, %v168, %v232
  %v265 = vsel %vm201, %v169, %v233
  %v266 = vsel %vm202, %v170, %v234
  %v267 = vsel %vm203, %v171, %v235
  %v268 = vsel %vm204, %v172, %v236
  %v269 = vsel %vm205, %v173, %v237
  %v270 = vsel %vm206, %v174, %v238
  %v271 = vsel %vm207, %v175, %v239
  %v272 = vsel %vm208, %v176, %v240
  %v273 = vsel %vm209, %v177, %v241
  %v274 = vsel %vm210, %v178, %v242
  %v275 = vsel %vm211, %v179, %v243
  %v276 = vsel %vm212, %v180, %v244
  %v277 = vsel %vm213, %v181, %v245
  %v278 = vpack.c.bf16 %v262, %v246
  %v279 = vpack.c.bf16 %v263, %v247
  %v280 = vpack.c.bf16 %v264, %v248
  %v281 = vpack.c.bf16 %v265, %v249
  %v282 = vpack.c.bf16 %v266, %v250
  %v283 = vpack.c.bf16 %v267, %v251
  %v284 = vpack.c.bf16 %v268, %v252
  %v285 = vpack.c.bf16 %v269, %v253
  %v286 = vpack.c.bf16 %v270, %v254
  %v287 = vpack.c.bf16 %v271, %v255
  %v288 = vpack.c.bf16 %v272, %v256
  %v289 = vpack.c.bf16 %v273, %v257
  %v290 = vpack.c.bf16 %v274, %v258
  %v291 = vpack.c.bf16 %v275, %v259
  %v292 = vpack.c.bf16 %v276, %v260
  %v293 = vpack.c.bf16 %v277, %v261
  %v294 = vld [vmem:[%s2] sm:$0xf]
  %v295 = vld [vmem:[%s2 + $0x4] sm:$0xf]
  %v296 = vld [vmem:[%s2 + $0x8] sm:$0xf]
  %v297 = vld [vmem:[%s2 + $0xc] sm:$0xf]
  %v298 = vld [vmem:[%s2 + $0x10] sm:$0xf]
  %v299 = vld [vmem:[%s2 + $0x14] sm:$0xf]
  %v300 = vld [vmem:[%s2 + $0x18] sm:$0xf]
  %v301 = vld [vmem:[%s2 + $0x1c] sm:$0xf]
  %v302 = vld [vmem:[%s2 + $0x20] sm:$0xf]
  %v303 = vld [vmem:[%s2 + $0x24] sm:$0xf]
  %v304 = vld [vmem:[%s2 + $0x28] sm:$0xf]
  %v305 = vld [vmem:[%s2 + $0x2c] sm:$0xf]
  %v306 = vld [vmem:[%s2 + $0x30] sm:$0xf]
  %v307 = vld [vmem:[%s2 + $0x34] sm:$0xf]
  %v308 = vld [vmem:[%s2 + $0x38] sm:$0xf]
  %v309 = vld [vmem:[%s2 + $0x3c] sm:$0xf]
  %v310 = vld [vmem:[%s2 + $0x40] sm:$0xf]
  %v311 = vld [vmem:[%s2 + $0x44] sm:$0xf]
  %v312 = vld [vmem:[%s2 + $0x48] sm:$0xf]
  %v313 = vld [vmem:[%s2 + $0x4c] sm:$0xf]
  %v314 = vld [vmem:[%s2 + $0x50] sm:$0xf]
  %v315 = vld [vmem:[%s2 + $0x54] sm:$0xf]
  %v316 = vld [vmem:[%s2 + $0x58] sm:$0xf]
  %v317 = vld [vmem:[%s2 + $0x5c] sm:$0xf]
  %v318 = vld [vmem:[%s2 + $0x60] sm:$0xf]
  %v319 = vld [vmem:[%s2 + $0x64] sm:$0xf]
  %v320 = vld [vmem:[%s2 + $0x68] sm:$0xf]
  %v321 = vld [vmem:[%s2 + $0x6c] sm:$0xf]
  %v322 = vld [vmem:[%s2 + $0x70] sm:$0xf]
  %v323 = vld [vmem:[%s2 + $0x74] sm:$0xf]
  %v324 = vld [vmem:[%s2 + $0x78] sm:$0xf]
  %v325 = vld [vmem:[%s2 + $0x7c] sm:$0xf]
  %v326 = vld [vmem:[%s2 + $0x80] sm:$0xf]
  %v327 = vld [vmem:[%s2 + $0x84] sm:$0xf]
  %v328 = vld [vmem:[%s2 + $0x88] sm:$0xf]
  %v329 = vld [vmem:[%s2 + $0x8c] sm:$0xf]
  %v330 = vld [vmem:[%s2 + $0x90] sm:$0xf]
  %v331 = vld [vmem:[%s2 + $0x94] sm:$0xf]
  %v332 = vld [vmem:[%s2 + $0x98] sm:$0xf]
  %v333 = vld [vmem:[%s2 + $0x9c] sm:$0xf]
  %v334 = vld [vmem:[%s2 + $0xa0] sm:$0xf]
  %v335 = vld [vmem:[%s2 + $0xa4] sm:$0xf]
  %v336 = vld [vmem:[%s2 + $0xa8] sm:$0xf]
  %v337 = vld [vmem:[%s2 + $0xac] sm:$0xf]
  %v338 = vld [vmem:[%s2 + $0xb0] sm:$0xf]
  %v339 = vld [vmem:[%s2 + $0xb4] sm:$0xf]
  %v340 = vld [vmem:[%s2 + $0xb8] sm:$0xf]
  %v341 = vld [vmem:[%s2 + $0xbc] sm:$0xf]
  %v342 = vld [vmem:[%s2 + $0xc0] sm:$0xf]
  %v343 = vld [vmem:[%s2 + $0xc4] sm:$0xf]
  %v344 = vld [vmem:[%s2 + $0xc8] sm:$0xf]
  %v345 = vld [vmem:[%s2 + $0xcc] sm:$0xf]
  %v346 = vld [vmem:[%s2 + $0xd0] sm:$0xf]
  %v347 = vld [vmem:[%s2 + $0xd4] sm:$0xf]
  %v348 = vld [vmem:[%s2 + $0xd8] sm:$0xf]
  %v349 = vld [vmem:[%s2 + $0xdc] sm:$0xf]
  %v350 = vld [vmem:[%s2 + $0xe0] sm:$0xf]
  %v351 = vld [vmem:[%s2 + $0xe4] sm:$0xf]
  %v352 = vld [vmem:[%s2 + $0xe8] sm:$0xf]
  %v353 = vld [vmem:[%s2 + $0xec] sm:$0xf]
  %v354 = vld [vmem:[%s2 + $0xf0] sm:$0xf]
  %v355 = vld [vmem:[%s2 + $0xf4] sm:$0xf]
  %v356 = vld [vmem:[%s2 + $0xf8] sm:$0xf]
  %v357 = vld [vmem:[%s2 + $0xfc] sm:$0xf]
  %v358 = vld [vmem:[%s2 + $0x100] sm:$0xf]
  %v359 = vld [vmem:[%s2 + $0x104] sm:$0xf]
  %v360 = vld [vmem:[%s2 + $0x108] sm:$0xf]
  %v361 = vld [vmem:[%s2 + $0x10c] sm:$0xf]
  %v362 = vld [vmem:[%s2 + $0x110] sm:$0xf]
  %v363 = vld [vmem:[%s2 + $0x114] sm:$0xf]
  %v364 = vld [vmem:[%s2 + $0x118] sm:$0xf]
  %v365 = vld [vmem:[%s2 + $0x11c] sm:$0xf]
  %v366 = vld [vmem:[%s2 + $0x120] sm:$0xf]
  %v367 = vld [vmem:[%s2 + $0x124] sm:$0xf]
  %v368 = vld [vmem:[%s2 + $0x128] sm:$0xf]
  %v369 = vld [vmem:[%s2 + $0x12c] sm:$0xf]
  %v370 = vld [vmem:[%s2 + $0x130] sm:$0xf]
  %v371 = vld [vmem:[%s2 + $0x134] sm:$0xf]
  %v372 = vld [vmem:[%s2 + $0x138] sm:$0xf]
  %v373 = vld [vmem:[%s2 + $0x13c] sm:$0xf]
  %v374 = vld [vmem:[%s2 + $0x140] sm:$0xf]
  %v375 = vld [vmem:[%s2 + $0x144] sm:$0xf]
  %v376 = vld [vmem:[%s2 + $0x148] sm:$0xf]
  %v377 = vld [vmem:[%s2 + $0x14c] sm:$0xf]
  %v378 = vld [vmem:[%s2 + $0x150] sm:$0xf]
  %v379 = vld [vmem:[%s2 + $0x154] sm:$0xf]
  %v380 = vld [vmem:[%s2 + $0x158] sm:$0xf]
  %v381 = vld [vmem:[%s2 + $0x15c] sm:$0xf]
  %v382 = vld [vmem:[%s2 + $0x160] sm:$0xf]
  %v383 = vld [vmem:[%s2 + $0x164] sm:$0xf]
  %v384 = vld [vmem:[%s2 + $0x168] sm:$0xf]
  %v385 = vld [vmem:[%s2 + $0x16c] sm:$0xf]
  %v386 = vld [vmem:[%s2 + $0x170] sm:$0xf]
  %v387 = vld [vmem:[%s2 + $0x174] sm:$0xf]
  %v388 = vld [vmem:[%s2 + $0x178] sm:$0xf]
  %v389 = vld [vmem:[%s2 + $0x17c] sm:$0xf]
  %v390 = vld [vmem:[%s2 + $0x180] sm:$0xf]
  %v391 = vld [vmem:[%s2 + $0x184] sm:$0xf]
  %v392 = vld [vmem:[%s2 + $0x188] sm:$0xf]
  %v393 = vld [vmem:[%s2 + $0x18c] sm:$0xf]
  %v394 = vld [vmem:[%s2 + $0x190] sm:$0xf]
  %v395 = vld [vmem:[%s2 + $0x194] sm:$0xf]
  %v396 = vld [vmem:[%s2 + $0x198] sm:$0xf]
  %v397 = vld [vmem:[%s2 + $0x19c] sm:$0xf]
  %v398 = vld [vmem:[%s2 + $0x1a0] sm:$0xf]
  %v399 = vld [vmem:[%s2 + $0x1a4] sm:$0xf]
  %v400 = vld [vmem:[%s2 + $0x1a8] sm:$0xf]
  %v401 = vld [vmem:[%s2 + $0x1ac] sm:$0xf]
  %v402 = vld [vmem:[%s2 + $0x1b0] sm:$0xf]
  %v403 = vld [vmem:[%s2 + $0x1b4] sm:$0xf]
  %v404 = vld [vmem:[%s2 + $0x1b8] sm:$0xf]
  %v405 = vld [vmem:[%s2 + $0x1bc] sm:$0xf]
  %v406 = vld [vmem:[%s2 + $0x1c0] sm:$0xf]
  %v407 = vld [vmem:[%s2 + $0x1c4] sm:$0xf]
  %v408 = vld [vmem:[%s2 + $0x1c8] sm:$0xf]
  %v409 = vld [vmem:[%s2 + $0x1cc] sm:$0xf]
  %v410 = vld [vmem:[%s2 + $0x1d0] sm:$0xf]
  %v411 = vld [vmem:[%s2 + $0x1d4] sm:$0xf]
  %v412 = vld [vmem:[%s2 + $0x1d8] sm:$0xf]
  %v413 = vld [vmem:[%s2 + $0x1dc] sm:$0xf]
  %v414 = vld [vmem:[%s2 + $0x1e0] sm:$0xf]
  %v415 = vld [vmem:[%s2 + $0x1e4] sm:$0xf]
  %v416 = vld [vmem:[%s2 + $0x1e8] sm:$0xf]
  %v417 = vld [vmem:[%s2 + $0x1ec] sm:$0xf]
  %v418 = vld [vmem:[%s2 + $0x1f0] sm:$0xf]
  %v419 = vld [vmem:[%s2 + $0x1f4] sm:$0xf]
  %v420 = vld [vmem:[%s2 + $0x1f8] sm:$0xf]
  %v421 = vld [vmem:[%s2 + $0x1fc] sm:$0xf]
  %v422 = vld [vmem:[%s2 + $0x200] sm:$0xf]
  %v423 = vld [vmem:[%s2 + $0x204] sm:$0xf]
  %v424 = vld [vmem:[%s2 + $0x208] sm:$0xf]
  %v425 = vld [vmem:[%s2 + $0x20c] sm:$0xf]
  %v426 = vld [vmem:[%s2 + $0x210] sm:$0xf]
  %v427 = vld [vmem:[%s2 + $0x214] sm:$0xf]
  %v428 = vld [vmem:[%s2 + $0x218] sm:$0xf]
  %v429 = vld [vmem:[%s2 + $0x21c] sm:$0xf]
  %v430 = vld [vmem:[%s2 + $0x220] sm:$0xf]
  %v431 = vld [vmem:[%s2 + $0x224] sm:$0xf]
  %v432 = vld [vmem:[%s2 + $0x228] sm:$0xf]
  %v433 = vld [vmem:[%s2 + $0x22c] sm:$0xf]
  %v434 = vld [vmem:[%s2 + $0x230] sm:$0xf]
  %v435 = vld [vmem:[%s2 + $0x234] sm:$0xf]
  %v436 = vld [vmem:[%s2 + $0x238] sm:$0xf]
  %v437 = vld [vmem:[%s2 + $0x23c] sm:$0xf]
  %v438 = vld [vmem:[%s2 + $0x240] sm:$0xf]
  %v439 = vld [vmem:[%s2 + $0x244] sm:$0xf]
  %v440 = vld [vmem:[%s2 + $0x248] sm:$0xf]
  %v441 = vld [vmem:[%s2 + $0x24c] sm:$0xf]
  %v442 = vld [vmem:[%s2 + $0x250] sm:$0xf]
  %v443 = vld [vmem:[%s2 + $0x254] sm:$0xf]
  %v444 = vld [vmem:[%s2 + $0x258] sm:$0xf]
  %v445 = vld [vmem:[%s2 + $0x25c] sm:$0xf]
  %v446 = vld [vmem:[%s2 + $0x260] sm:$0xf]
  %v447 = vld [vmem:[%s2 + $0x264] sm:$0xf]
  %v448 = vld [vmem:[%s2 + $0x268] sm:$0xf]
  %v449 = vld [vmem:[%s2 + $0x26c] sm:$0xf]
  %v450 = vld [vmem:[%s2 + $0x270] sm:$0xf]
  %v451 = vld [vmem:[%s2 + $0x274] sm:$0xf]
  %v452 = vld [vmem:[%s2 + $0x278] sm:$0xf]
  %v453 = vld [vmem:[%s2 + $0x27c] sm:$0xf]
  %v454 = vld [vmem:[%s2 + $0x280] sm:$0xf]
  %v455 = vld [vmem:[%s2 + $0x284] sm:$0xf]
  %v456 = vld [vmem:[%s2 + $0x288] sm:$0xf]
  %v457 = vld [vmem:[%s2 + $0x28c] sm:$0xf]
  %v458 = vld [vmem:[%s2 + $0x290] sm:$0xf]
  %v459 = vld [vmem:[%s2 + $0x294] sm:$0xf]
  %v460 = vld [vmem:[%s2 + $0x298] sm:$0xf]
  %v461 = vld [vmem:[%s2 + $0x29c] sm:$0xf]
  %v462 = vld [vmem:[%s2 + $0x2a0] sm:$0xf]
  %v463 = vld [vmem:[%s2 + $0x2a4] sm:$0xf]
  %v464 = vld [vmem:[%s2 + $0x2a8] sm:$0xf]
  %v465 = vld [vmem:[%s2 + $0x2ac] sm:$0xf]
  %v466 = vld [vmem:[%s2 + $0x2b0] sm:$0xf]
  %v467 = vld [vmem:[%s2 + $0x2b4] sm:$0xf]
  %v468 = vld [vmem:[%s2 + $0x2b8] sm:$0xf]
  %v469 = vld [vmem:[%s2 + $0x2bc] sm:$0xf]
  %v470 = vld [vmem:[%s2 + $0x2c0] sm:$0xf]
  %v471 = vld [vmem:[%s2 + $0x2c4] sm:$0xf]
  %v472 = vld [vmem:[%s2 + $0x2c8] sm:$0xf]
  %v473 = vld [vmem:[%s2 + $0x2cc] sm:$0xf]
  %v474 = vld [vmem:[%s2 + $0x2d0] sm:$0xf]
  %v475 = vld [vmem:[%s2 + $0x2d4] sm:$0xf]
  %v476 = vld [vmem:[%s2 + $0x2d8] sm:$0xf]
  %v477 = vld [vmem:[%s2 + $0x2dc] sm:$0xf]
  %v478 = vld [vmem:[%s2 + $0x2e0] sm:$0xf]
  %v479 = vld [vmem:[%s2 + $0x2e4] sm:$0xf]
  %v480 = vld [vmem:[%s2 + $0x2e8] sm:$0xf]
  %v481 = vld [vmem:[%s2 + $0x2ec] sm:$0xf]
  %v482 = vld [vmem:[%s2 + $0x2f0] sm:$0xf]
  %v483 = vld [vmem:[%s2 + $0x2f4] sm:$0xf]
  %v484 = vld [vmem:[%s2 + $0x2f8] sm:$0xf]
  %v485 = vld [vmem:[%s2 + $0x2fc] sm:$0xf]
  %v486 = vld [vmem:[%s2 + $0x300] sm:$0xf]
  %v487 = vld [vmem:[%s2 + $0x304] sm:$0xf]
  %v488 = vld [vmem:[%s2 + $0x308] sm:$0xf]
  %v489 = vld [vmem:[%s2 + $0x30c] sm:$0xf]
  %v490 = vld [vmem:[%s2 + $0x310] sm:$0xf]
  %v491 = vld [vmem:[%s2 + $0x314] sm:$0xf]
  %v492 = vld [vmem:[%s2 + $0x318] sm:$0xf]
  %v493 = vld [vmem:[%s2 + $0x31c] sm:$0xf]
  %v494 = vld [vmem:[%s2 + $0x320] sm:$0xf]
  %v495 = vld [vmem:[%s2 + $0x324] sm:$0xf]
  %v496 = vld [vmem:[%s2 + $0x328] sm:$0xf]
  %v497 = vld [vmem:[%s2 + $0x32c] sm:$0xf]
  %v498 = vld [vmem:[%s2 + $0x330] sm:$0xf]
  %v499 = vld [vmem:[%s2 + $0x334] sm:$0xf]
  %v500 = vld [vmem:[%s2 + $0x338] sm:$0xf]
  %v501 = vld [vmem:[%s2 + $0x33c] sm:$0xf]
  %v502 = vld [vmem:[%s2 + $0x340] sm:$0xf]
  %v503 = vld [vmem:[%s2 + $0x344] sm:$0xf]
  %v504 = vld [vmem:[%s2 + $0x348] sm:$0xf]
  %v505 = vld [vmem:[%s2 + $0x34c] sm:$0xf]
  %v506 = vld [vmem:[%s2 + $0x350] sm:$0xf]
  %v507 = vld [vmem:[%s2 + $0x354] sm:$0xf]
  %v508 = vld [vmem:[%s2 + $0x358] sm:$0xf]
  %v509 = vld [vmem:[%s2 + $0x35c] sm:$0xf]
  %v510 = vld [vmem:[%s2 + $0x360] sm:$0xf]
  %v511 = vld [vmem:[%s2 + $0x364] sm:$0xf]
  %v512 = vld [vmem:[%s2 + $0x368] sm:$0xf]
  %v513 = vld [vmem:[%s2 + $0x36c] sm:$0xf]
  %v514 = vld [vmem:[%s2 + $0x370] sm:$0xf]
  %v515 = vld [vmem:[%s2 + $0x374] sm:$0xf]
  %v516 = vld [vmem:[%s2 + $0x378] sm:$0xf]
  %v517 = vld [vmem:[%s2 + $0x37c] sm:$0xf]
  %v518 = vld [vmem:[%s2 + $0x380] sm:$0xf]
  %v519 = vld [vmem:[%s2 + $0x384] sm:$0xf]
  %v520 = vld [vmem:[%s2 + $0x388] sm:$0xf]
  %v521 = vld [vmem:[%s2 + $0x38c] sm:$0xf]
  %v522 = vld [vmem:[%s2 + $0x390] sm:$0xf]
  %v523 = vld [vmem:[%s2 + $0x394] sm:$0xf]
  %v524 = vld [vmem:[%s2 + $0x398] sm:$0xf]
  %v525 = vld [vmem:[%s2 + $0x39c] sm:$0xf]
  %v526 = vld [vmem:[%s2 + $0x3a0] sm:$0xf]
  %v527 = vld [vmem:[%s2 + $0x3a4] sm:$0xf]
  %v528 = vld [vmem:[%s2 + $0x3a8] sm:$0xf]
  %v529 = vld [vmem:[%s2 + $0x3ac] sm:$0xf]
  %v530 = vld [vmem:[%s2 + $0x3b0] sm:$0xf]
  %v531 = vld [vmem:[%s2 + $0x3b4] sm:$0xf]
  %v532 = vld [vmem:[%s2 + $0x3b8] sm:$0xf]
  %v533 = vld [vmem:[%s2 + $0x3bc] sm:$0xf]
  %v534 = vld [vmem:[%s2 + $0x3c0] sm:$0xf]
  %v535 = vld [vmem:[%s2 + $0x3c4] sm:$0xf]
  %v536 = vld [vmem:[%s2 + $0x3c8] sm:$0xf]
  %v537 = vld [vmem:[%s2 + $0x3cc] sm:$0xf]
  %v538 = vld [vmem:[%s2 + $0x3d0] sm:$0xf]
  %v539 = vld [vmem:[%s2 + $0x3d4] sm:$0xf]
  %v540 = vld [vmem:[%s2 + $0x3d8] sm:$0xf]
  %v541 = vld [vmem:[%s2 + $0x3dc] sm:$0xf]
  %v542 = vld [vmem:[%s2 + $0x3e0] sm:$0xf]
  %v543 = vld [vmem:[%s2 + $0x3e4] sm:$0xf]
  %v544 = vld [vmem:[%s2 + $0x3e8] sm:$0xf]
  %v545 = vld [vmem:[%s2 + $0x3ec] sm:$0xf]
  %v546 = vld [vmem:[%s2 + $0x3f0] sm:$0xf]
  %v547 = vld [vmem:[%s2 + $0x3f4] sm:$0xf]
  %v548 = vld [vmem:[%s2 + $0x3f8] sm:$0xf]
  %v549 = vld [vmem:[%s2 + $0x3fc] sm:$0xf]
  %v550 = vld [vmem:[%s3] sm:$0x1]
  %v552 = vlaneseq
  %v553 = vshrl.u32 %v552, 7
  %v554 = vsub.s32 0, %v553
  %v555 = vrot.slane %v550, %v554
  %v813 = vunpack.c.l.b16 %v294
  %v814 = vunpack.c.l.b16 %v295
  %v815 = vunpack.c.l.b16 %v296
  %v816 = vunpack.c.l.b16 %v297
  %v817 = vunpack.c.l.b16 %v298
  %v818 = vunpack.c.l.b16 %v299
  %v819 = vunpack.c.l.b16 %v300
  %v820 = vunpack.c.l.b16 %v301
  %v821 = vunpack.c.l.b16 %v302
  %v822 = vunpack.c.l.b16 %v303
  %v823 = vunpack.c.l.b16 %v304
  %v824 = vunpack.c.l.b16 %v305
  %v825 = vunpack.c.l.b16 %v306
  %v826 = vunpack.c.l.b16 %v307
  %v827 = vunpack.c.l.b16 %v308
  %v828 = vunpack.c.l.b16 %v309
  %v829 = vunpack.c.l.b16 %v310
  %v830 = vunpack.c.l.b16 %v311
  %v831 = vunpack.c.l.b16 %v312
  %v832 = vunpack.c.l.b16 %v313
  %v833 = vunpack.c.l.b16 %v314
  %v834 = vunpack.c.l.b16 %v315
  %v835 = vunpack.c.l.b16 %v316
  %v836 = vunpack.c.l.b16 %v317
  %v837 = vunpack.c.l.b16 %v318
  %v838 = vunpack.c.l.b16 %v319
  %v839 = vunpack.c.l.b16 %v320
  %v840 = vunpack.c.l.b16 %v321
  %v841 = vunpack.c.l.b16 %v322
  %v842 = vunpack.c.l.b16 %v323
  %v843 = vunpack.c.l.b16 %v324
  %v844 = vunpack.c.l.b16 %v325
  %v845 = vunpack.c.l.b16 %v326
  %v846 = vunpack.c.l.b16 %v327
  %v847 = vunpack.c.l.b16 %v328
  %v848 = vunpack.c.l.b16 %v329
  %v849 = vunpack.c.l.b16 %v330
  %v850 = vunpack.c.l.b16 %v331
  %v851 = vunpack.c.l.b16 %v332
  %v852 = vunpack.c.l.b16 %v333
  %v853 = vunpack.c.l.b16 %v334
  %v854 = vunpack.c.l.b16 %v335
  %v855 = vunpack.c.l.b16 %v336
  %v856 = vunpack.c.l.b16 %v337
  %v857 = vunpack.c.l.b16 %v338
  %v858 = vunpack.c.l.b16 %v339
  %v859 = vunpack.c.l.b16 %v340
  %v860 = vunpack.c.l.b16 %v341
  %v861 = vunpack.c.l.b16 %v342
  %v862 = vunpack.c.l.b16 %v343
  %v863 = vunpack.c.l.b16 %v344
  %v864 = vunpack.c.l.b16 %v345
  %v865 = vunpack.c.l.b16 %v346
  %v866 = vunpack.c.l.b16 %v347
  %v867 = vunpack.c.l.b16 %v348
  %v868 = vunpack.c.l.b16 %v349
  %v869 = vunpack.c.l.b16 %v350
  %v870 = vunpack.c.l.b16 %v351
  %v871 = vunpack.c.l.b16 %v352
  %v872 = vunpack.c.l.b16 %v353
  %v873 = vunpack.c.l.b16 %v354
  %v874 = vunpack.c.l.b16 %v355
  %v875 = vunpack.c.l.b16 %v356
  %v876 = vunpack.c.l.b16 %v357
  %v877 = vunpack.c.l.b16 %v358
  %v878 = vunpack.c.l.b16 %v359
  %v879 = vunpack.c.l.b16 %v360
  %v880 = vunpack.c.l.b16 %v361
  %v881 = vunpack.c.l.b16 %v362
  %v882 = vunpack.c.l.b16 %v363
  %v883 = vunpack.c.l.b16 %v364
  %v884 = vunpack.c.l.b16 %v365
  %v885 = vunpack.c.l.b16 %v366
  %v886 = vunpack.c.l.b16 %v367
  %v887 = vunpack.c.l.b16 %v368
  %v888 = vunpack.c.l.b16 %v369
  %v889 = vunpack.c.l.b16 %v370
  %v890 = vunpack.c.l.b16 %v371
  %v891 = vunpack.c.l.b16 %v372
  %v892 = vunpack.c.l.b16 %v373
  %v893 = vunpack.c.l.b16 %v374
  %v894 = vunpack.c.l.b16 %v375
  %v895 = vunpack.c.l.b16 %v376
  %v896 = vunpack.c.l.b16 %v377
  %v897 = vunpack.c.l.b16 %v378
  %v898 = vunpack.c.l.b16 %v379
  %v899 = vunpack.c.l.b16 %v380
  %v900 = vunpack.c.l.b16 %v381
  %v901 = vunpack.c.l.b16 %v382
  %v902 = vunpack.c.l.b16 %v383
  %v903 = vunpack.c.l.b16 %v384
  %v904 = vunpack.c.l.b16 %v385
  %v905 = vunpack.c.l.b16 %v386
  %v906 = vunpack.c.l.b16 %v387
  %v907 = vunpack.c.l.b16 %v388
  %v908 = vunpack.c.l.b16 %v389
  %v909 = vunpack.c.l.b16 %v390
  %v910 = vunpack.c.l.b16 %v391
  %v911 = vunpack.c.l.b16 %v392
  %v912 = vunpack.c.l.b16 %v393
  %v913 = vunpack.c.l.b16 %v394
  %v914 = vunpack.c.l.b16 %v395
  %v915 = vunpack.c.l.b16 %v396
  %v916 = vunpack.c.l.b16 %v397
  %v917 = vunpack.c.l.b16 %v398
  %v918 = vunpack.c.l.b16 %v399
  %v919 = vunpack.c.l.b16 %v400
  %v920 = vunpack.c.l.b16 %v401
  %v921 = vunpack.c.l.b16 %v402
  %v922 = vunpack.c.l.b16 %v403
  %v923 = vunpack.c.l.b16 %v404
  %v924 = vunpack.c.l.b16 %v405
  %v925 = vunpack.c.l.b16 %v406
  %v926 = vunpack.c.l.b16 %v407
  %v927 = vunpack.c.l.b16 %v408
  %v928 = vunpack.c.l.b16 %v409
  %v929 = vunpack.c.l.b16 %v410
  %v930 = vunpack.c.l.b16 %v411
  %v931 = vunpack.c.l.b16 %v412
  %v932 = vunpack.c.l.b16 %v413
  %v933 = vunpack.c.l.b16 %v414
  %v934 = vunpack.c.l.b16 %v415
  %v935 = vunpack.c.l.b16 %v416
  %v936 = vunpack.c.l.b16 %v417
  %v937 = vunpack.c.l.b16 %v418
  %v938 = vunpack.c.l.b16 %v419
  %v939 = vunpack.c.l.b16 %v420
  %v940 = vunpack.c.l.b16 %v421
  %v941 = vunpack.c.l.b16 %v422
  %v942 = vunpack.c.l.b16 %v423
  %v943 = vunpack.c.l.b16 %v424
  %v944 = vunpack.c.l.b16 %v425
  %v945 = vunpack.c.l.b16 %v426
  %v946 = vunpack.c.l.b16 %v427
  %v947 = vunpack.c.l.b16 %v428
  %v948 = vunpack.c.l.b16 %v429
  %v949 = vunpack.c.l.b16 %v430
  %v950 = vunpack.c.l.b16 %v431
  %v951 = vunpack.c.l.b16 %v432
  %v952 = vunpack.c.l.b16 %v433
  %v953 = vunpack.c.l.b16 %v434
  %v954 = vunpack.c.l.b16 %v435
  %v955 = vunpack.c.l.b16 %v436
  %v956 = vunpack.c.l.b16 %v437
  %v957 = vunpack.c.l.b16 %v438
  %v958 = vunpack.c.l.b16 %v439
  %v959 = vunpack.c.l.b16 %v440
  %v960 = vunpack.c.l.b16 %v441
  %v961 = vunpack.c.l.b16 %v442
  %v962 = vunpack.c.l.b16 %v443
  %v963 = vunpack.c.l.b16 %v444
  %v964 = vunpack.c.l.b16 %v445
  %v965 = vunpack.c.l.b16 %v446
  %v966 = vunpack.c.l.b16 %v447
  %v967 = vunpack.c.l.b16 %v448
  %v968 = vunpack.c.l.b16 %v449
  %v969 = vunpack.c.l.b16 %v450
  %v970 = vunpack.c.l.b16 %v451
  %v971 = vunpack.c.l.b16 %v452
  %v972 = vunpack.c.l.b16 %v453
  %v973 = vunpack.c.l.b16 %v454
  %v974 = vunpack.c.l.b16 %v455
  %v975 = vunpack.c.l.b16 %v456
  %v976 = vunpack.c.l.b16 %v457
  %v977 = vunpack.c.l.b16 %v458
  %v978 = vunpack.c.l.b16 %v459
  %v979 = vunpack.c.l.b16 %v460
  %v980 = vunpack.c.l.b16 %v461
  %v981 = vunpack.c.l.b16 %v462
  %v982 = vunpack.c.l.b16 %v463
  %v983 = vunpack.c.l.b16 %v464
  %v984 = vunpack.c.l.b16 %v465
  %v985 = vunpack.c.l.b16 %v466
  %v986 = vunpack.c.l.b16 %v467
  %v987 = vunpack.c.l.b16 %v468
  %v988 = vunpack.c.l.b16 %v469
  %v989 = vunpack.c.l.b16 %v470
  %v990 = vunpack.c.l.b16 %v471
  %v991 = vunpack.c.l.b16 %v472
  %v992 = vunpack.c.l.b16 %v473
  %v993 = vunpack.c.l.b16 %v474
  %v994 = vunpack.c.l.b16 %v475
  %v995 = vunpack.c.l.b16 %v476
  %v996 = vunpack.c.l.b16 %v477
  %v997 = vunpack.c.l.b16 %v478
  %v998 = vunpack.c.l.b16 %v479
  %v999 = vunpack.c.l.b16 %v480
  %v1000 = vunpack.c.l.b16 %v481
  %v1001 = vunpack.c.l.b16 %v482
  %v1002 = vunpack.c.l.b16 %v483
  %v1003 = vunpack.c.l.b16 %v484
  %v1004 = vunpack.c.l.b16 %v485
  %v1005 = vunpack.c.l.b16 %v486
  %v1006 = vunpack.c.l.b16 %v487
  %v1007 = vunpack.c.l.b16 %v488
  %v1008 = vunpack.c.l.b16 %v489
  %v1009 = vunpack.c.l.b16 %v490
  %v1010 = vunpack.c.l.b16 %v491
  %v1011 = vunpack.c.l.b16 %v492
  %v1012 = vunpack.c.l.b16 %v493
  %v1013 = vunpack.c.l.b16 %v494
  %v1014 = vunpack.c.l.b16 %v495
  %v1015 = vunpack.c.l.b16 %v496
  %v1016 = vunpack.c.l.b16 %v497
  %v1017 = vunpack.c.l.b16 %v498
  %v1018 = vunpack.c.l.b16 %v499
  %v1019 = vunpack.c.l.b16 %v500
  %v1020 = vunpack.c.l.b16 %v501
  %v1021 = vunpack.c.l.b16 %v502
  %v1022 = vunpack.c.l.b16 %v503
  %v1023 = vunpack.c.l.b16 %v504
  %v1024 = vunpack.c.l.b16 %v505
  %v1025 = vunpack.c.l.b16 %v506
  %v1026 = vunpack.c.l.b16 %v507
  %v1027 = vunpack.c.l.b16 %v508
  %v1028 = vunpack.c.l.b16 %v509
  %v1029 = vunpack.c.l.b16 %v510
  %v1030 = vunpack.c.l.b16 %v511
  %v1031 = vunpack.c.l.b16 %v512
  %v1032 = vunpack.c.l.b16 %v513
  %v1033 = vunpack.c.l.b16 %v514
  %v1034 = vunpack.c.l.b16 %v515
  %v1035 = vunpack.c.l.b16 %v516
  %v1036 = vunpack.c.l.b16 %v517
  %v1037 = vunpack.c.l.b16 %v518
  %v1038 = vunpack.c.l.b16 %v519
  %v1039 = vunpack.c.l.b16 %v520
  %v1040 = vunpack.c.l.b16 %v521
  %v1041 = vunpack.c.l.b16 %v522
  %v1042 = vunpack.c.l.b16 %v523
  %v1043 = vunpack.c.l.b16 %v524
  %v1044 = vunpack.c.l.b16 %v525
  %v1045 = vunpack.c.l.b16 %v526
  %v1046 = vunpack.c.l.b16 %v527
  %v1047 = vunpack.c.l.b16 %v528
  %v1048 = vunpack.c.l.b16 %v529
  %v1049 = vunpack.c.l.b16 %v530
  %v1050 = vunpack.c.l.b16 %v531
  %v1051 = vunpack.c.l.b16 %v532
  %v1052 = vunpack.c.l.b16 %v533
  %v1053 = vunpack.c.l.b16 %v534
  %v1054 = vunpack.c.l.b16 %v535
  %v1055 = vunpack.c.l.b16 %v536
  %v1056 = vunpack.c.l.b16 %v537
  %v1057 = vunpack.c.l.b16 %v538
  %v1058 = vunpack.c.l.b16 %v539
  %v1059 = vunpack.c.l.b16 %v540
  %v1060 = vunpack.c.l.b16 %v541
  %v1061 = vunpack.c.l.b16 %v542
  %v1062 = vunpack.c.l.b16 %v543
  %v1063 = vunpack.c.l.b16 %v544
  %v1064 = vunpack.c.l.b16 %v545
  %v1065 = vunpack.c.l.b16 %v546
  %v1066 = vunpack.c.l.b16 %v547
  %v1067 = vunpack.c.l.b16 %v548
  %v1068 = vunpack.c.l.b16 %v549
  %v1069 = vpack.c.b16 %v814, %v813
  %v1070 = vpack.c.b16 %v816, %v815
  %v1071 = vpack.c.b16 %v818, %v817
  %v1072 = vpack.c.b16 %v820, %v819
  %v1073 = vpack.c.b16 %v822, %v821
  %v1074 = vpack.c.b16 %v824, %v823
  %v1075 = vpack.c.b16 %v826, %v825
  %v1076 = vpack.c.b16 %v828, %v827
  %v1077 = vpack.c.b16 %v830, %v829
  %v1078 = vpack.c.b16 %v832, %v831
  %v1079 = vpack.c.b16 %v834, %v833
  %v1080 = vpack.c.b16 %v836, %v835
  %v1081 = vpack.c.b16 %v838, %v837
  %v1082 = vpack.c.b16 %v840, %v839
  %v1083 = vpack.c.b16 %v842, %v841
  %v1084 = vpack.c.b16 %v844, %v843
  %v1085 = vpack.c.b16 %v846, %v845
  %v1086 = vpack.c.b16 %v848, %v847
  %v1087 = vpack.c.b16 %v850, %v849
  %v1088 = vpack.c.b16 %v852, %v851
  %v1089 = vpack.c.b16 %v854, %v853
  %v1090 = vpack.c.b16 %v856, %v855
  %v1091 = vpack.c.b16 %v858, %v857
  %v1092 = vpack.c.b16 %v860, %v859
  %v1093 = vpack.c.b16 %v862, %v861
  %v1094 = vpack.c.b16 %v864, %v863
  %v1095 = vpack.c.b16 %v866, %v865
  %v1096 = vpack.c.b16 %v868, %v867
  %v1097 = vpack.c.b16 %v870, %v869
  %v1098 = vpack.c.b16 %v872, %v871
  %v1099 = vpack.c.b16 %v874, %v873
  %v1100 = vpack.c.b16 %v876, %v875
  %v1101 = vpack.c.b16 %v878, %v877
  %v1102 = vpack.c.b16 %v880, %v879
  %v1103 = vpack.c.b16 %v882, %v881
  %v1104 = vpack.c.b16 %v884, %v883
  %v1105 = vpack.c.b16 %v886, %v885
  %v1106 = vpack.c.b16 %v888, %v887
  %v1107 = vpack.c.b16 %v890, %v889
  %v1108 = vpack.c.b16 %v892, %v891
  %v1109 = vpack.c.b16 %v894, %v893
  %v1110 = vpack.c.b16 %v896, %v895
  %v1111 = vpack.c.b16 %v898, %v897
  %v1112 = vpack.c.b16 %v900, %v899
  %v1113 = vpack.c.b16 %v902, %v901
  %v1114 = vpack.c.b16 %v904, %v903
  %v1115 = vpack.c.b16 %v906, %v905
  %v1116 = vpack.c.b16 %v908, %v907
  %v1117 = vpack.c.b16 %v910, %v909
  %v1118 = vpack.c.b16 %v912, %v911
  %v1119 = vpack.c.b16 %v914, %v913
  %v1120 = vpack.c.b16 %v916, %v915
  %v1121 = vpack.c.b16 %v918, %v917
  %v1122 = vpack.c.b16 %v920, %v919
  %v1123 = vpack.c.b16 %v922, %v921
  %v1124 = vpack.c.b16 %v924, %v923
  %v1125 = vpack.c.b16 %v926, %v925
  %v1126 = vpack.c.b16 %v928, %v927
  %v1127 = vpack.c.b16 %v930, %v929
  %v1128 = vpack.c.b16 %v932, %v931
  %v1129 = vpack.c.b16 %v934, %v933
  %v1130 = vpack.c.b16 %v936, %v935
  %v1131 = vpack.c.b16 %v938, %v937
  %v1132 = vpack.c.b16 %v940, %v939
  %v1133 = vpack.c.b16 %v942, %v941
  %v1134 = vpack.c.b16 %v944, %v943
  %v1135 = vpack.c.b16 %v946, %v945
  %v1136 = vpack.c.b16 %v948, %v947
  %v1137 = vpack.c.b16 %v950, %v949
  %v1138 = vpack.c.b16 %v952, %v951
  %v1139 = vpack.c.b16 %v954, %v953
  %v1140 = vpack.c.b16 %v956, %v955
  %v1141 = vpack.c.b16 %v958, %v957
  %v1142 = vpack.c.b16 %v960, %v959
  %v1143 = vpack.c.b16 %v962, %v961
  %v1144 = vpack.c.b16 %v964, %v963
  %v1145 = vpack.c.b16 %v966, %v965
  %v1146 = vpack.c.b16 %v968, %v967
  %v1147 = vpack.c.b16 %v970, %v969
  %v1148 = vpack.c.b16 %v972, %v971
  %v1149 = vpack.c.b16 %v974, %v973
  %v1150 = vpack.c.b16 %v976, %v975
  %v1151 = vpack.c.b16 %v978, %v977
  %v1152 = vpack.c.b16 %v980, %v979
  %v1153 = vpack.c.b16 %v982, %v981
  %v1154 = vpack.c.b16 %v984, %v983
  %v1155 = vpack.c.b16 %v986, %v985
  %v1156 = vpack.c.b16 %v988, %v987
  %v1157 = vpack.c.b16 %v990, %v989
  %v1158 = vpack.c.b16 %v992, %v991
  %v1159 = vpack.c.b16 %v994, %v993
  %v1160 = vpack.c.b16 %v996, %v995
  %v1161 = vpack.c.b16 %v998, %v997
  %v1162 = vpack.c.b16 %v1000, %v999
  %v1163 = vpack.c.b16 %v1002, %v1001
  %v1164 = vpack.c.b16 %v1004, %v1003
  %v1165 = vpack.c.b16 %v1006, %v1005
  %v1166 = vpack.c.b16 %v1008, %v1007
  %v1167 = vpack.c.b16 %v1010, %v1009
  %v1168 = vpack.c.b16 %v1012, %v1011
  %v1169 = vpack.c.b16 %v1014, %v1013
  %v1170 = vpack.c.b16 %v1016, %v1015
  %v1171 = vpack.c.b16 %v1018, %v1017
  %v1172 = vpack.c.b16 %v1020, %v1019
  %v1173 = vpack.c.b16 %v1022, %v1021
  %v1174 = vpack.c.b16 %v1024, %v1023
  %v1175 = vpack.c.b16 %v1026, %v1025
  %v1176 = vpack.c.b16 %v1028, %v1027
  %v1177 = vpack.c.b16 %v1030, %v1029
  %v1178 = vpack.c.b16 %v1032, %v1031
  %v1179 = vpack.c.b16 %v1034, %v1033
  %v1180 = vpack.c.b16 %v1036, %v1035
  %v1181 = vpack.c.b16 %v1038, %v1037
  %v1182 = vpack.c.b16 %v1040, %v1039
  %v1183 = vpack.c.b16 %v1042, %v1041
  %v1184 = vpack.c.b16 %v1044, %v1043
  %v1185 = vpack.c.b16 %v1046, %v1045
  %v1186 = vpack.c.b16 %v1048, %v1047
  %v1187 = vpack.c.b16 %v1050, %v1049
  %v1188 = vpack.c.b16 %v1052, %v1051
  %v1189 = vpack.c.b16 %v1054, %v1053
  %v1190 = vpack.c.b16 %v1056, %v1055
  %v1191 = vpack.c.b16 %v1058, %v1057
  %v1192 = vpack.c.b16 %v1060, %v1059
  %v1193 = vpack.c.b16 %v1062, %v1061
  %v1194 = vpack.c.b16 %v1064, %v1063
  %v1195 = vpack.c.b16 %v1066, %v1065
  %v1196 = vpack.c.b16 %v1068, %v1067
  %1325 = vmatprep.subr.bf16.mxu0 0
  %1326 = vmatpush1.bf16.msra.mxu0 %v1076
  %1327 = vmatprep.subr.bf16.mxu0 0
  %1328 = vmatpush1.bf16.msra.mxu0 %v1075
  %1329 = vmatprep.subr.bf16.mxu0 0
  %1330 = vmatpush1.bf16.msra.mxu0 %v1074
  %1331 = vmatprep.subr.bf16.mxu0 0
  %1332 = vmatpush1.bf16.msra.mxu0 %v1073
  %1333 = vmatprep.subr.bf16.mxu0 0
  %1334 = vmatpush1.bf16.msra.mxu0 %v1072
  %1335 = vmatprep.subr.bf16.mxu0 0
  %1336 = vmatpush1.bf16.msra.mxu0 %v1071
  %1337 = vmatprep.subr.bf16.mxu0 0
  %1338 = vmatpush1.bf16.msra.mxu0 %v1070
  %1339 = vmatprep.subr.bf16.mxu0 0
  %1340 = vmatpush1.bf16.msra.mxu0 %v1069
  %1341 = vmatprep.subr.bf16.mxu0 0
  %1342 = vmatpush2.bf16.msra.mxu0 %v1084
  %1343 = vmatprep.subr.bf16.mxu0 0
  %1344 = vmatpush2.bf16.msra.mxu0 %v1083
  %1345 = vmatprep.subr.bf16.mxu0 0
  %1346 = vmatpush2.bf16.msra.mxu0 %v1082
  %1347 = vmatprep.subr.bf16.mxu0 0
  %1348 = vmatpush2.bf16.msra.mxu0 %v1081
  %1349 = vmatprep.subr.bf16.mxu0 0
  %1350 = vmatpush2.bf16.msra.mxu0 %v1080
  %1351 = vmatprep.subr.bf16.mxu0 0
  %1352 = vmatpush2.bf16.msra.mxu0 %v1079
  %1353 = vmatprep.subr.bf16.mxu0 0
  %1354 = vmatpush2.bf16.msra.mxu0 %v1078
  %1355 = vmatprep.subr.bf16.mxu0 0
  %1356 = vmatpush2.bf16.msra.mxu0 %v1077
  %1357 = vmatprep.mubr.bf16.mxu0 %v279
  %1358 = vmatmul.mubr.bf16.gmra.mxu0 %v278
  %v1359 = vpop.f32.mrf.mxu0
  %v1360 = vadd.f32 %v555, %v1359
  %v1361 = vpop.f32.mrf.mxu0
  %v1362 = vpop.f32.mrf.mxu0
  %v1363 = vadd.f32 %v555, %v1362
  %v1364 = vpop.f32.mrf.mxu0
  %1365 = vdwg.mxu0
  %1366 = vmatprep.subr.bf16.mxu0 0
  %1367 = vmatpush1.bf16.msra.mxu0 %v1092
  %1368 = vmatprep.subr.bf16.mxu0 0
  %1369 = vmatpush1.bf16.msra.mxu0 %v1091
  %1370 = vmatprep.subr.bf16.mxu0 0
  %1371 = vmatpush1.bf16.msra.mxu0 %v1090
  %1372 = vmatprep.subr.bf16.mxu0 0
  %1373 = vmatpush1.bf16.msra.mxu0 %v1089
  %1374 = vmatprep.subr.bf16.mxu0 0
  %1375 = vmatpush1.bf16.msra.mxu0 %v1088
  %1376 = vmatprep.subr.bf16.mxu0 0
  %1377 = vmatpush1.bf16.msra.mxu0 %v1087
  %1378 = vmatprep.subr.bf16.mxu0 0
  %1379 = vmatpush1.bf16.msra.mxu0 %v1086
  %1380 = vmatprep.subr.bf16.mxu0 0
  %1381 = vmatpush1.bf16.msra.mxu0 %v1085
  %1382 = vmatprep.subr.bf16.mxu0 0
  %1383 = vmatpush2.bf16.msra.mxu0 %v1100
  %1384 = vmatprep.subr.bf16.mxu0 0
  %1385 = vmatpush2.bf16.msra.mxu0 %v1099
  %1386 = vmatprep.subr.bf16.mxu0 0
  %1387 = vmatpush2.bf16.msra.mxu0 %v1098
  %1388 = vmatprep.subr.bf16.mxu0 0
  %1389 = vmatpush2.bf16.msra.mxu0 %v1097
  %1390 = vmatprep.subr.bf16.mxu0 0
  %1391 = vmatpush2.bf16.msra.mxu0 %v1096
  %1392 = vmatprep.subr.bf16.mxu0 0
  %1393 = vmatpush2.bf16.msra.mxu0 %v1095
  %1394 = vmatprep.subr.bf16.mxu0 0
  %1395 = vmatpush2.bf16.msra.mxu0 %v1094
  %1396 = vmatprep.subr.bf16.mxu0 0
  %1397 = vmatpush2.bf16.msra.mxu0 %v1093
  %1398 = vmatprep.mubr.bf16.mxu0 %v281
  %1399 = vmatmul.mubr.bf16.gmra.mxu0 %v280
  %v1400 = vpop.f32.mrf.mxu0
  %v1401 = vadd.f32 %v1360, %v1400
  %v1402 = vpop.f32.mrf.mxu0
  %v1403 = vpop.f32.mrf.mxu0
  %v1404 = vadd.f32 %v1363, %v1403
  %v1405 = vpop.f32.mrf.mxu0
  %1406 = vdwg.mxu0
  %1407 = vmatprep.subr.bf16.mxu0 0
  %1408 = vmatpush1.bf16.msra.mxu0 %v1108
  %1409 = vmatprep.subr.bf16.mxu0 0
  %1410 = vmatpush1.bf16.msra.mxu0 %v1107
  %1411 = vmatprep.subr.bf16.mxu0 0
  %1412 = vmatpush1.bf16.msra.mxu0 %v1106
  %1413 = vmatprep.subr.bf16.mxu0 0
  %1414 = vmatpush1.bf16.msra.mxu0 %v1105
  %1415 = vmatprep.subr.bf16.mxu0 0
  %1416 = vmatpush1.bf16.msra.mxu0 %v1104
  %1417 = vmatprep.subr.bf16.mxu0 0
  %1418 = vmatpush1.bf16.msra.mxu0 %v1103
  %1419 = vmatprep.subr.bf16.mxu0 0
  %1420 = vmatpush1.bf16.msra.mxu0 %v1102
  %1421 = vmatprep.subr.bf16.mxu0 0
  %1422 = vmatpush1.bf16.msra.mxu0 %v1101
  %1423 = vmatprep.subr.bf16.mxu0 0
  %1424 = vmatpush2.bf16.msra.mxu0 %v1116
  %1425 = vmatprep.subr.bf16.mxu0 0
  %1426 = vmatpush2.bf16.msra.mxu0 %v1115
  %1427 = vmatprep.subr.bf16.mxu0 0
  %1428 = vmatpush2.bf16.msra.mxu0 %v1114
  %1429 = vmatprep.subr.bf16.mxu0 0
  %1430 = vmatpush2.bf16.msra.mxu0 %v1113
  %1431 = vmatprep.subr.bf16.mxu0 0
  %1432 = vmatpush2.bf16.msra.mxu0 %v1112
  %1433 = vmatprep.subr.bf16.mxu0 0
  %1434 = vmatpush2.bf16.msra.mxu0 %v1111
  %1435 = vmatprep.subr.bf16.mxu0 0
  %1436 = vmatpush2.bf16.msra.mxu0 %v1110
  %1437 = vmatprep.subr.bf16.mxu0 0
  %1438 = vmatpush2.bf16.msra.mxu0 %v1109
  %1439 = vmatprep.mubr.bf16.mxu0 %v283
  %1440 = vmatmul.mubr.bf16.gmra.mxu0 %v282
  %v1441 = vpop.f32.mrf.mxu0
  %v1442 = vadd.f32 %v1401, %v1441
  %v1443 = vpop.f32.mrf.mxu0
  %v1444 = vpop.f32.mrf.mxu0
  %v1445 = vadd.f32 %v1404, %v1444
  %v1446 = vpop.f32.mrf.mxu0
  %1447 = vdwg.mxu0
  %1448 = vmatprep.subr.bf16.mxu0 0
  %1449 = vmatpush1.bf16.msra.mxu0 %v1124
  %1450 = vmatprep.subr.bf16.mxu0 0
  %1451 = vmatpush1.bf16.msra.mxu0 %v1123
  %1452 = vmatprep.subr.bf16.mxu0 0
  %1453 = vmatpush1.bf16.msra.mxu0 %v1122
  %1454 = vmatprep.subr.bf16.mxu0 0
  %1455 = vmatpush1.bf16.msra.mxu0 %v1121
  %1456 = vmatprep.subr.bf16.mxu0 0
  %1457 = vmatpush1.bf16.msra.mxu0 %v1120
  %1458 = vmatprep.subr.bf16.mxu0 0
  %1459 = vmatpush1.bf16.msra.mxu0 %v1119
  %1460 = vmatprep.subr.bf16.mxu0 0
  %1461 = vmatpush1.bf16.msra.mxu0 %v1118
  %1462 = vmatprep.subr.bf16.mxu0 0
  %1463 = vmatpush1.bf16.msra.mxu0 %v1117
  %1464 = vmatprep.subr.bf16.mxu0 0
  %1465 = vmatpush2.bf16.msra.mxu0 %v1132
  %1466 = vmatprep.subr.bf16.mxu0 0
  %1467 = vmatpush2.bf16.msra.mxu0 %v1131
  %1468 = vmatprep.subr.bf16.mxu0 0
  %1469 = vmatpush2.bf16.msra.mxu0 %v1130
  %1470 = vmatprep.subr.bf16.mxu0 0
  %1471 = vmatpush2.bf16.msra.mxu0 %v1129
  %1472 = vmatprep.subr.bf16.mxu0 0
  %1473 = vmatpush2.bf16.msra.mxu0 %v1128
  %1474 = vmatprep.subr.bf16.mxu0 0
  %1475 = vmatpush2.bf16.msra.mxu0 %v1127
  %1476 = vmatprep.subr.bf16.mxu0 0
  %1477 = vmatpush2.bf16.msra.mxu0 %v1126
  %1478 = vmatprep.subr.bf16.mxu0 0
  %1479 = vmatpush2.bf16.msra.mxu0 %v1125
  %1480 = vmatprep.mubr.bf16.mxu0 %v285
  %1481 = vmatmul.mubr.bf16.gmra.mxu0 %v284
  %v1482 = vpop.f32.mrf.mxu0
  %v1483 = vadd.f32 %v1442, %v1482
  %v1484 = vpop.f32.mrf.mxu0
  %v1485 = vpop.f32.mrf.mxu0
  %v1486 = vadd.f32 %v1445, %v1485
  %v1487 = vpop.f32.mrf.mxu0
  %1488 = vdwg.mxu0
  %1489 = vmatprep.subr.bf16.mxu0 0
  %1490 = vmatpush1.bf16.msra.mxu0 %v1140
  %1491 = vmatprep.subr.bf16.mxu0 0
  %1492 = vmatpush1.bf16.msra.mxu0 %v1139
  %1493 = vmatprep.subr.bf16.mxu0 0
  %1494 = vmatpush1.bf16.msra.mxu0 %v1138
  %1495 = vmatprep.subr.bf16.mxu0 0
  %1496 = vmatpush1.bf16.msra.mxu0 %v1137
  %1497 = vmatprep.subr.bf16.mxu0 0
  %1498 = vmatpush1.bf16.msra.mxu0 %v1136
  %1499 = vmatprep.subr.bf16.mxu0 0
  %1500 = vmatpush1.bf16.msra.mxu0 %v1135
  %1501 = vmatprep.subr.bf16.mxu0 0
  %1502 = vmatpush1.bf16.msra.mxu0 %v1134
  %1503 = vmatprep.subr.bf16.mxu0 0
  %1504 = vmatpush1.bf16.msra.mxu0 %v1133
  %1505 = vmatprep.subr.bf16.mxu0 0
  %1506 = vmatpush2.bf16.msra.mxu0 %v1148
  %1507 = vmatprep.subr.bf16.mxu0 0
  %1508 = vmatpush2.bf16.msra.mxu0 %v1147
  %1509 = vmatprep.subr.bf16.mxu0 0
  %1510 = vmatpush2.bf16.msra.mxu0 %v1146
  %1511 = vmatprep.subr.bf16.mxu0 0
  %1512 = vmatpush2.bf16.msra.mxu0 %v1145
  %1513 = vmatprep.subr.bf16.mxu0 0
  %1514 = vmatpush2.bf16.msra.mxu0 %v1144
  %1515 = vmatprep.subr.bf16.mxu0 0
  %1516 = vmatpush2.bf16.msra.mxu0 %v1143
  %1517 = vmatprep.subr.bf16.mxu0 0
  %1518 = vmatpush2.bf16.msra.mxu0 %v1142
  %1519 = vmatprep.subr.bf16.mxu0 0
  %1520 = vmatpush2.bf16.msra.mxu0 %v1141
  %1521 = vmatprep.mubr.bf16.mxu0 %v287
  %1522 = vmatmul.mubr.bf16.gmra.mxu0 %v286
  %v1523 = vpop.f32.mrf.mxu0
  %v1524 = vadd.f32 %v1483, %v1523
  %v1525 = vpop.f32.mrf.mxu0
  %v1526 = vpop.f32.mrf.mxu0
  %v1527 = vadd.f32 %v1486, %v1526
  %v1528 = vpop.f32.mrf.mxu0
  %1529 = vdwg.mxu0
  %1530 = vmatprep.subr.bf16.mxu0 0
  %1531 = vmatpush1.bf16.msra.mxu0 %v1156
  %1532 = vmatprep.subr.bf16.mxu0 0
  %1533 = vmatpush1.bf16.msra.mxu0 %v1155
  %1534 = vmatprep.subr.bf16.mxu0 0
  %1535 = vmatpush1.bf16.msra.mxu0 %v1154
  %1536 = vmatprep.subr.bf16.mxu0 0
  %1537 = vmatpush1.bf16.msra.mxu0 %v1153
  %1538 = vmatprep.subr.bf16.mxu0 0
  %1539 = vmatpush1.bf16.msra.mxu0 %v1152
  %1540 = vmatprep.subr.bf16.mxu0 0
  %1541 = vmatpush1.bf16.msra.mxu0 %v1151
  %1542 = vmatprep.subr.bf16.mxu0 0
  %1543 = vmatpush1.bf16.msra.mxu0 %v1150
  %1544 = vmatprep.subr.bf16.mxu0 0
  %1545 = vmatpush1.bf16.msra.mxu0 %v1149
  %1546 = vmatprep.subr.bf16.mxu0 0
  %1547 = vmatpush2.bf16.msra.mxu0 %v1164
  %1548 = vmatprep.subr.bf16.mxu0 0
  %1549 = vmatpush2.bf16.msra.mxu0 %v1163
  %1550 = vmatprep.subr.bf16.mxu0 0
  %1551 = vmatpush2.bf16.msra.mxu0 %v1162
  %1552 = vmatprep.subr.bf16.mxu0 0
  %1553 = vmatpush2.bf16.msra.mxu0 %v1161
  %1554 = vmatprep.subr.bf16.mxu0 0
  %1555 = vmatpush2.bf16.msra.mxu0 %v1160
  %1556 = vmatprep.subr.bf16.mxu0 0
  %1557 = vmatpush2.bf16.msra.mxu0 %v1159
  %1558 = vmatprep.subr.bf16.mxu0 0
  %1559 = vmatpush2.bf16.msra.mxu0 %v1158
  %1560 = vmatprep.subr.bf16.mxu0 0
  %1561 = vmatpush2.bf16.msra.mxu0 %v1157
  %1562 = vmatprep.mubr.bf16.mxu0 %v289
  %1563 = vmatmul.mubr.bf16.gmra.mxu0 %v288
  %v1564 = vpop.f32.mrf.mxu0
  %v1565 = vadd.f32 %v1524, %v1564
  %v1566 = vpop.f32.mrf.mxu0
  %v1567 = vpop.f32.mrf.mxu0
  %v1568 = vadd.f32 %v1527, %v1567
  %v1569 = vpop.f32.mrf.mxu0
  %1570 = vdwg.mxu0
  %1571 = vmatprep.subr.bf16.mxu0 0
  %1572 = vmatpush1.bf16.msra.mxu0 %v1172
  %1573 = vmatprep.subr.bf16.mxu0 0
  %1574 = vmatpush1.bf16.msra.mxu0 %v1171
  %1575 = vmatprep.subr.bf16.mxu0 0
  %1576 = vmatpush1.bf16.msra.mxu0 %v1170
  %1577 = vmatprep.subr.bf16.mxu0 0
  %1578 = vmatpush1.bf16.msra.mxu0 %v1169
  %1579 = vmatprep.subr.bf16.mxu0 0
  %1580 = vmatpush1.bf16.msra.mxu0 %v1168
  %1581 = vmatprep.subr.bf16.mxu0 0
  %1582 = vmatpush1.bf16.msra.mxu0 %v1167
  %1583 = vmatprep.subr.bf16.mxu0 0
  %1584 = vmatpush1.bf16.msra.mxu0 %v1166
  %1585 = vmatprep.subr.bf16.mxu0 0
  %1586 = vmatpush1.bf16.msra.mxu0 %v1165
  %1587 = vmatprep.subr.bf16.mxu0 0
  %1588 = vmatpush2.bf16.msra.mxu0 %v1180
  %1589 = vmatprep.subr.bf16.mxu0 0
  %1590 = vmatpush2.bf16.msra.mxu0 %v1179
  %1591 = vmatprep.subr.bf16.mxu0 0
  %1592 = vmatpush2.bf16.msra.mxu0 %v1178
  %1593 = vmatprep.subr.bf16.mxu0 0
  %1594 = vmatpush2.bf16.msra.mxu0 %v1177
  %1595 = vmatprep.subr.bf16.mxu0 0
  %1596 = vmatpush2.bf16.msra.mxu0 %v1176
  %1597 = vmatprep.subr.bf16.mxu0 0
  %1598 = vmatpush2.bf16.msra.mxu0 %v1175
  %1599 = vmatprep.subr.bf16.mxu0 0
  %1600 = vmatpush2.bf16.msra.mxu0 %v1174
  %1601 = vmatprep.subr.bf16.mxu0 0
  %1602 = vmatpush2.bf16.msra.mxu0 %v1173
  %1603 = vmatprep.mubr.bf16.mxu0 %v291
  %1604 = vmatmul.mubr.bf16.gmra.mxu0 %v290
  %v1605 = vpop.f32.mrf.mxu0
  %v1606 = vadd.f32 %v1565, %v1605
  %v1607 = vpop.f32.mrf.mxu0
  %v1608 = vpop.f32.mrf.mxu0
  %v1609 = vadd.f32 %v1568, %v1608
  %v1610 = vpop.f32.mrf.mxu0
  %1611 = vdwg.mxu0
  %1612 = vmatprep.subr.bf16.mxu0 0
  %1613 = vmatpush1.bf16.msra.mxu0 %v1188
  %1614 = vmatprep.subr.bf16.mxu0 0
  %1615 = vmatpush1.bf16.msra.mxu0 %v1187
  %1616 = vmatprep.subr.bf16.mxu0 0
  %1617 = vmatpush1.bf16.msra.mxu0 %v1186
  %1618 = vmatprep.subr.bf16.mxu0 0
  %1619 = vmatpush1.bf16.msra.mxu0 %v1185
  %1620 = vmatprep.subr.bf16.mxu0 0
  %1621 = vmatpush1.bf16.msra.mxu0 %v1184
  %1622 = vmatprep.subr.bf16.mxu0 0
  %1623 = vmatpush1.bf16.msra.mxu0 %v1183
  %1624 = vmatprep.subr.bf16.mxu0 0
  %1625 = vmatpush1.bf16.msra.mxu0 %v1182
  %1626 = vmatprep.subr.bf16.mxu0 0
  %1627 = vmatpush1.bf16.msra.mxu0 %v1181
  %1628 = vmatprep.subr.bf16.mxu0 0
  %1629 = vmatpush2.bf16.msra.mxu0 %v1196
  %1630 = vmatprep.subr.bf16.mxu0 0
  %1631 = vmatpush2.bf16.msra.mxu0 %v1195
  %1632 = vmatprep.subr.bf16.mxu0 0
  %1633 = vmatpush2.bf16.msra.mxu0 %v1194
  %1634 = vmatprep.subr.bf16.mxu0 0
  %1635 = vmatpush2.bf16.msra.mxu0 %v1193
  %1636 = vmatprep.subr.bf16.mxu0 0
  %1637 = vmatpush2.bf16.msra.mxu0 %v1192
  %1638 = vmatprep.subr.bf16.mxu0 0
  %1639 = vmatpush2.bf16.msra.mxu0 %v1191
  %1640 = vmatprep.subr.bf16.mxu0 0
  %1641 = vmatpush2.bf16.msra.mxu0 %v1190
  %1642 = vmatprep.subr.bf16.mxu0 0
  %1643 = vmatpush2.bf16.msra.mxu0 %v1189
  %1644 = vmatprep.mubr.bf16.mxu0 %v293
  %1645 = vmatmul.mubr.bf16.gmra.mxu0 %v292
  %v1646 = vpop.f32.mrf.mxu0
  %v1647 = vadd.f32 %v1606, %v1646
  %v1648 = vpop.f32.mrf.mxu0
  %v1649 = vpop.f32.mrf.mxu0
  %v1650 = vadd.f32 %v1609, %v1649
  %v1651 = vpop.f32.mrf.mxu0
  %1652 = vdwg.mxu0
  %1653 = vst [vmem:[%s4] sm:$0xff] %v1647
  %1654 = vst [vmem:[%s4 + $0x8] sm:$0xff] %v1650
  // Predicated region
  $region18: #{_lambda_.9} parent=0 // pred_check
    _
  $region19: #{_lambda_.9} parent=0 // pred_check_branch
    %1656 = sbr.rel (0) target = $region21
  $region20: #{_lambda_.9} parent=0 // pred_region
    _
  $region21: #{_lambda_.9} parent=0 // pred_fallthru
    _
  // Predicated region
  $region22: #{_lambda_.9} parent=0 // pred_check
    _
  $region23: #{_lambda_.9} parent=0 // pred_check_branch
    %1658 = sbr.rel (0) target = $region25
  $region24: #{_lambda_.9} parent=0 // pred_region
    _
  $region25: #{_lambda_.9} parent=0 // pred_fallthru
    _

</llo_original>
